<compile_context>
chip_gen: v5e
topology: v5e:2x2
jax: 0.10.0
libtpu: 0.0.40
codegen_flags: <defaults>
</compile_context>

<pallas_src>
import functools

import jax
import jax.numpy as jnp
from jax import lax
from jax.experimental import pallas as pl
from jax.experimental.pallas import tpu as pltpu

EPS = 1e-5          # nn.BatchNorm2d default
NEG_SLOPE = 0.2     # nn.LeakyReLU(negative_slope=0.2)
LANE = 128          # channel axes are zero-padded to a multiple of the lane width

_BUFFERED_OK = None   # is pipeline_mode=pl.Buffered(1) supported?
_ELEMENT_OK = None    # are element-offset (overlapping) input windows supported?


def _round_up(x, m):
    return (x + m - 1) // m * m


def _cdiv(a, b):
    return -(-a // b)


def _vmem_limit_bytes():
    """Per-generation VMEM limit (v5e/v6e: 128 MiB physical, v7x: 64 MiB per core)."""
    try:
        cap = int(pltpu.get_tpu_info().vmem_capacity_bytes)
    except Exception:
        cap = 64 * 1024 * 1024
    return min(cap * 3 // 4, 100 * 1024 * 1024)


# --------------------------------------------------------------------------------------
# One-time feature probes (run outside jit): keep the optimized path where supported,
# degrade gracefully otherwise so the kernel always runs.
# --------------------------------------------------------------------------------------
def _probe_buffered():
    global _BUFFERED_OK
    if _BUFFERED_OK is None:
        try:
            def k(x_ref, o_ref):
                o_ref[...] = x_ref[...] + 1.0
            spec = pl.BlockSpec((8, 128), lambda i: (0, 0), pipeline_mode=pl.Buffered(1))
            out = pl.pallas_call(
                k, grid=(2,), in_specs=[spec],
                out_specs=pl.BlockSpec((8, 128), lambda i: (0, 0)),
                out_shape=jax.ShapeDtypeStruct((8, 128), jnp.float32),
            )(jnp.zeros((8, 128), jnp.float32))
            _BUFFERED_OK = bool(jnp.all(out == 1.0))
        except Exception:
            _BUFFERED_OK = False
    return _BUFFERED_OK


def _probe_element():
    global _ELEMENT_OK
    if _ELEMENT_OK is None:
        try:
            def k(x_ref, o_ref):
                o_ref[...] = x_ref[:, 1:5]
            x = (jnp.arange(10, dtype=jnp.float32)[None, :, None, None]
                 * jnp.ones((1, 1, 8, 128), jnp.float32))
            out = pl.pallas_call(
                k, grid=(1, 2),
                in_specs=[pl.BlockSpec((1, pl.Element(6), 8, 128),
                                       lambda i, j: (i, j * 4, 0, 0))],
                out_specs=pl.BlockSpec((1, 4, 8, 128), lambda i, j: (i, j, 0, 0)),
                out_shape=jax.ShapeDtypeStruct((1, 8, 8, 128), jnp.float32),
            )(x)
            _ELEMENT_OK = bool(jnp.all(out[0, :, 0, 0]
                                       == jnp.arange(1, 9, dtype=jnp.float32)))
        except Exception:
            _ELEMENT_OK = False
    return _ELEMENT_OK


def _resident_spec(shape):
    """Spec for a block that never changes across the grid (weights / BN affine):
    single-buffered resident when the installed jax supports pl.Buffered(1)."""
    ndim = len(shape)
    idx = lambda i, j: (0,) * ndim
    if _BUFFERED_OK:
        return pl.BlockSpec(shape, idx, pipeline_mode=pl.Buffered(1))
    return pl.BlockSpec(shape, idx)


# --------------------------------------------------------------------------------------
# Kernels
# --------------------------------------------------------------------------------------
def _finalize_tile(acc, y_ref, stats_ref, h_valid):
    """Zero rows past the valid height, store the tile (bf16), and emit per-tile BN
    partials [sum, centered sum-of-squares].  Partials are computed from the *rounded*
    stored values so the affine applied later matches the data exactly."""
    th, width, cout = y_ref.shape[1], y_ref.shape[2], y_ref.shape[3]
    rows = lax.broadcasted_iota(jnp.int32, (th, width, 1), 0) + pl.program_id(1) * th
    valid = (rows < h_valid).reshape(th * width, 1)
    y = jnp.where(valid, acc, 0.0).astype(y_ref.dtype)                    # (th*W, cout)
    y_ref[0] = y.reshape(th, width, cout)
    yf = y.astype(jnp.float32)
    n_valid = jnp.sum(valid.astype(jnp.float32), axis=0, keepdims=True)   # (1, 1) pixels
    s = jnp.sum(yf, axis=0, keepdims=True)                                # (1, cout)
    centered = jnp.where(valid, yf - s / n_valid, 0.0)
    css = jnp.sum(centered * centered, axis=0, keepdims=True)             # (1, cout)
    stats_ref[0, 0] = jnp.concatenate([s, css], axis=0)


def _conv3x3_kernel(x_ref, w_ref, scale_ref, shift_ref, y_ref, stats_ref, *scratch,
                    pre_act, use_im2col, h_valid):
    """3x3 SAME conv of one halo'd H-tile (single MXU matmul via im2col, or 9
    accumulating matmuls when cin already fills the MXU) + fused per-tile BN partials.
    Optionally fuses the previous layer's BN affine + LeakyReLU as a prologue."""
    th, width, cout = y_ref.shape[1], y_ref.shape[2], y_ref.shape[3]
    cin = x_ref.shape[-1]

    x = x_ref[0]                                              # (th+2, W+2, cin) bf16
    if pre_act:
        h = (x.astype(jnp.float32) * scale_ref[0][None, None, :]
             + shift_ref[0][None, None, :])
        h = jnp.where(h >= 0, h, NEG_SLOPE * h)
        # The SAME-pad border (and rows past the valid height) must be exactly zero
        # *after* the affine + activation so this conv's zero padding stays correct.
        row = (lax.broadcasted_iota(jnp.int32, (th + 2, width + 2, 1), 0)
               + pl.program_id(1) * th)
        col = lax.broadcasted_iota(jnp.int32, (th + 2, width + 2, 1), 1)
        is_pad = (col == 0) | (col == width + 1) | (row == 0) | (row >= h_valid + 1)
        x = jnp.where(is_pad, 0.0, h).astype(jnp.bfloat16)

    if use_im2col:
        # Stack the 9 taps along K -> one (th*W, 9*cin) x (9*cin, cout) MXU matmul.
        col_ref = scratch[0]
        for t in range(9):
            dh, dw = divmod(t, 3)
            col_ref[:, t * cin:(t + 1) * cin] = (
                x[dh:dh + th, dw:dw + width, :].reshape(th * width, cin))
        acc = jnp.dot(col_ref[...], w_ref[...], preferred_element_type=jnp.float32)
    else:
        # cin already fills the MXU K dim: 9 accumulating matmuls, no multi-MB im2col
        # scratch (saves VMEM on v7x and vector-store slots on v5e).
        acc = jnp.zeros((th * width, cout), jnp.float32)
        for t in range(9):
            dh, dw = divmod(t, 3)
            lhs = x[dh:dh + th, dw:dw + width, :].reshape(th * width, cin)
            acc = acc + jnp.dot(lhs, w_ref[t * cin:(t + 1) * cin, :],
                                preferred_element_type=jnp.float32)

    _finalize_tile(acc, y_ref, stats_ref, h_valid)


def _matmul_conv_kernel(x_ref, w_ref, y_ref, stats_ref, *, h_valid):
    """Conv tile whose im2col was done cheaply in the wrapper (stem-style conv with
    tiny cin): one plain MXU matmul, K stays at 128 instead of 9*128."""
    th, width = y_ref.shape[1], y_ref.shape[2]
    kdim = x_ref.shape[-1]
    acc = jnp.dot(x_ref[0].reshape(th * width, kdim), w_ref[...],
                  preferred_element_type=jnp.float32)
    _finalize_tile(acc, y_ref, stats_ref, h_valid)


# --------------------------------------------------------------------------------------
# pallas_call wrappers
# --------------------------------------------------------------------------------------
def _compiler_params():
    return pltpu.CompilerParams(
        dimension_semantics=("parallel", "parallel"),
        vmem_limit_bytes=_vmem_limit_bytes(),
    )


def _conv3x3(xpad, w_flat, scale_in, shift_in, *, pre_act, use_im2col, th, h_valid):
    """xpad: (N, Hpad+2, W+2, cin_p) bf16 SAME-padded input.  Returns the pre-BN conv
    output (N, Hpad, W, cout_p) bf16 and per-tile BN partials (N, nh, 2, cout_p) f32."""
    n, hpad2, wp2, cin = xpad.shape
    width, hpad = wp2 - 2, hpad2 - 2
    nh = hpad // th
    cout = w_flat.shape[1]

    if _ELEMENT_OK:
        # Overlapping 1-row-halo windows read in place via element-offset indexing:
        # step (i, j) DMAs rows [j*th, j*th + th + 2) - no wrapper-side halo re-gather.
        x_in = xpad
        x_spec = pl.BlockSpec((1, pl.Element(th + 2), wp2, cin),
                              lambda i, j: (i, j * th, 0, 0))
    else:
        # Fallback: materialize overlapping tiles once, then plain blocked indexing.
        idx = jnp.arange(nh)[:, None] * th + jnp.arange(th + 2)[None, :]
        x_in = xpad[:, idx].reshape(n, nh * (th + 2), wp2, cin)
        x_spec = pl.BlockSpec((1, th + 2, wp2, cin), lambda i, j: (i, j, 0, 0))

    kernel = functools.partial(_conv3x3_kernel, pre_act=pre_act,
                               use_im2col=use_im2col, h_valid=h_valid)
    scratch = ([pltpu.VMEM((th * width, 9 * cin), jnp.bfloat16)] if use_im2col else [])
    return pl.pallas_call(
        kernel,
        grid=(n, nh),
        in_specs=[
            x_spec,
            _resident_spec((9 * cin, cout)),
            _resident_spec((1, cin)),
            _resident_spec((1, cin)),
        ],
        out_specs=[
            pl.BlockSpec((1, th, width, cout), lambda i, j: (i, j, 0, 0)),
            pl.BlockSpec((1, 1, 2, cout), lambda i, j: (i, j, 0, 0)),
        ],
        out_shape=[
            jax.ShapeDtypeStruct((n, hpad, width, cout), jnp.bfloat16),
            jax.ShapeDtypeStruct((n, nh, 2, cout), jnp.float32),
        ],
        scratch_shapes=scratch,
        compiler_params=_compiler_params(),
    )(x_in, w_flat, scale_in, shift_in)


def _matmul_conv(cols, w_flat, *, th, h_valid):
    """cols: (N, Hpad, W, K_p) bf16 wrapper-im2col'd input (stem path)."""
    n, hpad, width, kdim = cols.shape
    nh = hpad // th
    cout = w_flat.shape[1]
    kernel = functools.partial(_matmul_conv_kernel, h_valid=h_valid)
    return pl.pallas_call(
        kernel,
        grid=(n, nh),
        in_specs=[
            pl.BlockSpec((1, th, width, kdim), lambda i, j: (i, j, 0, 0)),
            _resident_spec((kdim, cout)),
        ],
        out_specs=[
            pl.BlockSpec((1, th, width, cout), lambda i, j: (i, j, 0, 0)),
            pl.BlockSpec((1, 1, 2, cout), lambda i, j: (i, j, 0, 0)),
        ],
        out_shape=[
            jax.ShapeDtypeStruct((n, hpad, width, cout), jnp.bfloat16),
            jax.ShapeDtypeStruct((n, nh, 2, cout), jnp.float32),
        ],
        compiler_params=_compiler_params(),
    )(cols, w_flat)


# --------------------------------------------------------------------------------------
# Configuration / parameter helpers
# --------------------------------------------------------------------------------------
def _pick_h_tile(height, width, cin_p, cout_p, batch, use_im2col, override=None):
    """Largest H-tile fitting the per-generation VMEM budget (big tiles amortize the
    ~0.35us/step overhead, keep matmul M = th*W >= 256, shrink the halo fraction),
    nudged so the parallel grid extent is even for v7x megacore balance."""
    if override is not None:
        return max(1, min(override, height))
    budget = int(_vmem_limit_bytes() * 0.6)

    def tile_bytes(th):
        inb = 2 * (th + 2) * (width + 2) * cin_p * 2              # dbl-buffered bf16 in
        outb = 2 * (th * width * cout_p * 2 + 2 * cout_p * 4)     # bf16 y + f32 stats
        wb = 9 * cin_p * cout_p * 2                               # resident weight
        colb = th * width * 9 * cin_p * 2 if use_im2col else 0    # im2col scratch
        accb = 2 * th * width * cout_p * 4                        # f32 accumulator/temps
        return inb + outb + wb + colb + accb + (2 << 20)

    feasible = [t for t in range(1, height + 1) if tile_bytes(t) <= budget]
    if not feasible:
        return 1
    th = feasible[-1]
    if (batch * _cdiv(height, th)) % 2 == 1:      # v7x: prefer even parallel extents
        for t in reversed(feasible):
            if (batch * _cdiv(height, t)) % 2 == 0 and t * width >= min(256, th * width):
                th = t
                break
    return th


def _pad_last(a, c_new):
    pad = c_new - a.shape[-1]
    return a if pad == 0 else jnp.pad(a, [(0, 0)] * (a.ndim - 1) + [(0, pad)])


def _flatten_weight(w_hwio, cin_p, cout_p):
    """(3,3,ci,co) HWIO -> channel-padded, taps stacked along K -> (9*cin_p, cout_p) bf16."""
    w = w_hwio.astype(jnp.float32)
    w = jnp.pad(w, ((0, 0), (0, 0), (0, cin_p - w.shape[2]), (0, cout_p - w.shape[3])))
    return w.reshape(9 * cin_p, cout_p).astype(jnp.bfloat16)


def _bn_affine(stats, gamma_p, beta_p, height, th, width, batch):
    """Chan-style combine of per-tile [sum, centered-sumsq] partials into training-mode
    BatchNorm affine: scale = gamma*rsqrt(var+eps), shift = beta - mean*scale."""
    nh = stats.shape[1]
    counts = (jnp.minimum(th, height - jnp.arange(nh) * th) * width).astype(jnp.float32)
    counts = counts[None, :, None]                               # (1, nh, 1)
    total = jnp.float32(batch * height * width)
    sums, css = stats[:, :, 0, :], stats[:, :, 1, :]             # (N, nh, C)
    mean = jnp.sum(sums, axis=(0, 1)) / total
    tile_mean = sums / counts
    m2 = (jnp.sum(css, axis=(0, 1))
          + jnp.sum(counts * (tile_mean - mean) ** 2, axis=(0, 1)))
    var = jnp.maximum(m2 / total, 0.0)                           # biased (PyTorch BN)
    scale = gamma_p * lax.rsqrt(var + EPS)
    shift = beta_p - mean * scale
    return scale[None, :], shift[None, :]


# --------------------------------------------------------------------------------------
# DoubleConv
# --------------------------------------------------------------------------------------
def _double_conv_nhwc(x, w1_hwio, g1, b1, w2_hwio, g2, b2, tile_h=None):
    """DoubleConv on NHWC activations.  Returns (N, H, W, Cout_pad) f32 with lane-padded
    channels: keep this layout across a full UNet and strip padding / change layout only
    at the model boundary."""
    n, height, width, cin = x.shape
    cmid, cout = w1_hwio.shape[-1], w2_hwio.shape[-1]
    cmid_p, cout_p = _round_up(cmid, LANE), _round_up(cout, LANE)

    # ---------------- conv1 (3x3 SAME, no bias) + fused BN1 partial stats ----------------
    if 9 * cin <= LANE:
        # Stem-style conv: pack the 9 taps along K (K = 128) via a cheap wrapper im2col
        # of the tiny-channel input instead of padding cin to 128 before stacking.
        kp = _round_up(9 * cin, LANE)
        th1 = _pick_h_tile(height, width, kp, cmid_p, n, use_im2col=False, override=tile_h)
        hpad1 = _cdiv(height, th1) * th1
        xsp = jnp.pad(x.astype(jnp.float32), ((0, 0), (1, 1), (1, 1), (0, 0)))
        cols = jnp.concatenate(
            [xsp[:, dh:dh + height, dw:dw + width, :]
             for dh in range(3) for dw in range(3)], axis=-1)
        cols = jnp.pad(cols, ((0, 0), (0, hpad1 - height), (0, 0), (0, kp - 9 * cin)))
        w1f = jnp.pad(w1_hwio.astype(jnp.float32).reshape(9 * cin, cmid),
                      ((0, kp - 9 * cin), (0, cmid_p - cmid))).astype(jnp.bfloat16)
        y1, st1 = _matmul_conv(cols.astype(jnp.bfloat16), w1f, th=th1, h_valid=height)
    else:
        cin_p = _round_up(cin, LANE)
        use_col1 = cin_p < 256
        th1 = _pick_h_tile(height, width, cin_p, cmid_p, n, use_im2col=use_col1,
                           override=tile_h)
        hpad1 = _cdiv(height, th1) * th1
        xpad = jnp.pad(_pad_last(x.astype(jnp.float32), cin_p),
                       ((0, 0), (1, 1 + hpad1 - height), (1, 1), (0, 0)))
        w1f = _flatten_weight(w1_hwio, cin_p, cmid_p)
        ones = jnp.ones((1, cin_p), jnp.float32)
        zeros = jnp.zeros((1, cin_p), jnp.float32)
        y1, st1 = _conv3x3(xpad.astype(jnp.bfloat16), w1f, ones, zeros, pre_act=False,
                           use_im2col=use_col1, th=th1, h_valid=height)

    g1p = _pad_last(g1.astype(jnp.float32), cmid_p)
    b1p = _pad_last(b1.astype(jnp.float32), cmid_p)
    scale1, shift1 = _bn_affine(st1, g1p, b1p, height, th1, width, n)

    # ------ conv2: BN1 + LeakyReLU fused into its prologue, + fused BN2 partial stats ------
    use_col2 = cmid_p < 256
    th2 = _pick_h_tile(height, width, cmid_p, cout_p, n, use_im2col=use_col2,
                       override=tile_h)
    hpad2 = _cdiv(height, th2) * th2
    # y1 already has rows >= height zeroed by the kernel; only a 1-pixel SAME border pad
    # is added here (the old 1.25x halo re-gather is gone).
    # TODO(synk): this pad copy could also be removed by writing conv1's output into a
    # pre-padded, input_output_aliased buffer.
    y1p = jnp.pad(y1[:, :height], ((0, 0), (1, 1 + hpad2 - height), (1, 1), (0, 0)))
    w2f = _flatten_weight(w2_hwio, cmid_p, cout_p)
    y2, st2 = _conv3x3(y1p, w2f, scale1, shift1, pre_act=True, use_im2col=use_col2,
                       th=th2, h_valid=height)

    g2p = _pad_last(g2.astype(jnp.float32), cout_p)
    b2p = _pad_last(b2.astype(jnp.float32), cout_p)
    scale2, shift2 = _bn_affine(st2, g2p, b2p, height, th2, width, n)

    # Final BN2 + LeakyReLU is left to XLA: it fuses with whatever the consumer does
    # (the next block's prologue, or the slice/transpose at the model boundary), so no
    # extra Pallas pass / HBM round-trip for the largest tensor.
    z = y2[:, :height].astype(jnp.float32) * scale2[0] + shift2[0]
    return jnp.where(z >= 0, z, NEG_SLOPE * z)


@functools.partial(jax.jit, static_argnames=("tile_h",))
def _double_conv_nchw(x_nchw, w1, g1, b1, w2, g2, b2, tile_h=None):
    x = jnp.transpose(x_nchw, (0, 2, 3, 1))                       # NCHW -> NHWC
    y = _double_conv_nhwc(x, w1, g1, b1, w2, g2, b2, tile_h=tile_h)
    return jnp.transpose(y[..., :w2.shape[-1]], (0, 3, 1, 2))     # strip pad, -> NCHW


def double_conv(x_nchw, w1, g1, b1, w2, g2, b2, tile_h=None):
    """PyTorch-layout entry point (NCHW in / NCHW out)."""
    _probe_buffered()
    _probe_element()
    return _double_conv_nchw(x_nchw, w1, g1, b1, w2, g2, b2, tile_h=tile_h)


# ---------------- pure-JAX f32 reference (PyTorch DoubleConv semantics) ----------------
def _ref_double_conv(x_nchw, w1_hwio, g1, b1, w2_hwio, g2, b2):
    x = jnp.transpose(x_nchw, (0, 2, 3, 1)).astype(jnp.float32)
    dn = ("NHWC", "HWIO", "NHWC")

    def block(h, w, g, b):
        y = lax.conv_general_dilated(h, w.astype(jnp.float32), (1, 1), "SAME",
                                     dimension_numbers=dn)
        m = jnp.mean(y, axis=(0, 1, 2))
        v = jnp.mean((y - m) ** 2, axis=(0, 1, 2))
        y = (y - m) / jnp.sqrt(v + EPS) * g + b
        return jnp.where(y >= 0, y, NEG_SLOPE * y)

    y = block(x, w1_hwio, g1, b1)
    y = block(y, w2_hwio, g2, b2)
    return jnp.transpose(y, (0, 3, 1, 2))


if __name__ == "__main__":
    def _run_case(key, n, cin, cmid, cout, h, w, tile_h=None):
        ks = jax.random.split(key, 7)
        x = jax.random.normal(ks[0], (n, cin, h, w), jnp.float32)
        w1 = jax.random.normal(ks[1], (3, 3, cin, cmid), jnp.float32) * 0.2
        w2 = jax.random.normal(ks[2], (3, 3, cmid, cout), jnp.float32) * 0.2
        g1 = 1.0 + 0.1 * jax.random.normal(ks[3], (cmid,), jnp.float32)
        b1 = 0.1 * jax.random.normal(ks[4], (cmid,), jnp.float32)
        g2 = 1.0 + 0.1 * jax.random.normal(ks[5], (cout,), jnp.float32)
        b2 = 0.1 * jax.random.normal(ks[6], (cout,), jnp.float32)

        out = jax.block_until_ready(double_conv(x, w1, g1, b1, w2, g2, b2, tile_h=tile_h))
        assert out.shape == (n, cout, h, w)
        ref = _ref_double_conv(x, w1, g1, b1, w2, g2, b2)
        err = float(jnp.max(jnp.abs(out - ref)))
        # Tolerance is loosened vs. the f32 reference because matmul operands and the
        # stored intermediates are bf16 (MXU-native); accumulation and BN math are f32.
        assert jnp.allclose(out, ref, rtol=5e-2, atol=1e-1), \
            f"mismatch vs reference (max abs diff {err:.5f})"

    key = jax.random.PRNGKey(0)
    k1, k2 = jax.random.split(key)
    # Small shape consistent with the module: DoubleConv(in_channels=4, out_channels=8).
    _run_case(k1, n=2, cin=4, cmid=8, cout=8, h=16, w=16)
    # Multi-tile case: exercises the element-offset halo windows (4 H-tiles), the masked
    # non-divisible tail (H=30 with 8-row tiles) and the cross-tile BN stat combine.
    _run_case(k2, n=2, cin=4, cmid=8, cout=8, h=30, w=16, tile_h=8)

    print("KERNEL_OK")
</pallas_src>

<mosaic_0001>
module attributes {stable_mosaic.version = 11 : i64} {
  func.func @k(%arg0: i32, %arg1: memref<8x128xf32, #tpu.memory_space<vmem>>, %arg2: memref<8x128xf32, #tpu.memory_space<vmem>>) attributes {dimension_semantics = [#tpu.dimension_semantics<arbitrary>], iteration_bounds = array<i64: 2>, scalar_prefetch = 0 : i64, scratch_operands = 0 : i64, tpu.core_type = #tpu.core_type<tc>, window_params = [{pipeline_mode = #tpu.pipeline_mode<synchronous>, transform_indices = @transform_0, window_bounds = array<i64: 8, 128>}, {pipeline_mode = #tpu.pipeline_mode<synchronous>, transform_indices = @transform_1, window_bounds = array<i64: 8, 128>}]} {
    %c0 = arith.constant 0 : index
    %c0_0 = arith.constant 0 : index
    %0 = vector.load %arg1[%c0, %c0_0] : memref<8x128xf32, #tpu.memory_space<vmem>>, vector<8x128xf32>
    %cst = arith.constant 1.000000e+00 : f32
    %1 = vector.broadcast %cst : f32 to vector<8x128xf32>
    %2 = arith.addf %0, %1 : vector<8x128xf32>
    %c0_1 = arith.constant 0 : index
    %c0_2 = arith.constant 0 : index
    %3 = vector.load %arg2[%c0_1, %c0_2] : memref<8x128xf32, #tpu.memory_space<vmem>>, vector<8x128xf32>
    tpu.vector_store %arg2[%c0_1, %c0_2], %2 {strides = array<i32>} : memref<8x128xf32, #tpu.memory_space<vmem>>, vector<8x128xf32>,
    return
  }
  func.func @transform_0(%arg0: i32) -> (i32, i32) {
    %c0_i32 = arith.constant 0 : i32
    %c0_i32_0 = arith.constant 0 : i32
    %c0_i32_1 = arith.constant 0 : i32
    return %c0_i32, %c0_i32_0 : i32, i32
  }
  func.func @transform_1(%arg0: i32) -> (i32, i32) {
    %c0_i32 = arith.constant 0 : i32
    %c0_i32_0 = arith.constant 0 : i32
    %c0_i32_1 = arith.constant 0 : i32
    return %c0_i32, %c0_i32_0 : i32, i32
  }
}

module attributes {stable_mosaic.version = 11 : i64} {
  func.func @_matmul_conv_kernel(%arg0: i32, %arg1: i32, %arg2: memref<1x16x16x128xbf16, #tpu.memory_space<vmem>>, %arg3: memref<128x128xbf16, #tpu.memory_space<vmem>>, %arg4: memref<1x16x16x128xbf16, #tpu.memory_space<vmem>>, %arg5: memref<1x1x2x128xf32, #tpu.memory_space<vmem>>) attributes {dimension_semantics = [#tpu.dimension_semantics<parallel>, #tpu.dimension_semantics<parallel>], iteration_bounds = array<i64: 2, 1>, scalar_prefetch = 0 : i64, scratch_operands = 0 : i64, tpu.core_type = #tpu.core_type<tc>, window_params = [{transform_indices = @transform_0, window_bounds = array<i64: 1, 16, 16, 128>}, {pipeline_mode = #tpu.pipeline_mode<synchronous>, transform_indices = @transform_1, window_bounds = array<i64: 128, 128>}, {transform_indices = @transform_2, window_bounds = array<i64: 1, 16, 16, 128>}, {transform_indices = @transform_3, window_bounds = array<i64: 1, 1, 2, 128>}]} {
    %c0 = arith.constant 0 : index
    %c0_0 = arith.constant 0 : index
    %c0_1 = arith.constant 0 : index
    %c0_2 = arith.constant 0 : index
    %0 = vector.load %arg2[%c0, %c0_0, %c0_1, %c0_2] : memref<1x16x16x128xbf16, #tpu.memory_space<vmem>>, vector<1x16x16x128xbf16>
    %1 = vector.shape_cast %0 : vector<1x16x16x128xbf16> to vector<16x16x128xbf16>
    %2 = vector.shape_cast %1 : vector<16x16x128xbf16> to vector<256x128xbf16>
    %c0_3 = arith.constant 0 : index
    %c0_4 = arith.constant 0 : index
    %3 = vector.load %arg3[%c0_3, %c0_4] : memref<128x128xbf16, #tpu.memory_space<vmem>>, vector<128x128xbf16>
    %cst = arith.constant dense<0.000000e+00> : vector<256x128xf32>
    %4 = tpu.matmul %2, %3, %cst {dimension_numbers = #tpu.dot_dimension_numbers<[1], [0], [0], [1], [0, 0, 1, 1], [], []>} : vector<256x128xbf16>, vector<128x128xbf16>, vector<256x128xf32> -> vector<256x128xf32>
    %5 = tpu.iota {dimensions = array<i32: 0>} : vector<16x16x1xi32>
    %c16_i32 = arith.constant 16 : i32
    %6 = arith.muli %arg1, %c16_i32 : i32
    %7 = vector.broadcast %6 : i32 to vector<16x16x1xi32>
    %8 = arith.addi %5, %7 : vector<16x16x1xi32>
    %c16_i32_5 = arith.constant 16 : i32
    %9 = vector.broadcast %c16_i32_5 : i32 to vector<16x16x1xi32>
    %10 = arith.cmpi slt, %8, %9 : vector<16x16x1xi32>
    %11 = vector.shape_cast %10 : vector<16x16x1xi1> to vector<256x1xi1>
    %cst_6 = arith.constant 0.000000e+00 : f32
    %12 = vector.shape_cast %11 : vector<256x1xi1> to vector<256x1xi1>
    %13 = vector.broadcast %12 : vector<256x1xi1> to vector<256x128xi1>
    %14 = vector.broadcast %cst_6 : f32 to vector<256x128xf32>
    %15 = arith.select %13, %4, %14 : vector<256x128xi1>, vector<256x128xf32>
    %16 = arith.truncf %15 : vector<256x128xf32> to vector<256x128xbf16>
    %17 = vector.shape_cast %16 : vector<256x128xbf16> to vector<16x16x128xbf16>
    %c0_7 = arith.constant 0 : index
    %c0_8 = arith.constant 0 : index
    %c0_9 = arith.constant 0 : index
    %c0_10 = arith.constant 0 : index
    %18 = vector.load %arg4[%c0_7, %c0_8, %c0_9, %c0_10] : memref<1x16x16x128xbf16, #tpu.memory_space<vmem>>, vector<1x16x16x128xbf16>
    %19 = vector.shape_cast %18 : vector<1x16x16x128xbf16> to vector<16x16x128xbf16>
    %20 = vector.shape_cast %17 : vector<16x16x128xbf16> to vector<1x16x16x128xbf16>
    tpu.vector_store %arg4[%c0_7, %c0_8, %c0_9, %c0_10], %20 {strides = array<i32>} : memref<1x16x16x128xbf16, #tpu.memory_space<vmem>>, vector<1x16x16x128xbf16>,
    %21 = arith.extf %16 : vector<256x128xbf16> to vector<256x128xf32>
    %22 = arith.extui %11 : vector<256x1xi1> to vector<256x1xi32>
    %23 = arith.sitofp %22 : vector<256x1xi32> to vector<256x1xf32>
    %cst_11 = arith.constant dense<0.000000e+00> : vector<1xf32>
    %24 = vector.multi_reduction <add>, %23, %cst_11 [0] : vector<256x1xf32> to vector<1xf32>
    %25 = vector.shape_cast %24 : vector<1xf32> to vector<1x1xf32>
    %cst_12 = arith.constant dense<0.000000e+00> : vector<128xf32>
    %26 = vector.multi_reduction <add>, %21, %cst_12 [0] : vector<256x128xf32> to vector<128xf32>
    %27 = vector.shape_cast %26 : vector<128xf32> to vector<1x128xf32>
    %28 = vector.broadcast %25 : vector<1x1xf32> to vector<1x128xf32>
    %29 = arith.divf %27, %28 : vector<1x128xf32>
    %30 = vector.broadcast %29 : vector<1x128xf32> to vector<256x128xf32>
    %31 = arith.subf %21, %30 : vector<256x128xf32>
    %cst_13 = arith.constant 0.000000e+00 : f32
    %32 = vector.shape_cast %11 : vector<256x1xi1> to vector<256x1xi1>
    %33 = vector.broadcast %32 : vector<256x1xi1> to vector<256x128xi1>
    %34 = vector.broadcast %cst_13 : f32 to vector<256x128xf32>
    %35 = arith.select %33, %31, %34 : vector<256x128xi1>, vector<256x128xf32>
    %36 = arith.mulf %35, %35 : vector<256x128xf32>
    %cst_14 = arith.constant dense<0.000000e+00> : vector<128xf32>
    %37 = vector.multi_reduction <add>, %36, %cst_14 [0] : vector<256x128xf32> to vector<128xf32>
    %38 = vector.shape_cast %37 : vector<128xf32> to vector<1x128xf32>
    %39 = tpu.concatenate %27, %38 in 0 : vector<1x128xf32>, vector<1x128xf32> -> vector<2x128xf32>
    %c0_15 = arith.constant 0 : index
    %c0_16 = arith.constant 0 : index
    %c0_17 = arith.constant 0 : index
    %c0_18 = arith.constant 0 : index
    %40 = vector.load %arg5[%c0_15, %c0_16, %c0_17, %c0_18] : memref<1x1x2x128xf32, #tpu.memory_space<vmem>>, vector<1x1x2x128xf32>
    %41 = vector.shape_cast %40 : vector<1x1x2x128xf32> to vector<2x128xf32>
    %42 = vector.shape_cast %39 : vector<2x128xf32> to vector<1x1x2x128xf32>
    tpu.vector_store %arg5[%c0_15, %c0_16, %c0_17, %c0_18], %42 {strides = array<i32>} : memref<1x1x2x128xf32, #tpu.memory_space<vmem>>, vector<1x1x2x128xf32>,
    return
  }
  func.func @transform_0(%arg0: i32, %arg1: i32) -> (i32, i32, i32, i32) {
    %c0_i32 = arith.constant 0 : i32
    %c0_i32_0 = arith.constant 0 : i32
    %c0_i32_1 = arith.constant 0 : i32
    return %arg0, %arg1, %c0_i32, %c0_i32_0 : i32, i32, i32, i32
  }
  func.func @transform_1(%arg0: i32, %arg1: i32) -> (i32, i32) {
    %c0_i32 = arith.constant 0 : i32
    %c0_i32_0 = arith.constant 0 : i32
    %c0_i32_1 = arith.constant 0 : i32
    return %c0_i32, %c0_i32_0 : i32, i32
  }
  func.func @transform_2(%arg0: i32, %arg1: i32) -> (i32, i32, i32, i32) {
    %c0_i32 = arith.constant 0 : i32
    %c0_i32_0 = arith.constant 0 : i32
    %c0_i32_1 = arith.constant 0 : i32
    return %arg0, %arg1, %c0_i32, %c0_i32_0 : i32, i32, i32, i32
  }
  func.func @transform_3(%arg0: i32, %arg1: i32) -> (i32, i32, i32, i32) {
    %c0_i32 = arith.constant 0 : i32
    %c0_i32_0 = arith.constant 0 : i32
    %c0_i32_1 = arith.constant 0 : i32
    return %arg0, %arg1, %c0_i32, %c0_i32_0 : i32, i32, i32, i32
  }
}

module attributes {stable_mosaic.version = 11 : i64} {
  func.func @_conv3x3_kernel(%arg0: i32, %arg1: i32, %arg2: memref<1x18x18x128xbf16, #tpu.memory_space<vmem>>, %arg3: memref<1152x128xbf16, #tpu.memory_space<vmem>>, %arg4: memref<1x128xf32, #tpu.memory_space<vmem>>, %arg5: memref<1x128xf32, #tpu.memory_space<vmem>>, %arg6: memref<1x16x16x128xbf16, #tpu.memory_space<vmem>>, %arg7: memref<1x1x2x128xf32, #tpu.memory_space<vmem>>, %arg8: memref<256x1152xbf16, #tpu.memory_space<vmem>>) attributes {dimension_semantics = [#tpu.dimension_semantics<parallel>, #tpu.dimension_semantics<parallel>], iteration_bounds = array<i64: 2, 1>, scalar_prefetch = 0 : i64, scratch_operands = 1 : i64, tpu.core_type = #tpu.core_type<tc>, window_params = [{transform_indices = @transform_0, window_bounds = array<i64: 1, 18, 18, 128>}, {pipeline_mode = #tpu.pipeline_mode<synchronous>, transform_indices = @transform_1, window_bounds = array<i64: 1152, 128>}, {pipeline_mode = #tpu.pipeline_mode<synchronous>, transform_indices = @transform_2, window_bounds = array<i64: 1, 128>}, {pipeline_mode = #tpu.pipeline_mode<synchronous>, transform_indices = @transform_3, window_bounds = array<i64: 1, 128>}, {transform_indices = @transform_4, window_bounds = array<i64: 1, 16, 16, 128>}, {transform_indices = @transform_5, window_bounds = array<i64: 1, 1, 2, 128>}]} {
    %c0 = arith.constant 0 : index
    %c0_0 = arith.constant 0 : index
    %c0_1 = arith.constant 0 : index
    %c0_2 = arith.constant 0 : index
    %0 = vector.load %arg2[%c0, %c0_0, %c0_1, %c0_2] : memref<1x18x18x128xbf16, #tpu.memory_space<vmem>>, vector<1x18x18x128xbf16>
    %1 = vector.shape_cast %0 : vector<1x18x18x128xbf16> to vector<18x18x128xbf16>
    %2 = arith.extf %1 : vector<18x18x128xbf16> to vector<18x18x128xf32>
    %c0_3 = arith.constant 0 : index
    %c0_4 = arith.constant 0 : index
    %3 = vector.load %arg4[%c0_3, %c0_4] : memref<1x128xf32, #tpu.memory_space<vmem>>, vector<1x128xf32>
    %4 = vector.shape_cast %3 : vector<1x128xf32> to vector<128xf32>
    %5 = vector.shape_cast %4 : vector<128xf32> to vector<1x1x128xf32>
    %6 = vector.broadcast %5 : vector<1x1x128xf32> to vector<18x18x128xf32>
    %7 = arith.mulf %2, %6 : vector<18x18x128xf32>
    %c0_5 = arith.constant 0 : index
    %c0_6 = arith.constant 0 : index
    %8 = vector.load %arg5[%c0_5, %c0_6] : memref<1x128xf32, #tpu.memory_space<vmem>>, vector<1x128xf32>
    %9 = vector.shape_cast %8 : vector<1x128xf32> to vector<128xf32>
    %10 = vector.shape_cast %9 : vector<128xf32> to vector<1x1x128xf32>
    %11 = vector.broadcast %10 : vector<1x1x128xf32> to vector<18x18x128xf32>
    %12 = arith.addf %7, %11 : vector<18x18x128xf32>
    %cst = arith.constant 0.000000e+00 : f32
    %13 = vector.broadcast %cst : f32 to vector<18x18x128xf32>
    %14 = arith.cmpf oge, %12, %13 : vector<18x18x128xf32>
    %cst_7 = arith.constant 2.000000e-01 : f32
    %15 = vector.broadcast %cst_7 : f32 to vector<18x18x128xf32>
    %16 = arith.mulf %15, %12 : vector<18x18x128xf32>
    %17 = arith.select %14, %12, %16 : vector<18x18x128xi1>, vector<18x18x128xf32>
    %18 = tpu.iota {dimensions = array<i32: 0>} : vector<18x18x1xi32>
    %c16_i32 = arith.constant 16 : i32
    %19 = arith.muli %arg1, %c16_i32 : i32
    %20 = vector.broadcast %19 : i32 to vector<18x18x1xi32>
    %21 = arith.addi %18, %20 : vector<18x18x1xi32>
    %22 = tpu.iota {dimensions = array<i32: 1>} : vector<18x18x1xi32>
    %c0_i32 = arith.constant 0 : i32
    %23 = vector.broadcast %c0_i32 : i32 to vector<18x18x1xi32>
    %24 = arith.cmpi eq, %22, %23 : vector<18x18x1xi32>
    %c17_i32 = arith.constant 17 : i32
    %25 = vector.broadcast %c17_i32 : i32 to vector<18x18x1xi32>
    %26 = arith.cmpi eq, %22, %25 : vector<18x18x1xi32>
    %27 = arith.ori %24, %26 : vector<18x18x1xi1>
    %c0_i32_8 = arith.constant 0 : i32
    %28 = vector.broadcast %c0_i32_8 : i32 to vector<18x18x1xi32>
    %29 = arith.cmpi eq, %21, %28 : vector<18x18x1xi32>
    %30 = arith.ori %27, %29 : vector<18x18x1xi1>
    %c17_i32_9 = arith.constant 17 : i32
    %31 = vector.broadcast %c17_i32_9 : i32 to vector<18x18x1xi32>
    %32 = arith.cmpi sge, %21, %31 : vector<18x18x1xi32>
    %33 = arith.ori %30, %32 : vector<18x18x1xi1>
    %cst_10 = arith.constant 0.000000e+00 : f32
    %34 = vector.shape_cast %33 : vector<18x18x1xi1> to vector<18x18x1xi1>
    %35 = vector.broadcast %34 : vector<18x18x1xi1> to vector<18x18x128xi1>
    %36 = vector.broadcast %cst_10 : f32 to vector<18x18x128xf32>
    %37 = arith.select %35, %36, %17 : vector<18x18x128xi1>, vector<18x18x128xf32>
    %38 = arith.truncf %37 : vector<18x18x128xf32> to vector<18x18x128xbf16>
    %39 = vector.extract_strided_slice %38 {offsets = [0, 0, 0], sizes = [16, 16, 128], strides = [1, 1, 1]} : vector<18x18x128xbf16> to vector<16x16x128xbf16>
    %40 = vector.shape_cast %39 : vector<16x16x128xbf16> to vector<256x128xbf16>
    %c0_11 = arith.constant 0 : index
    %c0_12 = arith.constant 0 : index
    %41 = vector.load %arg8[%c0_11, %c0_12] : memref<256x1152xbf16, #tpu.memory_space<vmem>>, vector<256x128xbf16>
    tpu.vector_store %arg8[%c0_11, %c0_12], %40 {strides = array<i32>} : memref<256x1152xbf16, #tpu.memory_space<vmem>>, vector<256x128xbf16>,
    %42 = vector.extract_strided_slice %38 {offsets = [0, 1, 0], sizes = [16, 16, 128], strides = [1, 1, 1]} : vector<18x18x128xbf16> to vector<16x16x128xbf16>
    %43 = vector.shape_cast %42 : vector<16x16x128xbf16> to vector<256x128xbf16>
    %c0_13 = arith.constant 0 : index
    %c128 = arith.constant 128 : index
    %44 = vector.load %arg8[%c0_13, %c128] : memref<256x1152xbf16, #tpu.memory_space<vmem>>, vector<256x128xbf16>
    tpu.vector_store %arg8[%c0_13, %c128], %43 {strides = array<i32>} : memref<256x1152xbf16, #tpu.memory_space<vmem>>, vector<256x128xbf16>,
    %45 = vector.extract_strided_slice %38 {offsets = [0, 2, 0], sizes = [16, 16, 128], strides = [1, 1, 1]} : vector<18x18x128xbf16> to vector<16x16x128xbf16>
    %46 = vector.shape_cast %45 : vector<16x16x128xbf16> to vector<256x128xbf16>
    %c0_14 = arith.constant 0 : index
    %c256 = arith.constant 256 : index
    %47 = vector.load %arg8[%c0_14, %c256] : memref<256x1152xbf16, #tpu.memory_space<vmem>>, vector<256x128xbf16>
    tpu.vector_store %arg8[%c0_14, %c256], %46 {strides = array<i32>} : memref<256x1152xbf16, #tpu.memory_space<vmem>>, vector<256x128xbf16>,
    %48 = vector.extract_strided_slice %38 {offsets = [1, 0, 0], sizes = [16, 16, 128], strides = [1, 1, 1]} : vector<18x18x128xbf16> to vector<16x16x128xbf16>
    %49 = vector.shape_cast %48 : vector<16x16x128xbf16> to vector<256x128xbf16>
    %c0_15 = arith.constant 0 : index
    %c384 = arith.constant 384 : index
    %50 = vector.load %arg8[%c0_15, %c384] : memref<256x1152xbf16, #tpu.memory_space<vmem>>, vector<256x128xbf16>
    tpu.vector_store %arg8[%c0_15, %c384], %49 {strides = array<i32>} : memref<256x1152xbf16, #tpu.memory_space<vmem>>, vector<256x128xbf16>,
    %51 = vector.extract_strided_slice %38 {offsets = [1, 1, 0], sizes = [16, 16, 128], strides = [1, 1, 1]} : vector<18x18x128xbf16> to vector<16x16x128xbf16>
    %52 = vector.shape_cast %51 : vector<16x16x128xbf16> to vector<256x128xbf16>
    %c0_16 = arith.constant 0 : index
    %c512 = arith.constant 512 : index
    %53 = vector.load %arg8[%c0_16, %c512] : memref<256x1152xbf16, #tpu.memory_space<vmem>>, vector<256x128xbf16>
    tpu.vector_store %arg8[%c0_16, %c512], %52 {strides = array<i32>} : memref<256x1152xbf16, #tpu.memory_space<vmem>>, vector<256x128xbf16>,
    %54 = vector.extract_strided_slice %38 {offsets = [1, 2, 0], sizes = [16, 16, 128], strides = [1, 1, 1]} : vector<18x18x128xbf16> to vector<16x16x128xbf16>
    %55 = vector.shape_cast %54 : vector<16x16x128xbf16> to vector<256x128xbf16>
    %c0_17 = arith.constant 0 : index
    %c640 = arith.constant 640 : index
    %56 = vector.load %arg8[%c0_17, %c640] : memref<256x1152xbf16, #tpu.memory_space<vmem>>, vector<256x128xbf16>
    tpu.vector_store %arg8[%c0_17, %c640], %55 {strides = array<i32>} : memref<256x1152xbf16, #tpu.memory_space<vmem>>, vector<256x128xbf16>,
    %57 = vector.extract_strided_slice %38 {offsets = [2, 0, 0], sizes = [16, 16, 128], strides = [1, 1, 1]} : vector<18x18x128xbf16> to vector<16x16x128xbf16>
    %58 = vector.shape_cast %57 : vector<16x16x128xbf16> to vector<256x128xbf16>
    %c0_18 = arith.constant 0 : index
    %c768 = arith.constant 768 : index
    %59 = vector.load %arg8[%c0_18, %c768] : memref<256x1152xbf16, #tpu.memory_space<vmem>>, vector<256x128xbf16>
    tpu.vector_store %arg8[%c0_18, %c768], %58 {strides = array<i32>} : memref<256x1152xbf16, #tpu.memory_space<vmem>>, vector<256x128xbf16>,
    %60 = vector.extract_strided_slice %38 {offsets = [2, 1, 0], sizes = [16, 16, 128], strides = [1, 1, 1]} : vector<18x18x128xbf16> to vector<16x16x128xbf16>
    %61 = vector.shape_cast %60 : vector<16x16x128xbf16> to vector<256x128xbf16>
    %c0_19 = arith.constant 0 : index
    %c896 = arith.constant 896 : index
    %62 = vector.load %arg8[%c0_19, %c896] : memref<256x1152xbf16, #tpu.memory_space<vmem>>, vector<256x128xbf16>
    tpu.vector_store %arg8[%c0_19, %c896], %61 {strides = array<i32>} : memref<256x1152xbf16, #tpu.memory_space<vmem>>, vector<256x128xbf16>,
    %63 = vector.extract_strided_slice %38 {offsets = [2, 2, 0], sizes = [16, 16, 128], strides = [1, 1, 1]} : vector<18x18x128xbf16> to vector<16x16x128xbf16>
    %64 = vector.shape_cast %63 : vector<16x16x128xbf16> to vector<256x128xbf16>
    %c0_20 = arith.constant 0 : index
    %c1024 = arith.constant 1024 : index
    %65 = vector.load %arg8[%c0_20, %c1024] : memref<256x1152xbf16, #tpu.memory_space<vmem>>, vector<256x128xbf16>
    tpu.vector_store %arg8[%c0_20, %c1024], %64 {strides = array<i32>} : memref<256x1152xbf16, #tpu.memory_space<vmem>>, vector<256x128xbf16>,
    %c0_21 = arith.constant 0 : index
    %c0_22 = arith.constant 0 : index
    %66 = vector.load %arg8[%c0_21, %c0_22] : memref<256x1152xbf16, #tpu.memory_space<vmem>>, vector<256x1152xbf16>
    %c0_23 = arith.constant 0 : index
    %c0_24 = arith.constant 0 : index
    %67 = vector.load %arg3[%c0_23, %c0_24] : memref<1152x128xbf16, #tpu.memory_space<vmem>>, vector<1152x128xbf16>
    %cst_25 = arith.constant dense<0.000000e+00> : vector<256x128xf32>
    %68 = tpu.matmul %66, %67, %cst_25 {dimension_numbers = #tpu.dot_dimension_numbers<[1], [0], [0], [1], [0, 0, 1, 1], [], []>} : vector<256x1152xbf16>, vector<1152x128xbf16>, vector<256x128xf32> -> vector<256x128xf32>
    %69 = tpu.iota {dimensions = array<i32: 0>} : vector<16x16x1xi32>
    %c16_i32_26 = arith.constant 16 : i32
    %70 = arith.muli %arg1, %c16_i32_26 : i32
    %71 = vector.broadcast %70 : i32 to vector<16x16x1xi32>
    %72 = arith.addi %69, %71 : vector<16x16x1xi32>
    %c16_i32_27 = arith.constant 16 : i32
    %73 = vector.broadcast %c16_i32_27 : i32 to vector<16x16x1xi32>
    %74 = arith.cmpi slt, %72, %73 : vector<16x16x1xi32>
    %75 = vector.shape_cast %74 : vector<16x16x1xi1> to vector<256x1xi1>
    %cst_28 = arith.constant 0.000000e+00 : f32
    %76 = vector.shape_cast %75 : vector<256x1xi1> to vector<256x1xi1>
    %77 = vector.broadcast %76 : vector<256x1xi1> to vector<256x128xi1>
    %78 = vector.broadcast %cst_28 : f32 to vector<256x128xf32>
    %79 = arith.select %77, %68, %78 : vector<256x128xi1>, vector<256x128xf32>
    %80 = arith.truncf %79 : vector<256x128xf32> to vector<256x128xbf16>
    %81 = vector.shape_cast %80 : vector<256x128xbf16> to vector<16x16x128xbf16>
    %c0_29 = arith.constant 0 : index
    %c0_30 = arith.constant 0 : index
    %c0_31 = arith.constant 0 : index
    %c0_32 = arith.constant 0 : index
    %82 = vector.load %arg6[%c0_29, %c0_30, %c0_31, %c0_32] : memref<1x16x16x128xbf16, #tpu.memory_space<vmem>>, vector<1x16x16x128xbf16>
    %83 = vector.shape_cast %82 : vector<1x16x16x128xbf16> to vector<16x16x128xbf16>
    %84 = vector.shape_cast %81 : vector<16x16x128xbf16> to vector<1x16x16x128xbf16>
    tpu.vector_store %arg6[%c0_29, %c0_30, %c0_31, %c0_32], %84 {strides = array<i32>} : memref<1x16x16x128xbf16, #tpu.memory_space<vmem>>, vector<1x16x16x128xbf16>,
    %85 = arith.extf %80 : vector<256x128xbf16> to vector<256x128xf32>
    %86 = arith.extui %75 : vector<256x1xi1> to vector<256x1xi32>
    %87 = arith.sitofp %86 : vector<256x1xi32> to vector<256x1xf32>
    %cst_33 = arith.constant dense<0.000000e+00> : vector<1xf32>
    %88 = vector.multi_reduction <add>, %87, %cst_33 [0] : vector<256x1xf32> to vector<1xf32>
    %89 = vector.shape_cast %88 : vector<1xf32> to vector<1x1xf32>
    %cst_34 = arith.constant dense<0.000000e+00> : vector<128xf32>
    %90 = vector.multi_reduction <add>, %85, %cst_34 [0] : vector<256x128xf32> to vector<128xf32>
    %91 = vector.shape_cast %90 : vector<128xf32> to vector<1x128xf32>
    %92 = vector.broadcast %89 : vector<1x1xf32> to vector<1x128xf32>
    %93 = arith.divf %91, %92 : vector<1x128xf32>
    %94 = vector.broadcast %93 : vector<1x128xf32> to vector<256x128xf32>
    %95 = arith.subf %85, %94 : vector<256x128xf32>
    %cst_35 = arith.constant 0.000000e+00 : f32
    %96 = vector.shape_cast %75 : vector<256x1xi1> to vector<256x1xi1>
    %97 = vector.broadcast %96 : vector<256x1xi1> to vector<256x128xi1>
    %98 = vector.broadcast %cst_35 : f32 to vector<256x128xf32>
    %99 = arith.select %97, %95, %98 : vector<256x128xi1>, vector<256x128xf32>
    %100 = arith.mulf %99, %99 : vector<256x128xf32>
    %cst_36 = arith.constant dense<0.000000e+00> : vector<128xf32>
    %101 = vector.multi_reduction <add>, %100, %cst_36 [0] : vector<256x128xf32> to vector<128xf32>
    %102 = vector.shape_cast %101 : vector<128xf32> to vector<1x128xf32>
    %103 = tpu.concatenate %91, %102 in 0 : vector<1x128xf32>, vector<1x128xf32> -> vector<2x128xf32>
    %c0_37 = arith.constant 0 : index
    %c0_38 = arith.constant 0 : index
    %c0_39 = arith.constant 0 : index
    %c0_40 = arith.constant 0 : index
    %104 = vector.load %arg7[%c0_37, %c0_38, %c0_39, %c0_40] : memref<1x1x2x128xf32, #tpu.memory_space<vmem>>, vector<1x1x2x128xf32>
    %105 = vector.shape_cast %104 : vector<1x1x2x128xf32> to vector<2x128xf32>
    %106 = vector.shape_cast %103 : vector<2x128xf32> to vector<1x1x2x128xf32>
    tpu.vector_store %arg7[%c0_37, %c0_38, %c0_39, %c0_40], %106 {strides = array<i32>} : memref<1x1x2x128xf32, #tpu.memory_space<vmem>>, vector<1x1x2x128xf32>,
    return
  }
  func.func @transform_0(%arg0: i32, %arg1: i32) -> (i32, i32, i32, i32) {
    %c0_i32 = arith.constant 0 : i32
    %c0_i32_0 = arith.constant 0 : i32
    %c0_i32_1 = arith.constant 0 : i32
    return %arg0, %arg1, %c0_i32, %c0_i32_0 : i32, i32, i32, i32
  }
  func.func @transform_1(%arg0: i32, %arg1: i32) -> (i32, i32) {
    %c0_i32 = arith.constant 0 : i32
    %c0_i32_0 = arith.constant 0 : i32
    %c0_i32_1 = arith.constant 0 : i32
    return %c0_i32, %c0_i32_0 : i32, i32
  }
  func.func @transform_2(%arg0: i32, %arg1: i32) -> (i32, i32) {
    %c0_i32 = arith.constant 0 : i32
    %c0_i32_0 = arith.constant 0 : i32
    %c0_i32_1 = arith.constant 0 : i32
    return %c0_i32, %c0_i32_0 : i32, i32
  }
  func.func @transform_3(%arg0: i32, %arg1: i32) -> (i32, i32) {
    %c0_i32 = arith.constant 0 : i32
    %c0_i32_0 = arith.constant 0 : i32
    %c0_i32_1 = arith.constant 0 : i32
    return %c0_i32, %c0_i32_0 : i32, i32
  }
  func.func @transform_4(%arg0: i32, %arg1: i32) -> (i32, i32, i32, i32) {
    %c0_i32 = arith.constant 0 : i32
    %c0_i32_0 = arith.constant 0 : i32
    %c0_i32_1 = arith.constant 0 : i32
    return %arg0, %arg1, %c0_i32, %c0_i32_0 : i32, i32, i32, i32
  }
  func.func @transform_5(%arg0: i32, %arg1: i32) -> (i32, i32, i32, i32) {
    %c0_i32 = arith.constant 0 : i32
    %c0_i32_0 = arith.constant 0 : i32
    %c0_i32_1 = arith.constant 0 : i32
    return %arg0, %arg1, %c0_i32, %c0_i32_0 : i32, i32, i32, i32
  }
}

</mosaic_0001>

<llo_original>
// kernel: tpu_custom_call.1
$region0: #{tpu_custom_call.1}
  #allocation0 [shape = 'u32[]', space=smem, size = 0x4, offset = 0x4, fixed_abs, tag = 'smem constant byte address 0x4 - core index']
  #allocation1 [shape = 'u32[72,128]{1,0:T(1,128)}', space=vmem, size = 0x9000, scoped, tag = 'internal scratch']
  %s0 = inlined_call_operand.hbm [shape: f32[8,128], index: 0, kind: input, shape index: {}]
  %s1 = inlined_call_operand.hbm [shape: f32[8,128], index: 1, kind: output, shape index: {}]
  %s2 = sld [smem:[#allocation0]]
  $region41: #{tpu_custom_call.1} parent=0
    _
  %s4 = ssub.s32 1, %s2
  %s5 = scalar_select 0, %s4, %s2
  $region1: #{tpu_custom_call.1} parent=0
    #allocation2 [shape = 'u8[4096]{0}', space=vmem, size = 0x1000, scoped, tag = 'input window, operand 0, single buffered']
    #allocation3 [shape = 's32[2]{0}', space=sflag, size = 0x8, scoped, tag = 'scoped memory for tpu_custom_call.1']
    #allocation4 [shape = 's32[2]{0}', space=sflag, size = 0x8, scoped, tag = 'scoped memory for tpu_custom_call.1']
    #allocation5 [shape = 'u8[4096]{0}', space=vmem, size = 0x1000, scoped, tag = 'output window, operand 0, single buffered']
    %6 = vsyncpa [#allocation3], 0
    %7 = vsyncpa [#allocation4], 0
    loop: start=0, step=1, limit=4
    $region2: #{tpu_custom_call.1} parent=1 // loop_pre_header
      _
    $region3: #{tpu_custom_call.1} parent=1 // loop_header
      %s9 = sphi 0, %s13
      %p10 = scmp.ge.s32.totalorder %s9, 4
      %s17 = sphi 0, %s17
      %s19 = sphi 0, %s17
      %s20 = sphi 0, %s19
      %s34 = sphi 0, %s20
      %s38 = sphi 0, %s38
      %s40 = sphi 0, %s38
      %s41 = sphi 0, %s40
      %s55 = sphi 0, %s41
    $region4: #{tpu_custom_call.1} parent=1 // loop_header_branch
      %12 = sbr.rel (%p10) target = $region8
    $region5: #{tpu_custom_call.1} parent=1 // loop_body
      %s14 = ssub.s32 %s9, 1
      %s15 = ssub.s32 %s9, 2
      %s16 = sadd.s32 %s9, 1
      %s18 = sadd.s32 %s17, 1
      %p21 = scmp.eq.s32.totalorder %s9, 1
      %p22 = scmp.ne.s32.totalorder %s17, %s19
      %p23 = scmp.eq.s32.totalorder %s9, 0
      %p24 = por %p22, %p23
      %p25 = scmp.ne.s32.totalorder %s17, %s19
      %p26 = scmp.eq.s32.totalorder %s14, 1
      %p27 = por %p25, %p26
      %p28 = scmp.ne.s32.totalorder %s19, %s20
      %p29 = scmp.eq.s32.totalorder %s14, 0
      %p30 = por %p28, %p29
      %p31 = scmp.ne.s32.totalorder %s19, %s20
      %p32 = scmp.eq.s32.totalorder %s15, 1
      %p33 = por %p31, %p32
      %p35 = scmp.ne.s32.totalorder %s20, %s34
      %p36 = scmp.eq.s32.totalorder %s15, 0
      %p37 = por %p35, %p36
      %s39 = sadd.s32 %s38, 1
      %p42 = scmp.eq.s32.totalorder %s9, 1
      %p43 = scmp.ne.s32.totalorder %s38, %s40
      %p44 = scmp.eq.s32.totalorder %s9, 0
      %p45 = por %p43, %p44
      %p46 = scmp.ne.s32.totalorder %s38, %s40
      %p47 = scmp.eq.s32.totalorder %s14, 1
      %p48 = por %p46, %p47
      %p49 = scmp.ne.s32.totalorder %s40, %s41
      %p50 = scmp.eq.s32.totalorder %s14, 0
      %p51 = por %p49, %p50
      %p52 = scmp.ne.s32.totalorder %s40, %s41
      %p53 = scmp.eq.s32.totalorder %s15, 1
      %p54 = por %p52, %p53
      %p56 = scmp.ne.s32.totalorder %s41, %s55
      %p57 = scmp.eq.s32.totalorder %s15, 0
      %p58 = por %p56, %p57
      %p59 = scmp.le.s32.totalorder 1, %s9
      %p60 = scmp.lt.s32.totalorder %s9, 3
      %p61 = pnand %p59, %p60
      %p62 = pneg %p61
      // Predicated region
      $region9: #{tpu_custom_call.1} parent=5 // pred_check
        _
      $region10: #{tpu_custom_call.1} parent=5 // pred_check_branch
        %64 = sbr.rel (%p61) target = $region12
      $region11: #{tpu_custom_call.1} parent=5 // pred_region
        %s65 = ssub.s32 %s9, 1
        // Predicated region
        $region13: #{tpu_custom_call.1} parent=11 // pred_check
          %p66 = pneg %p30
        $region14: #{tpu_custom_call.1} parent=11 // pred_check_branch
          %68 = sbr.rel (%p66) target = $region16
        $region15: #{tpu_custom_call.1} parent=11 // pred_region
          %70 = vsyncadd [#allocation3], 0
          %s72 = sshll.u32 %s0, 4
          %s73 = int_to_ptr.hbm [resolvable:$true] %s72
          %s74 = sshll.u32 [#allocation2], 4
          %s75 = int_to_ptr.vmem [resolvable:$true] %s74
          %77 = dma.hbm_to_vmem [thread:$0]  %s73, 128, %s75, [#allocation3]
        $region16: #{tpu_custom_call.1} parent=11 // pred_fallthru
          _
      $region12: #{tpu_custom_call.1} parent=5 // pred_fallthru
        _
      %p78 = scmp.lt.s32.totalorder %s9, 2
      // Predicated region
      $region17: #{tpu_custom_call.1} parent=5 // pred_check
        %p79 = pneg %p78
      $region18: #{tpu_custom_call.1} parent=5 // pred_check_branch
        %81 = sbr.rel (%p79) target = $region20
      $region19: #{tpu_custom_call.1} parent=5 // pred_region
        _
      $region20: #{tpu_custom_call.1} parent=5 // pred_fallthru
        _
      %p82 = scmp.le.s32.totalorder 1, %s9
      %p83 = scmp.lt.s32.totalorder %s9, 3
      %p84 = pnand %p82, %p83
      %p85 = pneg %p84
      // Predicated region
      $region21: #{tpu_custom_call.1} parent=5 // pred_check
        _
      $region22: #{tpu_custom_call.1} parent=5 // pred_check_branch
        %87 = sbr.rel (%p84) target = $region24
      $region23: #{tpu_custom_call.1} parent=5 // pred_region
        %s88 = ssub.s32 %s9, 1
        // Predicated region
        $region25: #{tpu_custom_call.1} parent=23 // pred_check
          %p89 = pneg %p30
        $region26: #{tpu_custom_call.1} parent=23 // pred_check_branch
          %91 = sbr.rel (%p89) target = $region28
        $region27: #{tpu_custom_call.1} parent=23 // pred_region
          %93 = dma.done [#allocation3], 128
        $region28: #{tpu_custom_call.1} parent=23 // pred_fallthru
          _
        %p94 = pneg %p30
        %p95 = pneg %p27
        %p96 = pneg %p51
        %p97 = pneg %p48
        %v98 = vld [vmem:[#allocation2] sm:$0xff]
        %v99 = vadd.f32 %v98, 1.0
        %100 = vst [vmem:[#allocation5] sm:$0xff] %v99
        // Predicated region
        $region29: #{tpu_custom_call.1} parent=23 // pred_check
          %p101 = pneg %p48
        $region30: #{tpu_custom_call.1} parent=23 // pred_check_branch
          %103 = sbr.rel (%p101) target = $region32
        $region31: #{tpu_custom_call.1} parent=23 // pred_region
          %105 = vsyncadd [#allocation4], 0
          %s107 = sshll.u32 [#allocation5], 4
          %s108 = int_to_ptr.vmem [resolvable:$true] %s107
          %s109 = sshll.u32 %s1, 4
          %s110 = int_to_ptr.hbm [resolvable:$true] %s109
          %112 = dma.vmem_to_hbm [thread:$0]  %s108, 128, %s110, [#allocation4]
        $region32: #{tpu_custom_call.1} parent=23 // pred_fallthru
          _
        // Predicated region
        $region33: #{tpu_custom_call.1} parent=23 // pred_check
          %p113 = pneg %p48
        $region34: #{tpu_custom_call.1} parent=23 // pred_check_branch
          %115 = sbr.rel (%p113) target = $region36
        $region35: #{tpu_custom_call.1} parent=23 // pred_region
          %117 = dma.done [#allocation4], 128
        $region36: #{tpu_custom_call.1} parent=23 // pred_fallthru
          _
      $region24: #{tpu_custom_call.1} parent=5 // pred_fallthru
        _
      %p118 = scmp.le.s32.totalorder 2, %s9
      // Predicated region
      $region37: #{tpu_custom_call.1} parent=5 // pred_check
        %p119 = pneg %p118
      $region38: #{tpu_custom_call.1} parent=5 // pred_check_branch
        %121 = sbr.rel (%p119) target = $region40
      $region39: #{tpu_custom_call.1} parent=5 // pred_region
        %s122 = ssub.s32 %s9, 2
      $region40: #{tpu_custom_call.1} parent=5 // pred_fallthru
        _
    $region6: #{tpu_custom_call.1} parent=1 // loop_footer
      %s13 = sadd.s32 1, %s9
    $region7: #{tpu_custom_call.1} parent=1 // loop_footer_branch
      %8 = sbr.rel target = $region3
    $region8: #{tpu_custom_call.1} parent=1 // loop_exit
      _
    %123 = vsyncpa [#allocation3], 1
    %s124 = scalar_lea.sflag [#allocation3], 1
    %125 = vsyncpa %s124, 1
    %126 = vsyncpa [#allocation4], 1
    %s127 = scalar_lea.sflag [#allocation4], 1
    %128 = vsyncpa %s127, 1

// kernel: _double_conv_nchw.2
$region0: #{_double_conv_nchw.2}
  #allocation0 [shape = 'u32[]', space=smem, size = 0x4, offset = 0x4, fixed_abs, tag = 'smem constant byte address 0x4 - core index']
  #allocation1 [shape = 'u32[72,128]{1,0:T(1,128)}', space=vmem, size = 0x9000, scoped, tag = 'internal scratch']
  %s0 = inlined_call_operand.vmem [shape: bf16[2,16,16,128], index: 0, kind: input, shape index: {}]
  %s1 = inlined_call_operand.vmem [shape: bf16[128,128], index: 1, kind: input, shape index: {}]
  %s2 = inlined_call_operand.vmem [shape: bf16[2,16,16,128], index: 2, kind: output, shape index: {0}]
  %s3 = inlined_call_operand.vmem [shape: f32[2,1,2,128], index: 3, kind: output, shape index: {1}]
  %4 = xla_tuple %s2, %s3
  %s5 = sld [smem:[#allocation0]]
  $region49: #{_double_conv_nchw.2} parent=0
    _
  %s7 = ssub.s32 1, %s5
  %s8 = scalar_select 0, %s7, %s5
  loop: start=0, step=1, limit=4
  $region2: #{_double_conv_nchw.2} parent=0 // loop_pre_header
    _
  $region3: #{_double_conv_nchw.2} parent=0 // loop_header
    %s10 = sphi 0, %s14
    %p11 = scmp.ge.s32.totalorder %s10, 4
    %s17 = sphi 0, %s29
    %s18 = sphi 0, %s25
    %s19 = sphi 0, %s17
    %s20 = sphi 0, %s18
    %s21 = sphi 0, %s19
    %s22 = sphi 0, %s20
    %s34 = sphi 0, %s36
    %s37 = sphi 0, %s34
    %s38 = sphi 0, %s37
    %s54 = sphi 0, %s38
    %s58 = sphi 0, %s58
    %s60 = sphi 0, %s58
    %s61 = sphi 0, %s60
    %s75 = sphi 0, %s61
    %s83 = sphi 0, %s85
    %s86 = sphi 0, %s83
    %s87 = sphi 0, %s86
    %s103 = sphi 0, %s87
    %s111 = sphi 0, %s113
    %s114 = sphi 0, %s111
    %s115 = sphi 0, %s114
    %s131 = sphi 0, %s115
  $region4: #{_double_conv_nchw.2} parent=0 // loop_header_branch
    %13 = sbr.rel (%p11) target = $region8
  $region5: #{_double_conv_nchw.2} parent=0 // loop_body
    %s15 = ssub.s32 %s10, 1
    %s16 = ssub.s32 %s10, 2
    %s23 = sadd.s32 1, %s18
    %p24 = scmp.ge.s32.totalorder %s23, 1
    %s25 = scalar_select %p24, 0, %s23
    %s26 = sadd.s32 1, %s17
    %s27 = scalar_select %p24, %s26, %s17
    %p28 = scmp.ge.s32.totalorder %s27, 2
    %s29 = scalar_select %p28, 0, %s27
    %s30 = ssub.s32 %s17, %s29
    %s31 = ssub.s32 %s18, %s25
    %s32 = sor.u32 %s30, %s31
    %p33 = scmp.eq.s32.totalorder %s32, 0
    %s35 = sadd.s32 %s34, 1
    %s36 = scalar_select %p33, %s34, %s35
    %p39 = pneg %p33
    %p40 = scmp.eq.s32.totalorder %s10, 1
    %p41 = por %p39, %p40
    %p42 = scmp.ne.s32.totalorder %s34, %s37
    %p43 = scmp.eq.s32.totalorder %s10, 0
    %p44 = por %p42, %p43
    %p45 = scmp.ne.s32.totalorder %s34, %s37
    %p46 = scmp.eq.s32.totalorder %s15, 1
    %p47 = por %p45, %p46
    %p48 = scmp.ne.s32.totalorder %s37, %s38
    %p49 = scmp.eq.s32.totalorder %s15, 0
    %p50 = por %p48, %p49
    %p51 = scmp.ne.s32.totalorder %s37, %s38
    %p52 = scmp.eq.s32.totalorder %s16, 1
    %p53 = por %p51, %p52
    %p55 = scmp.ne.s32.totalorder %s38, %s54
    %p56 = scmp.eq.s32.totalorder %s16, 0
    %p57 = por %p55, %p56
    %s59 = sadd.s32 %s58, 1
    %p62 = scmp.eq.s32.totalorder %s10, 1
    %p63 = scmp.ne.s32.totalorder %s58, %s60
    %p64 = scmp.eq.s32.totalorder %s10, 0
    %p65 = por %p63, %p64
    %p66 = scmp.ne.s32.totalorder %s58, %s60
    %p67 = scmp.eq.s32.totalorder %s15, 1
    %p68 = por %p66, %p67
    %p69 = scmp.ne.s32.totalorder %s60, %s61
    %p70 = scmp.eq.s32.totalorder %s15, 0
    %p71 = por %p69, %p70
    %p72 = scmp.ne.s32.totalorder %s60, %s61
    %p73 = scmp.eq.s32.totalorder %s16, 1
    %p74 = por %p72, %p73
    %p76 = scmp.ne.s32.totalorder %s61, %s75
    %p77 = scmp.eq.s32.totalorder %s16, 0
    %p78 = por %p76, %p77
    %s79 = ssub.s32 %s17, %s29
    %s80 = ssub.s32 %s18, %s25
    %s81 = sor.u32 %s79, %s80
    %p82 = scmp.eq.s32.totalorder %s81, 0
    %s84 = sadd.s32 %s83, 1
    %s85 = scalar_select %p82, %s83, %s84
    %p88 = pneg %p82
    %p89 = scmp.eq.s32.totalorder %s10, 1
    %p90 = por %p88, %p89
    %p91 = scmp.ne.s32.totalorder %s83, %s86
    %p92 = scmp.eq.s32.totalorder %s10, 0
    %p93 = por %p91, %p92
    %p94 = scmp.ne.s32.totalorder %s83, %s86
    %p95 = scmp.eq.s32.totalorder %s15, 1
    %p96 = por %p94, %p95
    %p97 = scmp.ne.s32.totalorder %s86, %s87
    %p98 = scmp.eq.s32.totalorder %s15, 0
    %p99 = por %p97, %p98
    %p100 = scmp.ne.s32.totalorder %s86, %s87
    %p101 = scmp.eq.s32.totalorder %s16, 1
    %p102 = por %p100, %p101
    %p104 = scmp.ne.s32.totalorder %s87, %s103
    %p105 = scmp.eq.s32.totalorder %s16, 0
    %p106 = por %p104, %p105
    %s107 = ssub.s32 %s17, %s29
    %s108 = ssub.s32 %s18, %s25
    %s109 = sor.u32 %s107, %s108
    %p110 = scmp.eq.s32.totalorder %s109, 0
    %s112 = sadd.s32 %s111, 1
    %s113 = scalar_select %p110, %s111, %s112
    %p116 = pneg %p110
    %p117 = scmp.eq.s32.totalorder %s10, 1
    %p118 = por %p116, %p117
    %p119 = scmp.ne.s32.totalorder %s111, %s114
    %p120 = scmp.eq.s32.totalorder %s10, 0
    %p121 = por %p119, %p120
    %p122 = scmp.ne.s32.totalorder %s111, %s114
    %p123 = scmp.eq.s32.totalorder %s15, 1
    %p124 = por %p122, %p123
    %p125 = scmp.ne.s32.totalorder %s114, %s115
    %p126 = scmp.eq.s32.totalorder %s15, 0
    %p127 = por %p125, %p126
    %p128 = scmp.ne.s32.totalorder %s114, %s115
    %p129 = scmp.eq.s32.totalorder %s16, 1
    %p130 = por %p128, %p129
    %p132 = scmp.ne.s32.totalorder %s115, %s131
    %p133 = scmp.eq.s32.totalorder %s16, 0
    %p134 = por %p132, %p133
    %p135 = scmp.le.s32.totalorder 1, %s10
    %p136 = scmp.lt.s32.totalorder %s10, 3
    %p137 = pnand %p135, %p136
    %p138 = pneg %p137
    // Predicated region
    $region9: #{_double_conv_nchw.2} parent=5 // pred_check
      _
    $region10: #{_double_conv_nchw.2} parent=5 // pred_check_branch
      %140 = sbr.rel (%p137) target = $region12
    $region11: #{_double_conv_nchw.2} parent=5 // pred_region
      %s141 = ssub.s32 %s10, 1
      // Predicated region
      $region13: #{_double_conv_nchw.2} parent=11 // pred_check
        %p142 = pneg %p71
      $region14: #{_double_conv_nchw.2} parent=11 // pred_check_branch
        %144 = sbr.rel (%p142) target = $region16
      $region15: #{_double_conv_nchw.2} parent=11 // pred_region
        _
      $region16: #{_double_conv_nchw.2} parent=11 // pred_fallthru
        _
    $region12: #{_double_conv_nchw.2} parent=5 // pred_fallthru
      _
    %p145 = scmp.lt.s32.totalorder %s10, 2
    // Predicated region
    $region17: #{_double_conv_nchw.2} parent=5 // pred_check
      %p146 = pneg %p145
    $region18: #{_double_conv_nchw.2} parent=5 // pred_check_branch
      %148 = sbr.rel (%p146) target = $region20
    $region19: #{_double_conv_nchw.2} parent=5 // pred_region
      // Predicated region
      $region21: #{_double_conv_nchw.2} parent=19 // pred_check
        %p149 = pneg %p44
      $region22: #{_double_conv_nchw.2} parent=19 // pred_check_branch
        %151 = sbr.rel (%p149) target = $region24
      $region23: #{_double_conv_nchw.2} parent=19 // pred_region
        %s152 = smul.u32 16, %s18
        %p153 = scmp.lt.s32.totalorder %s17, 1
        %s154 = scalar_select %p153, %s17, 1
        %p155 = scmp.lt.s32.totalorder %s152, 15
        %s156 = scalar_select %p155, %s152, 15
        %s157 = smul.addr %s156, 2
        %s158 = smul.addr %s154, 32
        %s159 = sadd.s32 %s157, %s158
        %s160 = smul.addr %s159, 4
        %s161 = scalar_lea.vmem %s0, %s160
        %s162 = smul.u32 16, %s18
      $region24: #{_double_conv_nchw.2} parent=19 // pred_fallthru
        _
    $region20: #{_double_conv_nchw.2} parent=5 // pred_fallthru
      _
    %p163 = scmp.le.s32.totalorder 1, %s10
    %p164 = scmp.lt.s32.totalorder %s10, 3
    %p165 = pnand %p163, %p164
    %p166 = pneg %p165
    // Predicated region
    $region25: #{_double_conv_nchw.2} parent=5 // pred_check
      _
    $region26: #{_double_conv_nchw.2} parent=5 // pred_check_branch
      %168 = sbr.rel (%p165) target = $region28
    $region27: #{_double_conv_nchw.2} parent=5 // pred_region
      %s169 = ssub.s32 %s10, 1
      %s170 = smul.u32 16, %s20
      %p171 = scmp.lt.s32.totalorder %s19, 1
      %s172 = scalar_select %p171, %s19, 1
      %p173 = scmp.lt.s32.totalorder %s170, 15
      %s174 = scalar_select %p173, %s170, 15
      %s175 = smul.addr %s174, 2
      %s176 = smul.addr %s172, 32
      %s177 = sadd.s32 %s175, %s176
      %s178 = smul.addr %s177, 4
      %s179 = scalar_lea.vmem %s0, %s178
      %p180 = pneg %p50
      %p181 = pneg %p47
      %p182 = pneg %p71
      %p183 = pneg %p68
      %p184 = pneg %p99
      %p185 = pneg %p96
      %s186 = smul.u32 16, %s20
      %p187 = scmp.lt.s32.totalorder %s19, 1
      %s188 = scalar_select %p187, %s19, 1
      %p189 = scmp.lt.s32.totalorder %s186, 15
      %s190 = scalar_select %p189, %s186, 15
      %s191 = smul.addr %s190, 2
      %s192 = smul.addr %s188, 32
      %s193 = sadd.s32 %s191, %s192
      %s194 = smul.addr %s193, 4
      %s195 = scalar_lea.vmem %s2, %s194
      %p196 = pneg %p127
      %p197 = pneg %p124
      %p198 = scmp.lt.s32.totalorder %s19, 1
      %s199 = scalar_select %p198, %s19, 1
      %p200 = scmp.lt.s32.totalorder %s20, 0
      %s201 = scalar_select %p200, %s20, 0
      %s202 = sadd.s32 %s201, %s199
      %s203 = smul.addr %s202, 2
      %s204 = scalar_lea.vmem %s3, %s203
      %s205 = smul.u32 16, %s20
      %p206 = scmp.lt.s32.totalorder %s19, 1
      %s207 = scalar_select %p206, %s19, 1
      %p208 = scmp.lt.s32.totalorder %s205, 15
      %s209 = scalar_select %p208, %s205, 15
      %s210 = smul.addr %s209, 2
      %s211 = smul.addr %s207, 32
      %s212 = sadd.s32 %s210, %s211
      %s213 = smul.addr %s212, 4
      %s214 = scalar_lea.vmem %s0, %s213
      %s215 = smul.u32 16, %s20
      %s216 = smul.u32 16, %s20
      %p217 = scmp.lt.s32.totalorder %s19, 1
      %s218 = scalar_select %p217, %s19, 1
      %p219 = scmp.lt.s32.totalorder %s216, 15
      %s220 = scalar_select %p219, %s216, 15
      %s221 = smul.addr %s220, 2
      %s222 = smul.addr %s218, 32
      %s223 = sadd.s32 %s221, %s222
      %s224 = smul.addr %s223, 4
      %s225 = scalar_lea.vmem %s2, %s224
      %s226 = smul.u32 16, %s20
      %p227 = scmp.lt.s32.totalorder %s19, 1
      %s228 = scalar_select %p227, %s19, 1
      %p229 = scmp.lt.s32.totalorder %s20, 0
      %s230 = scalar_select %p229, %s20, 0
      %s231 = sadd.s32 %s230, %s228
      %s232 = smul.addr %s231, 2
      %s233 = scalar_lea.vmem %s3, %s232
      %v234 = vld [vmem:[%s214] sm:$0xf]
      %v235 = vld [vmem:[%s214 + $0x4] sm:$0xf]
      %v236 = vld [vmem:[%s214 + $0x8] sm:$0xf]
      %v237 = vld [vmem:[%s214 + $0xc] sm:$0xf]
      %v238 = vld [vmem:[%s214 + $0x10] sm:$0xf]
      %v239 = vld [vmem:[%s214 + $0x14] sm:$0xf]
      %v240 = vld [vmem:[%s214 + $0x18] sm:$0xf]
      %v241 = vld [vmem:[%s214 + $0x1c] sm:$0xf]
      %v242 = vld [vmem:[%s214 + $0x20] sm:$0xf]
      %v243 = vld [vmem:[%s214 + $0x24] sm:$0xf]
      %v244 = vld [vmem:[%s214 + $0x28] sm:$0xf]
      %v245 = vld [vmem:[%s214 + $0x2c] sm:$0xf]
      %v246 = vld [vmem:[%s214 + $0x30] sm:$0xf]
      %v247 = vld [vmem:[%s214 + $0x34] sm:$0xf]
      %v248 = vld [vmem:[%s214 + $0x38] sm:$0xf]
      %v249 = vld [vmem:[%s214 + $0x3c] sm:$0xf]
      %v250 = vld [vmem:[%s214 + $0x40] sm:$0xf]
      %v251 = vld [vmem:[%s214 + $0x44] sm:$0xf]
      %v252 = vld [vmem:[%s214 + $0x48] sm:$0xf]
      %v253 = vld [vmem:[%s214 + $0x4c] sm:$0xf]
      %v254 = vld [vmem:[%s214 + $0x50] sm:$0xf]
      %v255 = vld [vmem:[%s214 + $0x54] sm:$0xf]
      %v256 = vld [vmem:[%s214 + $0x58] sm:$0xf]
      %v257 = vld [vmem:[%s214 + $0x5c] sm:$0xf]
      %v258 = vld [vmem:[%s214 + $0x60] sm:$0xf]
      %v259 = vld [vmem:[%s214 + $0x64] sm:$0xf]
      %v260 = vld [vmem:[%s214 + $0x68] sm:$0xf]
      %v261 = vld [vmem:[%s214 + $0x6c] sm:$0xf]
      %v262 = vld [vmem:[%s214 + $0x70] sm:$0xf]
      %v263 = vld [vmem:[%s214 + $0x74] sm:$0xf]
      %v264 = vld [vmem:[%s214 + $0x78] sm:$0xf]
      %v265 = vld [vmem:[%s214 + $0x7c] sm:$0xf]
      %v266 = vld [vmem:[%s1] sm:$0xf]
      %v267 = vld [vmem:[%s1 + $0x4] sm:$0xf]
      %v268 = vld [vmem:[%s1 + $0x8] sm:$0xf]
      %v269 = vld [vmem:[%s1 + $0xc] sm:$0xf]
      %v270 = vld [vmem:[%s1 + $0x10] sm:$0xf]
      %v271 = vld [vmem:[%s1 + $0x14] sm:$0xf]
      %v272 = vld [vmem:[%s1 + $0x18] sm:$0xf]
      %v273 = vld [vmem:[%s1 + $0x1c] sm:$0xf]
      %v274 = vld [vmem:[%s1 + $0x20] sm:$0xf]
      %v275 = vld [vmem:[%s1 + $0x24] sm:$0xf]
      %v276 = vld [vmem:[%s1 + $0x28] sm:$0xf]
      %v277 = vld [vmem:[%s1 + $0x2c] sm:$0xf]
      %v278 = vld [vmem:[%s1 + $0x30] sm:$0xf]
      %v279 = vld [vmem:[%s1 + $0x34] sm:$0xf]
      %v280 = vld [vmem:[%s1 + $0x38] sm:$0xf]
      %v281 = vld [vmem:[%s1 + $0x3c] sm:$0xf]
      %v314 = vunpack.c.l.b16 %v234
      %v315 = vunpack.c.l.b16 %v235
      %v316 = vunpack.c.l.b16 %v236
      %v317 = vunpack.c.l.b16 %v237
      %v318 = vunpack.c.l.b16 %v238
      %v319 = vunpack.c.l.b16 %v239
      %v320 = vunpack.c.l.b16 %v240
      %v321 = vunpack.c.l.b16 %v241
      %v322 = vunpack.c.l.b16 %v242
      %v323 = vunpack.c.l.b16 %v243
      %v324 = vunpack.c.l.b16 %v244
      %v325 = vunpack.c.l.b16 %v245
      %v326 = vunpack.c.l.b16 %v246
      %v327 = vunpack.c.l.b16 %v247
      %v328 = vunpack.c.l.b16 %v248
      %v329 = vunpack.c.l.b16 %v249
      %v330 = vunpack.c.l.b16 %v250
      %v331 = vunpack.c.l.b16 %v251
      %v332 = vunpack.c.l.b16 %v252
      %v333 = vunpack.c.l.b16 %v253
      %v334 = vunpack.c.l.b16 %v254
      %v335 = vunpack.c.l.b16 %v255
      %v336 = vunpack.c.l.b16 %v256
      %v337 = vunpack.c.l.b16 %v257
      %v338 = vunpack.c.l.b16 %v258
      %v339 = vunpack.c.l.b16 %v259
      %v340 = vunpack.c.l.b16 %v260
      %v341 = vunpack.c.l.b16 %v261
      %v342 = vunpack.c.l.b16 %v262
      %v343 = vunpack.c.l.b16 %v263
      %v344 = vunpack.c.l.b16 %v264
      %v345 = vunpack.c.l.b16 %v265
      %v346 = vpack.c.b16 %v315, %v314
      %v347 = vpack.c.b16 %v317, %v316
      %v348 = vpack.c.b16 %v319, %v318
      %v349 = vpack.c.b16 %v321, %v320
      %v350 = vpack.c.b16 %v323, %v322
      %v351 = vpack.c.b16 %v325, %v324
      %v352 = vpack.c.b16 %v327, %v326
      %v353 = vpack.c.b16 %v329, %v328
      %v354 = vpack.c.b16 %v331, %v330
      %v355 = vpack.c.b16 %v333, %v332
      %v356 = vpack.c.b16 %v335, %v334
      %v357 = vpack.c.b16 %v337, %v336
      %v358 = vpack.c.b16 %v339, %v338
      %v359 = vpack.c.b16 %v341, %v340
      %v360 = vpack.c.b16 %v343, %v342
      %v361 = vpack.c.b16 %v345, %v344
      %v394 = vunpack.c.l.b16 %v266
      %v395 = vunpack.c.l.b16 %v267
      %v396 = vunpack.c.l.b16 %v268
      %v397 = vunpack.c.l.b16 %v269
      %v398 = vunpack.c.l.b16 %v270
      %v399 = vunpack.c.l.b16 %v271
      %v400 = vunpack.c.l.b16 %v272
      %v401 = vunpack.c.l.b16 %v273
      %v402 = vunpack.c.l.b16 %v274
      %v403 = vunpack.c.l.b16 %v275
      %v404 = vunpack.c.l.b16 %v276
      %v405 = vunpack.c.l.b16 %v277
      %v406 = vunpack.c.l.b16 %v278
      %v407 = vunpack.c.l.b16 %v279
      %v408 = vunpack.c.l.b16 %v280
      %v409 = vunpack.c.l.b16 %v281
      %v410 = vpack.c.b16 %v395, %v394
      %v411 = vpack.c.b16 %v397, %v396
      %v412 = vpack.c.b16 %v399, %v398
      %v413 = vpack.c.b16 %v401, %v400
      %v414 = vpack.c.b16 %v403, %v402
      %v415 = vpack.c.b16 %v405, %v404
      %v416 = vpack.c.b16 %v407, %v406
      %v417 = vpack.c.b16 %v409, %v408
      %426 = vmatpush.bf16.msra.mxu0 %v417
      %427 = vmatpush.bf16.msra.mxu0 %v416
      %428 = vmatpush.bf16.msra.mxu0 %v415
      %429 = vmatpush.bf16.msra.mxu0 %v414
      %430 = vmatpush.bf16.msra.mxu0 %v413
      %431 = vmatpush.bf16.msra.mxu0 %v412
      %432 = vmatpush.bf16.msra.mxu0 %v411
      %433 = vmatpush.bf16.msra.mxu0 %v410
      %434 = vmatmul.bf16.gmra.mxu0 %v346
      %v435 = vpop.f32.mrf.mxu0
      %v436 = vadd.f32 0.0, %v435
      %v437 = vpop.f32.mrf.mxu0
      %v438 = vadd.f32 0.0, %v437
      %439 = vmatmul.bf16.gmra.mxu0 %v347
      %v440 = vpop.f32.mrf.mxu0
      %v441 = vadd.f32 0.0, %v440
      %v442 = vpop.f32.mrf.mxu0
      %v443 = vadd.f32 0.0, %v442
      %444 = vmatmul.bf16.gmra.mxu0 %v348
      %v445 = vpop.f32.mrf.mxu0
      %v446 = vadd.f32 0.0, %v445
      %v447 = vpop.f32.mrf.mxu0
      %v448 = vadd.f32 0.0, %v447
      %449 = vmatmul.bf16.gmra.mxu0 %v349
      %v450 = vpop.f32.mrf.mxu0
      %v451 = vadd.f32 0.0, %v450
      %v452 = vpop.f32.mrf.mxu0
      %v453 = vadd.f32 0.0, %v452
      %454 = vmatmul.bf16.gmra.mxu0 %v350
      %v455 = vpop.f32.mrf.mxu0
      %v456 = vadd.f32 0.0, %v455
      %v457 = vpop.f32.mrf.mxu0
      %v458 = vadd.f32 0.0, %v457
      %459 = vmatmul.bf16.gmra.mxu0 %v351
      %v460 = vpop.f32.mrf.mxu0
      %v461 = vadd.f32 0.0, %v460
      %v462 = vpop.f32.mrf.mxu0
      %v463 = vadd.f32 0.0, %v462
      %464 = vmatmul.bf16.gmra.mxu0 %v352
      %v465 = vpop.f32.mrf.mxu0
      %v466 = vadd.f32 0.0, %v465
      %v467 = vpop.f32.mrf.mxu0
      %v468 = vadd.f32 0.0, %v467
      %469 = vmatmul.bf16.gmra.mxu0 %v353
      %v470 = vpop.f32.mrf.mxu0
      %v471 = vadd.f32 0.0, %v470
      %v472 = vpop.f32.mrf.mxu0
      %v473 = vadd.f32 0.0, %v472
      %474 = vmatmul.bf16.gmra.mxu0 %v354
      %v475 = vpop.f32.mrf.mxu0
      %v476 = vadd.f32 0.0, %v475
      %v477 = vpop.f32.mrf.mxu0
      %v478 = vadd.f32 0.0, %v477
      %479 = vmatmul.bf16.gmra.mxu0 %v355
      %v480 = vpop.f32.mrf.mxu0
      %v481 = vadd.f32 0.0, %v480
      %v482 = vpop.f32.mrf.mxu0
      %v483 = vadd.f32 0.0, %v482
      %484 = vmatmul.bf16.gmra.mxu0 %v356
      %v485 = vpop.f32.mrf.mxu0
      %v486 = vadd.f32 0.0, %v485
      %v487 = vpop.f32.mrf.mxu0
      %v488 = vadd.f32 0.0, %v487
      %489 = vmatmul.bf16.gmra.mxu0 %v357
      %v490 = vpop.f32.mrf.mxu0
      %v491 = vadd.f32 0.0, %v490
      %v492 = vpop.f32.mrf.mxu0
      %v493 = vadd.f32 0.0, %v492
      %494 = vmatmul.bf16.gmra.mxu0 %v358
      %v495 = vpop.f32.mrf.mxu0
      %v496 = vadd.f32 0.0, %v495
      %v497 = vpop.f32.mrf.mxu0
      %v498 = vadd.f32 0.0, %v497
      %499 = vmatmul.bf16.gmra.mxu0 %v359
      %v500 = vpop.f32.mrf.mxu0
      %v501 = vadd.f32 0.0, %v500
      %v502 = vpop.f32.mrf.mxu0
      %v503 = vadd.f32 0.0, %v502
      %504 = vmatmul.bf16.gmra.mxu0 %v360
      %v505 = vpop.f32.mrf.mxu0
      %v506 = vadd.f32 0.0, %v505
      %v507 = vpop.f32.mrf.mxu0
      %v508 = vadd.f32 0.0, %v507
      %509 = vmatmul.bf16.gmra.mxu0 %v361
      %v510 = vpop.f32.mrf.mxu0
      %v511 = vadd.f32 0.0, %v510
      %v512 = vpop.f32.mrf.mxu0
      %v513 = vadd.f32 0.0, %v512
      %514 = vdwg.mxu0
      %s515 = smul.u32 %s20, 16
      %v516 = vstv %s515
      %v517 = vadd.s32 %v516, 1
      %v518 = vadd.s32 %v516, 2
      %v519 = vadd.s32 %v516, 3
      %v520 = vadd.s32 %v516, 4
      %v521 = vadd.s32 %v516, 5
      %v522 = vadd.s32 %v516, 6
      %v523 = vadd.s32 %v516, 7
      %v524 = vadd.s32 %v516, 8
      %v525 = vadd.s32 %v516, 9
      %v526 = vadd.s32 %v516, 10
      %v527 = vadd.s32 %v516, 11
      %v528 = vadd.s32 %v516, 12
      %v529 = vadd.s32 %v516, 13
      %v530 = vadd.s32 %v516, 14
      %v531 = vadd.s32 %v516, 15
      %vm532 = vcmp.lt.s32.totalorder %v516, 16
      %vm533 = vcmp.lt.s32.totalorder %v517, 16
      %vm534 = vcmp.lt.s32.totalorder %v518, 16
      %vm535 = vcmp.lt.s32.totalorder %v519, 16
      %vm536 = vcmp.lt.s32.totalorder %v520, 16
      %vm537 = vcmp.lt.s32.totalorder %v521, 16
      %vm538 = vcmp.lt.s32.totalorder %v522, 16
      %vm539 = vcmp.lt.s32.totalorder %v523, 16
      %vm540 = vcmp.lt.s32.totalorder %v524, 16
      %vm541 = vcmp.lt.s32.totalorder %v525, 16
      %vm542 = vcmp.lt.s32.totalorder %v526, 16
      %vm543 = vcmp.lt.s32.totalorder %v527, 16
      %vm544 = vcmp.lt.s32.totalorder %v528, 16
      %vm545 = vcmp.lt.s32.totalorder %v529, 16
      %vm546 = vcmp.lt.s32.totalorder %v530, 16
      %vm547 = vcmp.lt.s32.totalorder %v531, 16
      %v548 = vsel %vm532, 1, 0
      %v549 = vsel %vm533, 1, 0
      %v550 = vsel %vm534, 1, 0
      %v551 = vsel %vm535, 1, 0
      %v552 = vsel %vm536, 1, 0
      %v553 = vsel %vm537, 1, 0
      %v554 = vsel %vm538, 1, 0
      %v555 = vsel %vm539, 1, 0
      %v556 = vsel %vm540, 1, 0
      %v557 = vsel %vm541, 1, 0
      %v558 = vsel %vm542, 1, 0
      %v559 = vsel %vm543, 1, 0
      %v560 = vsel %vm544, 1, 0
      %v561 = vsel %vm545, 1, 0
      %v562 = vsel %vm546, 1, 0
      %v563 = vsel %vm547, 1, 0
      %vm564 = vcmp.eq.s32.totalorder %v548, 1
      %vm565 = vcmp.eq.s32.totalorder %v549, 1
      %vm566 = vcmp.eq.s32.totalorder %v550, 1
      %vm567 = vcmp.eq.s32.totalorder %v551, 1
      %vm568 = vcmp.eq.s32.totalorder %v552, 1
      %vm569 = vcmp.eq.s32.totalorder %v553, 1
      %vm570 = vcmp.eq.s32.totalorder %v554, 1
      %vm571 = vcmp.eq.s32.totalorder %v555, 1
      %vm572 = vcmp.eq.s32.totalorder %v556, 1
      %vm573 = vcmp.eq.s32.totalorder %v557, 1
      %vm574 = vcmp.eq.s32.totalorder %v558, 1
      %vm575 = vcmp.eq.s32.totalorder %v559, 1
      %vm576 = vcmp.eq.s32.totalorder %v560, 1
      %vm577 = vcmp.eq.s32.totalorder %v561, 1
      %vm578 = vcmp.eq.s32.totalorder %v562, 1
      %vm579 = vcmp.eq.s32.totalorder %v563, 1
      %v580 = vsel %vm564, %v436, 0.0
      %v581 = vsel %vm564, %v438, 0.0
      %v582 = vsel %vm565, %v441, 0.0
      %v583 = vsel %vm565, %v443, 0.0
      %v584 = vsel %vm566, %v446, 0.0
      %v585 = vsel %vm566, %v448, 0.0
      %v586 = vsel %vm567, %v451, 0.0
      %v587 = vsel %vm567, %v453, 0.0
      %v588 = vsel %vm568, %v456, 0.0
      %v589 = vsel %vm568, %v458, 0.0
      %v590 = vsel %vm569, %v461, 0.0
      %v591 = vsel %vm569, %v463, 0.0
      %v592 = vsel %vm570, %v466, 0.0
      %v593 = vsel %vm570, %v468, 0.0
      %v594 = vsel %vm571, %v471, 0.0
      %v595 = vsel %vm571, %v473, 0.0
      %v596 = vsel %vm572, %v476, 0.0
      %v597 = vsel %vm572, %v478, 0.0
      %v598 = vsel %vm573, %v481, 0.0
      %v599 = vsel %vm573, %v483, 0.0
      %v600 = vsel %vm574, %v486, 0.0
      %v601 = vsel %vm574, %v488, 0.0
      %v602 = vsel %vm575, %v491, 0.0
      %v603 = vsel %vm575, %v493, 0.0
      %v604 = vsel %vm576, %v496, 0.0
      %v605 = vsel %vm576, %v498, 0.0
      %v606 = vsel %vm577, %v501, 0.0
      %v607 = vsel %vm577, %v503, 0.0
      %v608 = vsel %vm578, %v506, 0.0
      %v609 = vsel %vm578, %v508, 0.0
      %v610 = vsel %vm579, %v511, 0.0
      %v611 = vsel %vm579, %v513, 0.0
      %v612 = vpack.c.bf16 %v580, %v580
      %v613 = vpack.c.bf16 %v581, %v581
      %v614 = vpack.c.bf16 %v582, %v582
      %v615 = vpack.c.bf16 %v583, %v583
      %v616 = vpack.c.bf16 %v584, %v584
      %v617 = vpack.c.bf16 %v585, %v585
      %v618 = vpack.c.bf16 %v586, %v586
      %v619 = vpack.c.bf16 %v587, %v587
      %v620 = vpack.c.bf16 %v588, %v588
      %v621 = vpack.c.bf16 %v589, %v589
      %v622 = vpack.c.bf16 %v590, %v590
      %v623 = vpack.c.bf16 %v591, %v591
      %v624 = vpack.c.bf16 %v592, %v592
      %v625 = vpack.c.bf16 %v593, %v593
      %v626 = vpack.c.bf16 %v594, %v594
      %v627 = vpack.c.bf16 %v595, %v595
      %v628 = vpack.c.bf16 %v596, %v596
      %v629 = vpack.c.bf16 %v597, %v597
      %v630 = vpack.c.bf16 %v598, %v598
      %v631 = vpack.c.bf16 %v599, %v599
      %v632 = vpack.c.bf16 %v600, %v600
      %v633 = vpack.c.bf16 %v601, %v601
      %v634 = vpack.c.bf16 %v602, %v602
      %v635 = vpack.c.bf16 %v603, %v603
      %v636 = vpack.c.bf16 %v604, %v604
      %v637 = vpack.c.bf16 %v605, %v605
      %v638 = vpack.c.bf16 %v606, %v606
      %v639 = vpack.c.bf16 %v607, %v607
      %v640 = vpack.c.bf16 %v608, %v608
      %v641 = vpack.c.bf16 %v609, %v609
      %v642 = vpack.c.bf16 %v610, %v610
      %v643 = vpack.c.bf16 %v611, %v611
      %644 = vst [vmem:[%s225] sm:$0xf] %v612
      %645 = vst [vmem:[%s225 + $0x4] sm:$0xf] %v613
      %646 = vst [vmem:[%s225 + $0x8] sm:$0xf] %v614
      %647 = vst [vmem:[%s225 + $0xc] sm:$0xf] %v615
      %648 = vst [vmem:[%s225 + $0x10] sm:$0xf] %v616
      %649 = vst [vmem:[%s225 + $0x14] sm:$0xf] %v617
      %650 = vst [vmem:[%s225 + $0x18] sm:$0xf] %v618
      %651 = vst [vmem:[%s225 + $0x1c] sm:$0xf] %v619
      %652 = vst [vmem:[%s225 + $0x20] sm:$0xf] %v620
      %653 = vst [vmem:[%s225 + $0x24] sm:$0xf] %v621
      %654 = vst [vmem:[%s225 + $0x28] sm:$0xf] %v622
      %655 = vst [vmem:[%s225 + $0x2c] sm:$0xf] %v623
      %656 = vst [vmem:[%s225 + $0x30] sm:$0xf] %v624
      %657 = vst [vmem:[%s225 + $0x34] sm:$0xf] %v625
      %658 = vst [vmem:[%s225 + $0x38] sm:$0xf] %v626
      %659 = vst [vmem:[%s225 + $0x3c] sm:$0xf] %v627
      %660 = vst [vmem:[%s225 + $0x40] sm:$0xf] %v628
      %661 = vst [vmem:[%s225 + $0x44] sm:$0xf] %v629
      %662 = vst [vmem:[%s225 + $0x48] sm:$0xf] %v630
      %663 = vst [vmem:[%s225 + $0x4c] sm:$0xf] %v631
      %664 = vst [vmem:[%s225 + $0x50] sm:$0xf] %v632
      %665 = vst [vmem:[%s225 + $0x54] sm:$0xf] %v633
      %666 = vst [vmem:[%s225 + $0x58] sm:$0xf] %v634
      %667 = vst [vmem:[%s225 + $0x5c] sm:$0xf] %v635
      %668 = vst [vmem:[%s225 + $0x60] sm:$0xf] %v636
      %669 = vst [vmem:[%s225 + $0x64] sm:$0xf] %v637
      %670 = vst [vmem:[%s225 + $0x68] sm:$0xf] %v638
      %671 = vst [vmem:[%s225 + $0x6c] sm:$0xf] %v639
      %672 = vst [vmem:[%s225 + $0x70] sm:$0xf] %v640
      %673 = vst [vmem:[%s225 + $0x74] sm:$0xf] %v641
      %674 = vst [vmem:[%s225 + $0x78] sm:$0xf] %v642
      %675 = vst [vmem:[%s225 + $0x7c] sm:$0xf] %v643
      %v676 = vunpack.c.l.bf16 %v612
      %v677 = vunpack.c.l.bf16 %v613
      %v678 = vunpack.c.l.bf16 %v614
      %v679 = vunpack.c.l.bf16 %v615
      %v680 = vunpack.c.l.bf16 %v616
      %v681 = vunpack.c.l.bf16 %v617
      %v682 = vunpack.c.l.bf16 %v618
      %v683 = vunpack.c.l.bf16 %v619
      %v684 = vunpack.c.l.bf16 %v620
      %v685 = vunpack.c.l.bf16 %v621
      %v686 = vunpack.c.l.bf16 %v622
      %v687 = vunpack.c.l.bf16 %v623
      %v688 = vunpack.c.l.bf16 %v624
      %v689 = vunpack.c.l.bf16 %v625
      %v690 = vunpack.c.l.bf16 %v626
      %v691 = vunpack.c.l.bf16 %v627
      %v692 = vunpack.c.l.bf16 %v628
      %v693 = vunpack.c.l.bf16 %v629
      %v694 = vunpack.c.l.bf16 %v630
      %v695 = vunpack.c.l.bf16 %v631
      %v696 = vunpack.c.l.bf16 %v632
      %v697 = vunpack.c.l.bf16 %v633
      %v698 = vunpack.c.l.bf16 %v634
      %v699 = vunpack.c.l.bf16 %v635
      %v700 = vunpack.c.l.bf16 %v636
      %v701 = vunpack.c.l.bf16 %v637
      %v702 = vunpack.c.l.bf16 %v638
      %v703 = vunpack.c.l.bf16 %v639
      %v704 = vunpack.c.l.bf16 %v640
      %v705 = vunpack.c.l.bf16 %v641
      %v706 = vunpack.c.l.bf16 %v642
      %v707 = vunpack.c.l.bf16 %v643
      %v708 = vcvt.s32.f32 %v548
      %v709 = vcvt.s32.f32 %v549
      %v710 = vcvt.s32.f32 %v550
      %v711 = vcvt.s32.f32 %v551
      %v712 = vcvt.s32.f32 %v552
      %v713 = vcvt.s32.f32 %v553
      %v714 = vcvt.s32.f32 %v554
      %v715 = vcvt.s32.f32 %v555
      %v716 = vcvt.s32.f32 %v556
      %v717 = vcvt.s32.f32 %v557
      %v718 = vcvt.s32.f32 %v558
      %v719 = vcvt.s32.f32 %v559
      %v720 = vcvt.s32.f32 %v560
      %v721 = vcvt.s32.f32 %v561
      %v722 = vcvt.s32.f32 %v562
      %v723 = vcvt.s32.f32 %v563
      %v724 = vadd.f32 %v708, %v708
      %v725 = vadd.f32 %v724, %v709
      %v726 = vadd.f32 %v725, %v709
      %v727 = vadd.f32 %v726, %v710
      %v728 = vadd.f32 %v727, %v710
      %v729 = vadd.f32 %v728, %v711
      %v730 = vadd.f32 %v729, %v711
      %v731 = vadd.f32 %v730, %v712
      %v732 = vadd.f32 %v731, %v712
      %v733 = vadd.f32 %v732, %v713
      %v734 = vadd.f32 %v733, %v713
      %v735 = vadd.f32 %v734, %v714
      %v736 = vadd.f32 %v735, %v714
      %v737 = vadd.f32 %v736, %v715
      %v738 = vadd.f32 %v737, %v715
      %v739 = vadd.f32 %v738, %v716
      %v740 = vadd.f32 %v739, %v716
      %v741 = vadd.f32 %v740, %v717
      %v742 = vadd.f32 %v741, %v717
      %v743 = vadd.f32 %v742, %v718
      %v744 = vadd.f32 %v743, %v718
      %v745 = vadd.f32 %v744, %v719
      %v746 = vadd.f32 %v745, %v719
      %v747 = vadd.f32 %v746, %v720
      %v748 = vadd.f32 %v747, %v720
      %v749 = vadd.f32 %v748, %v721
      %v750 = vadd.f32 %v749, %v721
      %v751 = vadd.f32 %v750, %v722
      %v752 = vadd.f32 %v751, %v722
      %v753 = vadd.f32 %v752, %v723
      %v754 = vadd.f32 %v753, %v723
      %v755 = vrot.slane %v754, 4
      %v756 = vadd.f32 %v754, %v755
      %v757 = vrot.slane %v756, 2
      %v758 = vadd.f32 %v756, %v757
      %v759 = vrot.slane %v758, 1
      %v760 = vadd.f32 %v758, %v759
      %v761 = vadd.f32 %v676, %v677
      %v762 = vadd.f32 %v761, %v678
      %v763 = vadd.f32 %v762, %v679
      %v764 = vadd.f32 %v763, %v680
      %v765 = vadd.f32 %v764, %v681
      %v766 = vadd.f32 %v765, %v682
      %v767 = vadd.f32 %v766, %v683
      %v768 = vadd.f32 %v767, %v684
      %v769 = vadd.f32 %v768, %v685
      %v770 = vadd.f32 %v769, %v686
      %v771 = vadd.f32 %v770, %v687
      %v772 = vadd.f32 %v771, %v688
      %v773 = vadd.f32 %v772, %v689
      %v774 = vadd.f32 %v773, %v690
      %v775 = vadd.f32 %v774, %v691
      %v776 = vadd.f32 %v775, %v692
      %v777 = vadd.f32 %v776, %v693
      %v778 = vadd.f32 %v777, %v694
      %v779 = vadd.f32 %v778, %v695
      %v780 = vadd.f32 %v779, %v696
      %v781 = vadd.f32 %v780, %v697
      %v782 = vadd.f32 %v781, %v698
      %v783 = vadd.f32 %v782, %v699
      %v784 = vadd.f32 %v783, %v700
      %v785 = vadd.f32 %v784, %v701
      %v786 = vadd.f32 %v785, %v702
      %v787 = vadd.f32 %v786, %v703
      %v788 = vadd.f32 %v787, %v704
      %v789 = vadd.f32 %v788, %v705
      %v790 = vadd.f32 %v789, %v706
      %v791 = vadd.f32 %v790, %v707
      %v792 = vrot.slane %v791, 4
      %v793 = vadd.f32 %v791, %v792
      %v794 = vrot.slane %v793, 2
      %v795 = vadd.f32 %v793, %v794
      %v796 = vrot.slane %v795, 1
      %v797 = vadd.f32 %v795, %v796
      %v798 = vrcp.pop %v760
      %v799 = vmul.f32 %v760, %v798
      %v800 = vsub.f32 1.0, %v799
      %v801 = vmul.f32 %v798, %v800
      %v802 = vadd.f32 %v798, %v801
      %vm803 = vweird.f32 %v760
      %vm804 = vweird.f32 %v798
      %vm805 = vmor %vm803, %vm804
      %v806 = vsel %vm805, %v798, %v802
      %v807 = vand.u32 2147483647, %v760
      %vm808 = vcmp.eq.f32.partialorder %v807, 8.507059e+37
      %v809 = vand.u32 %v760, 2147483648
      %v810 = vor.u32 1.1754944e-38, %v809
      %v811 = vsel %vm808, %v810, %v806
      %v812 = vmul.f32 %v797, %v811
      %v813 = vsub.f32 %v676, %v812
      %v814 = vsub.f32 %v677, %v812
      %v815 = vsub.f32 %v678, %v812
      %v816 = vsub.f32 %v679, %v812
      %v817 = vsub.f32 %v680, %v812
      %v818 = vsub.f32 %v681, %v812
      %v819 = vsub.f32 %v682, %v812
      %v820 = vsub.f32 %v683, %v812
      %v821 = vsub.f32 %v684, %v812
      %v822 = vsub.f32 %v685, %v812
      %v823 = vsub.f32 %v686, %v812
      %v824 = vsub.f32 %v687, %v812
      %v825 = vsub.f32 %v688, %v812
      %v826 = vsub.f32 %v689, %v812
      %v827 = vsub.f32 %v690, %v812
      %v828 = vsub.f32 %v691, %v812
      %v829 = vsub.f32 %v692, %v812
      %v830 = vsub.f32 %v693, %v812
      %v831 = vsub.f32 %v694, %v812
      %v832 = vsub.f32 %v695, %v812
      %v833 = vsub.f32 %v696, %v812
      %v834 = vsub.f32 %v697, %v812
      %v835 = vsub.f32 %v698, %v812
      %v836 = vsub.f32 %v699, %v812
      %v837 = vsub.f32 %v700, %v812
      %v838 = vsub.f32 %v701, %v812
      %v839 = vsub.f32 %v702, %v812
      %v840 = vsub.f32 %v703, %v812
      %v841 = vsub.f32 %v704, %v812
      %v842 = vsub.f32 %v705, %v812
      %v843 = vsub.f32 %v706, %v812
      %v844 = vsub.f32 %v707, %v812
      %v845 = vsel %vm564, %v813, 0.0
      %v846 = vsel %vm564, %v814, 0.0
      %v847 = vsel %vm565, %v815, 0.0
      %v848 = vsel %vm565, %v816, 0.0
      %v849 = vsel %vm566, %v817, 0.0
      %v850 = vsel %vm566, %v818, 0.0
      %v851 = vsel %vm567, %v819, 0.0
      %v852 = vsel %vm567, %v820, 0.0
      %v853 = vsel %vm568, %v821, 0.0
      %v854 = vsel %vm568, %v822, 0.0
      %v855 = vsel %vm569, %v823, 0.0
      %v856 = vsel %vm569, %v824, 0.0
      %v857 = vsel %vm570, %v825, 0.0
      %v858 = vsel %vm570, %v826, 0.0
      %v859 = vsel %vm571, %v827, 0.0
      %v860 = vsel %vm571, %v828, 0.0
      %v861 = vsel %vm572, %v829, 0.0
      %v862 = vsel %vm572, %v830, 0.0
      %v863 = vsel %vm573, %v831, 0.0
      %v864 = vsel %vm573, %v832, 0.0
      %v865 = vsel %vm574, %v833, 0.0
      %v866 = vsel %vm574, %v834, 0.0
      %v867 = vsel %vm575, %v835, 0.0
      %v868 = vsel %vm575, %v836, 0.0
      %v869 = vsel %vm576, %v837, 0.0
      %v870 = vsel %vm576, %v838, 0.0
      %v871 = vsel %vm577, %v839, 0.0
      %v872 = vsel %vm577, %v840, 0.0
      %v873 = vsel %vm578, %v841, 0.0
      %v874 = vsel %vm578, %v842, 0.0
      %v875 = vsel %vm579, %v843, 0.0
      %v876 = vsel %vm579, %v844, 0.0
      %v877 = vmul.f32 %v845, %v845
      %v878 = vmul.f32 %v846, %v846
      %v879 = vmul.f32 %v847, %v847
      %v880 = vmul.f32 %v848, %v848
      %v881 = vmul.f32 %v849, %v849
      %v882 = vmul.f32 %v850, %v850
      %v883 = vmul.f32 %v851, %v851
      %v884 = vmul.f32 %v852, %v852
      %v885 = vmul.f32 %v853, %v853
      %v886 = vmul.f32 %v854, %v854
      %v887 = vmul.f32 %v855, %v855
      %v888 = vmul.f32 %v856, %v856
      %v889 = vmul.f32 %v857, %v857
      %v890 = vmul.f32 %v858, %v858
      %v891 = vmul.f32 %v859, %v859
      %v892 = vmul.f32 %v860, %v860
      %v893 = vmul.f32 %v861, %v861
      %v894 = vmul.f32 %v862, %v862
      %v895 = vmul.f32 %v863, %v863
      %v896 = vmul.f32 %v864, %v864
      %v897 = vmul.f32 %v865, %v865
      %v898 = vmul.f32 %v866, %v866
      %v899 = vmul.f32 %v867, %v867
      %v900 = vmul.f32 %v868, %v868
      %v901 = vmul.f32 %v869, %v869
      %v902 = vmul.f32 %v870, %v870
      %v903 = vmul.f32 %v871, %v871
      %v904 = vmul.f32 %v872, %v872
      %v905 = vmul.f32 %v873, %v873
      %v906 = vmul.f32 %v874, %v874
      %v907 = vmul.f32 %v875, %v875
      %v908 = vmul.f32 %v876, %v876
      %v909 = vadd.f32 %v877, %v878
      %v910 = vadd.f32 %v909, %v879
      %v911 = vadd.f32 %v910, %v880
      %v912 = vadd.f32 %v911, %v881
      %v913 = vadd.f32 %v912, %v882
      %v914 = vadd.f32 %v913, %v883
      %v915 = vadd.f32 %v914, %v884
      %v916 = vadd.f32 %v915, %v885
      %v917 = vadd.f32 %v916, %v886
      %v918 = vadd.f32 %v917, %v887
      %v919 = vadd.f32 %v918, %v888
      %v920 = vadd.f32 %v919, %v889
      %v921 = vadd.f32 %v920, %v890
      %v922 = vadd.f32 %v921, %v891
      %v923 = vadd.f32 %v922, %v892
      %v924 = vadd.f32 %v923, %v893
      %v925 = vadd.f32 %v924, %v894
      %v926 = vadd.f32 %v925, %v895
      %v927 = vadd.f32 %v926, %v896
      %v928 = vadd.f32 %v927, %v897
      %v929 = vadd.f32 %v928, %v898
      %v930 = vadd.f32 %v929, %v899
      %v931 = vadd.f32 %v930, %v900
      %v932 = vadd.f32 %v931, %v901
      %v933 = vadd.f32 %v932, %v902
      %v934 = vadd.f32 %v933, %v903
      %v935 = vadd.f32 %v934, %v904
      %v936 = vadd.f32 %v935, %v905
      %v937 = vadd.f32 %v936, %v906
      %v938 = vadd.f32 %v937, %v907
      %v939 = vadd.f32 %v938, %v908
      %v940 = vrot.slane %v939, 4
      %v941 = vadd.f32 %v939, %v940
      %v942 = vrot.slane %v941, 2
      %v943 = vadd.f32 %v941, %v942
      %v944 = vrot.slane %v943, 1
      %v945 = vadd.f32 %v943, %v944
      %vm946 = vcmask 1040384
      %v947 = vsel %vm946, %v797, %v945
      %948 = vst [vmem:[%s233] sm:$0x3] %v947
      %s949 = smul.u32 16, %s20
      %p950 = scmp.lt.s32.totalorder %s19, 1
      %s951 = scalar_select %p950, %s19, 1
      %p952 = scmp.lt.s32.totalorder %s949, 15
      %s953 = scalar_select %p952, %s949, 15
      %s954 = smul.addr %s953, 2
      %s955 = smul.addr %s951, 32
      %s956 = sadd.s32 %s954, %s955
      %s957 = smul.addr %s956, 4
      %s958 = scalar_lea.vmem %s2, %s957
      %p959 = scmp.lt.s32.totalorder %s19, 1
      %s960 = scalar_select %p959, %s19, 1
      %p961 = scmp.lt.s32.totalorder %s20, 0
      %s962 = scalar_select %p961, %s20, 0
      %s963 = sadd.s32 %s962, %s960
      %s964 = smul.addr %s963, 2
      %s965 = scalar_lea.vmem %s3, %s964
      // Predicated region
      $region29: #{_double_conv_nchw.2} parent=27 // pred_check
        %p966 = pneg %p96
      $region30: #{_double_conv_nchw.2} parent=27 // pred_check_branch
        %968 = sbr.rel (%p966) target = $region32
      $region31: #{_double_conv_nchw.2} parent=27 // pred_region
        %s969 = smul.u32 16, %s20
      $region32: #{_double_conv_nchw.2} parent=27 // pred_fallthru
        _
      // Predicated region
      $region33: #{_double_conv_nchw.2} parent=27 // pred_check
        %p970 = pneg %p124
      $region34: #{_double_conv_nchw.2} parent=27 // pred_check_branch
        %972 = sbr.rel (%p970) target = $region36
      $region35: #{_double_conv_nchw.2} parent=27 // pred_region
        _
      $region36: #{_double_conv_nchw.2} parent=27 // pred_fallthru
        _
    $region28: #{_double_conv_nchw.2} parent=5 // pred_fallthru
      _
    %p973 = scmp.le.s32.totalorder 2, %s10
    // Predicated region
    $region37: #{_double_conv_nchw.2} parent=5 // pred_check
      %p974 = pneg %p973
    $region38: #{_double_conv_nchw.2} parent=5 // pred_check_branch
      %976 = sbr.rel (%p974) target = $region40
    $region39: #{_double_conv_nchw.2} parent=5 // pred_region
      %s977 = ssub.s32 %s10, 2
      // Predicated region
      $region41: #{_double_conv_nchw.2} parent=39 // pred_check
        %p978 = pneg %p102
      $region42: #{_double_conv_nchw.2} parent=39 // pred_check_branch
        %980 = sbr.rel (%p978) target = $region44
      $region43: #{_double_conv_nchw.2} parent=39 // pred_region
        %s981 = smul.u32 16, %s22
        %p982 = scmp.lt.s32.totalorder %s21, 1
        %s983 = scalar_select %p982, %s21, 1
        %p984 = scmp.lt.s32.totalorder %s981, 15
        %s985 = scalar_select %p984, %s981, 15
        %s986 = smul.addr %s985, 2
        %s987 = smul.addr %s983, 32
        %s988 = sadd.s32 %s986, %s987
        %s989 = smul.addr %s988, 4
        %s990 = scalar_lea.vmem %s2, %s989
      $region44: #{_double_conv_nchw.2} parent=39 // pred_fallthru
        _
      // Predicated region
      $region45: #{_double_conv_nchw.2} parent=39 // pred_check
        %p991 = pneg %p130
      $region46: #{_double_conv_nchw.2} parent=39 // pred_check_branch
        %993 = sbr.rel (%p991) target = $region48
      $region47: #{_double_conv_nchw.2} parent=39 // pred_region
        %p994 = scmp.lt.s32.totalorder %s21, 1
        %s995 = scalar_select %p994, %s21, 1
        %p996 = scmp.lt.s32.totalorder %s22, 0
        %s997 = scalar_select %p996, %s22, 0
        %s998 = sadd.s32 %s997, %s995
        %s999 = smul.addr %s998, 2
        %s1000 = scalar_lea.vmem %s3, %s999
      $region48: #{_double_conv_nchw.2} parent=39 // pred_fallthru
        _
    $region40: #{_double_conv_nchw.2} parent=5 // pred_fallthru
      _
  $region6: #{_double_conv_nchw.2} parent=0 // loop_footer
    %s14 = sadd.s32 1, %s10
  $region7: #{_double_conv_nchw.2} parent=0 // loop_footer_branch
    %9 = sbr.rel target = $region3
  $region8: #{_double_conv_nchw.2} parent=0 // loop_exit
    _

// kernel: _double_conv_nchw.3
$region0: #{_double_conv_nchw.3}
  #allocation0 [shape = 'u32[]', space=smem, size = 0x4, offset = 0x4, fixed_abs, tag = 'smem constant byte address 0x4 - core index']
  #allocation1 [shape = 'u32[72,128]{1,0:T(1,128)}', space=vmem, size = 0x9000, scoped, tag = 'internal scratch']
  #allocation2 [shape = 'bf16[256,1152]{1,0:T(8,128)(2,1)}', space=vmem, size = 0x90000, scoped, tag = 'scratch operand']
  %s0 = inlined_call_operand.vmem [shape: bf16[2,18,18,128], index: 0, kind: input, shape index: {}]
  %s1 = inlined_call_operand.vmem [shape: bf16[1152,128], index: 1, kind: input, shape index: {}]
  %s2 = inlined_call_operand.vmem [shape: f32[1,128], index: 2, kind: input, shape index: {}]
  %s3 = inlined_call_operand.vmem [shape: f32[1,128], index: 3, kind: input, shape index: {}]
  %s4 = inlined_call_operand.vmem [shape: bf16[2,16,16,128], index: 4, kind: output, shape index: {0}]
  %s5 = inlined_call_operand.vmem [shape: f32[2,1,2,128], index: 5, kind: output, shape index: {1}]
  %6 = xla_tuple %s4, %s5
  %s7 = sld [smem:[#allocation0]]
  $region57: #{_double_conv_nchw.3} parent=0
    _
  %s9 = ssub.s32 1, %s7
  %s10 = scalar_select 0, %s9, %s7
  loop: start=0, step=1, limit=4
  $region2: #{_double_conv_nchw.3} parent=0 // loop_pre_header
    _
  $region3: #{_double_conv_nchw.3} parent=0 // loop_header
    %s12 = sphi 0, %s16
    %p13 = scmp.ge.s32.totalorder %s12, 4
    %s19 = sphi 0, %s31
    %s20 = sphi 0, %s27
    %s21 = sphi 0, %s19
    %s22 = sphi 0, %s20
    %s23 = sphi 0, %s21
    %s24 = sphi 0, %s22
    %s36 = sphi 0, %s38
    %s39 = sphi 0, %s36
    %s40 = sphi 0, %s39
    %s56 = sphi 0, %s40
    %s60 = sphi 0, %s60
    %s62 = sphi 0, %s60
    %s63 = sphi 0, %s62
    %s77 = sphi 0, %s63
    %s81 = sphi 0, %s81
    %s83 = sphi 0, %s81
    %s84 = sphi 0, %s83
    %s98 = sphi 0, %s84
    %s102 = sphi 0, %s102
    %s104 = sphi 0, %s102
    %s105 = sphi 0, %s104
    %s119 = sphi 0, %s105
    %s127 = sphi 0, %s129
    %s130 = sphi 0, %s127
    %s131 = sphi 0, %s130
    %s147 = sphi 0, %s131
    %s155 = sphi 0, %s157
    %s158 = sphi 0, %s155
    %s159 = sphi 0, %s158
    %s175 = sphi 0, %s159
  $region4: #{_double_conv_nchw.3} parent=0 // loop_header_branch
    %15 = sbr.rel (%p13) target = $region8
  $region5: #{_double_conv_nchw.3} parent=0 // loop_body
    %s17 = ssub.s32 %s12, 1
    %s18 = ssub.s32 %s12, 2
    %s25 = sadd.s32 1, %s20
    %p26 = scmp.ge.s32.totalorder %s25, 1
    %s27 = scalar_select %p26, 0, %s25
    %s28 = sadd.s32 1, %s19
    %s29 = scalar_select %p26, %s28, %s19
    %p30 = scmp.ge.s32.totalorder %s29, 2
    %s31 = scalar_select %p30, 0, %s29
    %s32 = ssub.s32 %s19, %s31
    %s33 = ssub.s32 %s20, %s27
    %s34 = sor.u32 %s32, %s33
    %p35 = scmp.eq.s32.totalorder %s34, 0
    %s37 = sadd.s32 %s36, 1
    %s38 = scalar_select %p35, %s36, %s37
    %p41 = pneg %p35
    %p42 = scmp.eq.s32.totalorder %s12, 1
    %p43 = por %p41, %p42
    %p44 = scmp.ne.s32.totalorder %s36, %s39
    %p45 = scmp.eq.s32.totalorder %s12, 0
    %p46 = por %p44, %p45
    %p47 = scmp.ne.s32.totalorder %s36, %s39
    %p48 = scmp.eq.s32.totalorder %s17, 1
    %p49 = por %p47, %p48
    %p50 = scmp.ne.s32.totalorder %s39, %s40
    %p51 = scmp.eq.s32.totalorder %s17, 0
    %p52 = por %p50, %p51
    %p53 = scmp.ne.s32.totalorder %s39, %s40
    %p54 = scmp.eq.s32.totalorder %s18, 1
    %p55 = por %p53, %p54
    %p57 = scmp.ne.s32.totalorder %s40, %s56
    %p58 = scmp.eq.s32.totalorder %s18, 0
    %p59 = por %p57, %p58
    %s61 = sadd.s32 %s60, 1
    %p64 = scmp.eq.s32.totalorder %s12, 1
    %p65 = scmp.ne.s32.totalorder %s60, %s62
    %p66 = scmp.eq.s32.totalorder %s12, 0
    %p67 = por %p65, %p66
    %p68 = scmp.ne.s32.totalorder %s60, %s62
    %p69 = scmp.eq.s32.totalorder %s17, 1
    %p70 = por %p68, %p69
    %p71 = scmp.ne.s32.totalorder %s62, %s63
    %p72 = scmp.eq.s32.totalorder %s17, 0
    %p73 = por %p71, %p72
    %p74 = scmp.ne.s32.totalorder %s62, %s63
    %p75 = scmp.eq.s32.totalorder %s18, 1
    %p76 = por %p74, %p75
    %p78 = scmp.ne.s32.totalorder %s63, %s77
    %p79 = scmp.eq.s32.totalorder %s18, 0
    %p80 = por %p78, %p79
    %s82 = sadd.s32 %s81, 1
    %p85 = scmp.eq.s32.totalorder %s12, 1
    %p86 = scmp.ne.s32.totalorder %s81, %s83
    %p87 = scmp.eq.s32.totalorder %s12, 0
    %p88 = por %p86, %p87
    %p89 = scmp.ne.s32.totalorder %s81, %s83
    %p90 = scmp.eq.s32.totalorder %s17, 1
    %p91 = por %p89, %p90
    %p92 = scmp.ne.s32.totalorder %s83, %s84
    %p93 = scmp.eq.s32.totalorder %s17, 0
    %p94 = por %p92, %p93
    %p95 = scmp.ne.s32.totalorder %s83, %s84
    %p96 = scmp.eq.s32.totalorder %s18, 1
    %p97 = por %p95, %p96
    %p99 = scmp.ne.s32.totalorder %s84, %s98
    %p100 = scmp.eq.s32.totalorder %s18, 0
    %p101 = por %p99, %p100
    %s103 = sadd.s32 %s102, 1
    %p106 = scmp.eq.s32.totalorder %s12, 1
    %p107 = scmp.ne.s32.totalorder %s102, %s104
    %p108 = scmp.eq.s32.totalorder %s12, 0
    %p109 = por %p107, %p108
    %p110 = scmp.ne.s32.totalorder %s102, %s104
    %p111 = scmp.eq.s32.totalorder %s17, 1
    %p112 = por %p110, %p111
    %p113 = scmp.ne.s32.totalorder %s104, %s105
    %p114 = scmp.eq.s32.totalorder %s17, 0
    %p115 = por %p113, %p114
    %p116 = scmp.ne.s32.totalorder %s104, %s105
    %p117 = scmp.eq.s32.totalorder %s18, 1
    %p118 = por %p116, %p117
    %p120 = scmp.ne.s32.totalorder %s105, %s119
    %p121 = scmp.eq.s32.totalorder %s18, 0
    %p122 = por %p120, %p121
    %s123 = ssub.s32 %s19, %s31
    %s124 = ssub.s32 %s20, %s27
    %s125 = sor.u32 %s123, %s124
    %p126 = scmp.eq.s32.totalorder %s125, 0
    %s128 = sadd.s32 %s127, 1
    %s129 = scalar_select %p126, %s127, %s128
    %p132 = pneg %p126
    %p133 = scmp.eq.s32.totalorder %s12, 1
    %p134 = por %p132, %p133
    %p135 = scmp.ne.s32.totalorder %s127, %s130
    %p136 = scmp.eq.s32.totalorder %s12, 0
    %p137 = por %p135, %p136
    %p138 = scmp.ne.s32.totalorder %s127, %s130
    %p139 = scmp.eq.s32.totalorder %s17, 1
    %p140 = por %p138, %p139
    %p141 = scmp.ne.s32.totalorder %s130, %s131
    %p142 = scmp.eq.s32.totalorder %s17, 0
    %p143 = por %p141, %p142
    %p144 = scmp.ne.s32.totalorder %s130, %s131
    %p145 = scmp.eq.s32.totalorder %s18, 1
    %p146 = por %p144, %p145
    %p148 = scmp.ne.s32.totalorder %s131, %s147
    %p149 = scmp.eq.s32.totalorder %s18, 0
    %p150 = por %p148, %p149
    %s151 = ssub.s32 %s19, %s31
    %s152 = ssub.s32 %s20, %s27
    %s153 = sor.u32 %s151, %s152
    %p154 = scmp.eq.s32.totalorder %s153, 0
    %s156 = sadd.s32 %s155, 1
    %s157 = scalar_select %p154, %s155, %s156
    %p160 = pneg %p154
    %p161 = scmp.eq.s32.totalorder %s12, 1
    %p162 = por %p160, %p161
    %p163 = scmp.ne.s32.totalorder %s155, %s158
    %p164 = scmp.eq.s32.totalorder %s12, 0
    %p165 = por %p163, %p164
    %p166 = scmp.ne.s32.totalorder %s155, %s158
    %p167 = scmp.eq.s32.totalorder %s17, 1
    %p168 = por %p166, %p167
    %p169 = scmp.ne.s32.totalorder %s158, %s159
    %p170 = scmp.eq.s32.totalorder %s17, 0
    %p171 = por %p169, %p170
    %p172 = scmp.ne.s32.totalorder %s158, %s159
    %p173 = scmp.eq.s32.totalorder %s18, 1
    %p174 = por %p172, %p173
    %p176 = scmp.ne.s32.totalorder %s159, %s175
    %p177 = scmp.eq.s32.totalorder %s18, 0
    %p178 = por %p176, %p177
    %p179 = scmp.le.s32.totalorder 1, %s12
    %p180 = scmp.lt.s32.totalorder %s12, 3
    %p181 = pnand %p179, %p180
    %p182 = pneg %p181
    // Predicated region
    $region9: #{_double_conv_nchw.3} parent=5 // pred_check
      _
    $region10: #{_double_conv_nchw.3} parent=5 // pred_check_branch
      %184 = sbr.rel (%p181) target = $region12
    $region11: #{_double_conv_nchw.3} parent=5 // pred_region
      %s185 = ssub.s32 %s12, 1
      // Predicated region
      $region13: #{_double_conv_nchw.3} parent=11 // pred_check
        %p186 = pneg %p73
      $region14: #{_double_conv_nchw.3} parent=11 // pred_check_branch
        %188 = sbr.rel (%p186) target = $region16
      $region15: #{_double_conv_nchw.3} parent=11 // pred_region
        _
      $region16: #{_double_conv_nchw.3} parent=11 // pred_fallthru
        _
      // Predicated region
      $region17: #{_double_conv_nchw.3} parent=11 // pred_check
        %p189 = pneg %p94
      $region18: #{_double_conv_nchw.3} parent=11 // pred_check_branch
        %191 = sbr.rel (%p189) target = $region20
      $region19: #{_double_conv_nchw.3} parent=11 // pred_region
        _
      $region20: #{_double_conv_nchw.3} parent=11 // pred_fallthru
        _
      // Predicated region
      $region21: #{_double_conv_nchw.3} parent=11 // pred_check
        %p192 = pneg %p115
      $region22: #{_double_conv_nchw.3} parent=11 // pred_check_branch
        %194 = sbr.rel (%p192) target = $region24
      $region23: #{_double_conv_nchw.3} parent=11 // pred_region
        _
      $region24: #{_double_conv_nchw.3} parent=11 // pred_fallthru
        _
    $region12: #{_double_conv_nchw.3} parent=5 // pred_fallthru
      _
    %p195 = scmp.lt.s32.totalorder %s12, 2
    // Predicated region
    $region25: #{_double_conv_nchw.3} parent=5 // pred_check
      %p196 = pneg %p195
    $region26: #{_double_conv_nchw.3} parent=5 // pred_check_branch
      %198 = sbr.rel (%p196) target = $region28
    $region27: #{_double_conv_nchw.3} parent=5 // pred_region
      // Predicated region
      $region29: #{_double_conv_nchw.3} parent=27 // pred_check
        %p199 = pneg %p46
      $region30: #{_double_conv_nchw.3} parent=27 // pred_check_branch
        %201 = sbr.rel (%p199) target = $region32
      $region31: #{_double_conv_nchw.3} parent=27 // pred_region
        %s202 = smul.u32 18, %s20
        %p203 = scmp.lt.s32.totalorder %s19, 1
        %s204 = scalar_select %p203, %s19, 1
        %p205 = scmp.lt.s32.totalorder %s202, 17
        %s206 = scalar_select %p205, %s202, 17
        %s207 = smul.addr %s206, 3
        %s208 = smul.addr %s204, 54
        %s209 = sadd.s32 %s207, %s208
        %s210 = smul.addr %s209, 4
        %s211 = scalar_lea.vmem %s0, %s210
        %s212 = smul.u32 18, %s20
      $region32: #{_double_conv_nchw.3} parent=27 // pred_fallthru
        _
    $region28: #{_double_conv_nchw.3} parent=5 // pred_fallthru
      _
    %p213 = scmp.le.s32.totalorder 1, %s12
    %p214 = scmp.lt.s32.totalorder %s12, 3
    %p215 = pnand %p213, %p214
    %p216 = pneg %p215
    // Predicated region
    $region33: #{_double_conv_nchw.3} parent=5 // pred_check
      _
    $region34: #{_double_conv_nchw.3} parent=5 // pred_check_branch
      %218 = sbr.rel (%p215) target = $region36
    $region35: #{_double_conv_nchw.3} parent=5 // pred_region
      %s219 = ssub.s32 %s12, 1
      %s220 = smul.u32 18, %s22
      %p221 = scmp.lt.s32.totalorder %s21, 1
      %s222 = scalar_select %p221, %s21, 1
      %p223 = scmp.lt.s32.totalorder %s220, 17
      %s224 = scalar_select %p223, %s220, 17
      %s225 = smul.addr %s224, 3
      %s226 = smul.addr %s222, 54
      %s227 = sadd.s32 %s225, %s226
      %s228 = smul.addr %s227, 4
      %s229 = scalar_lea.vmem %s0, %s228
      %p230 = pneg %p52
      %p231 = pneg %p49
      %p232 = pneg %p73
      %p233 = pneg %p70
      %p234 = pneg %p94
      %p235 = pneg %p91
      %p236 = pneg %p115
      %p237 = pneg %p112
      %p238 = pneg %p143
      %p239 = pneg %p140
      %s240 = smul.u32 16, %s22
      %p241 = scmp.lt.s32.totalorder %s21, 1
      %s242 = scalar_select %p241, %s21, 1
      %p243 = scmp.lt.s32.totalorder %s240, 15
      %s244 = scalar_select %p243, %s240, 15
      %s245 = smul.addr %s244, 2
      %s246 = smul.addr %s242, 32
      %s247 = sadd.s32 %s245, %s246
      %s248 = smul.addr %s247, 4
      %s249 = scalar_lea.vmem %s4, %s248
      %p250 = pneg %p171
      %p251 = pneg %p168
      %p252 = scmp.lt.s32.totalorder %s21, 1
      %s253 = scalar_select %p252, %s21, 1
      %p254 = scmp.lt.s32.totalorder %s22, 0
      %s255 = scalar_select %p254, %s22, 0
      %s256 = sadd.s32 %s255, %s253
      %s257 = smul.addr %s256, 2
      %s258 = scalar_lea.vmem %s5, %s257
      %s259 = smul.u32 18, %s22
      %p260 = scmp.lt.s32.totalorder %s21, 1
      %s261 = scalar_select %p260, %s21, 1
      %p262 = scmp.lt.s32.totalorder %s259, 17
      %s263 = scalar_select %p262, %s259, 17
      %s264 = smul.addr %s263, 3
      %s265 = smul.addr %s261, 54
      %s266 = sadd.s32 %s264, %s265
      %s267 = smul.addr %s266, 4
      %s268 = scalar_lea.vmem %s0, %s267
      %s269 = smul.u32 18, %s22
      %s270 = smul.u32 16, %s22
      %p271 = scmp.lt.s32.totalorder %s21, 1
      %s272 = scalar_select %p271, %s21, 1
      %p273 = scmp.lt.s32.totalorder %s270, 15
      %s274 = scalar_select %p273, %s270, 15
      %s275 = smul.addr %s274, 2
      %s276 = smul.addr %s272, 32
      %s277 = sadd.s32 %s275, %s276
      %s278 = smul.addr %s277, 4
      %s279 = scalar_lea.vmem %s4, %s278
      %s280 = smul.u32 16, %s22
      %p281 = scmp.lt.s32.totalorder %s21, 1
      %s282 = scalar_select %p281, %s21, 1
      %p283 = scmp.lt.s32.totalorder %s22, 0
      %s284 = scalar_select %p283, %s22, 0
      %s285 = sadd.s32 %s284, %s282
      %s286 = smul.addr %s285, 2
      %s287 = scalar_lea.vmem %s5, %s286
      %v288 = vld [vmem:[%s268] sm:$0xf]
      %v289 = vld [vmem:[%s268 + $0x4] sm:$0xf]
      %v290 = vld [vmem:[%s268 + $0x8] sm:$0x1]
      %v291 = vld [vmem:[%s268 + $0xc] sm:$0xf]
      %v292 = vld [vmem:[%s268 + $0x10] sm:$0xf]
      %v293 = vld [vmem:[%s268 + $0x14] sm:$0x1]
      %v294 = vld [vmem:[%s268 + $0x18] sm:$0xf]
      %v295 = vld [vmem:[%s268 + $0x1c] sm:$0xf]
      %v296 = vld [vmem:[%s268 + $0x20] sm:$0x1]
      %v297 = vld [vmem:[%s268 + $0x24] sm:$0xf]
      %v298 = vld [vmem:[%s268 + $0x28] sm:$0xf]
      %v299 = vld [vmem:[%s268 + $0x2c] sm:$0x1]
      %v300 = vld [vmem:[%s268 + $0x30] sm:$0xf]
      %v301 = vld [vmem:[%s268 + $0x34] sm:$0xf]
      %v302 = vld [vmem:[%s268 + $0x38] sm:$0x1]
      %v303 = vld [vmem:[%s268 + $0x3c] sm:$0xf]
      %v304 = vld [vmem:[%s268 + $0x40] sm:$0xf]
      %v305 = vld [vmem:[%s268 + $0x44] sm:$0x1]
      %v306 = vld [vmem:[%s268 + $0x48] sm:$0xf]
      %v307 = vld [vmem:[%s268 + $0x4c] sm:$0xf]
      %v308 = vld [vmem:[%s268 + $0x50] sm:$0x1]
      %v309 = vld [vmem:[%s268 + $0x54] sm:$0xf]
      %v310 = vld [vmem:[%s268 + $0x58] sm:$0xf]
      %v311 = vld [vmem:[%s268 + $0x5c] sm:$0x1]
      %v312 = vld [vmem:[%s268 + $0x60] sm:$0xf]
      %v313 = vld [vmem:[%s268 + $0x64] sm:$0xf]
      %v314 = vld [vmem:[%s268 + $0x68] sm:$0x1]
      %v315 = vld [vmem:[%s268 + $0x6c] sm:$0xf]
      %v316 = vld [vmem:[%s268 + $0x70] sm:$0xf]
      %v317 = vld [vmem:[%s268 + $0x74] sm:$0x1]
      %v318 = vld [vmem:[%s268 + $0x78] sm:$0xf]
      %v319 = vld [vmem:[%s268 + $0x7c] sm:$0xf]
      %v320 = vld [vmem:[%s268 + $0x80] sm:$0x1]
      %v321 = vld [vmem:[%s268 + $0x84] sm:$0xf]
      %v322 = vld [vmem:[%s268 + $0x88] sm:$0xf]
      %v323 = vld [vmem:[%s268 + $0x8c] sm:$0x1]
      %v324 = vld [vmem:[%s268 + $0x90] sm:$0xf]
      %v325 = vld [vmem:[%s268 + $0x94] sm:$0xf]
      %v326 = vld [vmem:[%s268 + $0x98] sm:$0x1]
      %v327 = vld [vmem:[%s268 + $0x9c] sm:$0xf]
      %v328 = vld [vmem:[%s268 + $0xa0] sm:$0xf]
      %v329 = vld [vmem:[%s268 + $0xa4] sm:$0x1]
      %v330 = vld [vmem:[%s268 + $0xa8] sm:$0xf]
      %v331 = vld [vmem:[%s268 + $0xac] sm:$0xf]
      %v332 = vld [vmem:[%s268 + $0xb0] sm:$0x1]
      %v333 = vld [vmem:[%s268 + $0xb4] sm:$0xf]
      %v334 = vld [vmem:[%s268 + $0xb8] sm:$0xf]
      %v335 = vld [vmem:[%s268 + $0xbc] sm:$0x1]
      %v336 = vld [vmem:[%s268 + $0xc0] sm:$0xf]
      %v337 = vld [vmem:[%s268 + $0xc4] sm:$0xf]
      %v338 = vld [vmem:[%s268 + $0xc8] sm:$0x1]
      %v339 = vld [vmem:[%s268 + $0xcc] sm:$0xf]
      %v340 = vld [vmem:[%s268 + $0xd0] sm:$0xf]
      %v341 = vld [vmem:[%s268 + $0xd4] sm:$0x1]
      %v342 = vunpack.c.l.bf16 %v288
      %v343 = vunpack.c.l.bf16 %v289
      %v344 = vunpack.c.l.bf16 %v290
      %v345 = vunpack.c.l.bf16 %v291
      %v346 = vunpack.c.l.bf16 %v292
      %v347 = vunpack.c.l.bf16 %v293
      %v348 = vunpack.c.l.bf16 %v294
      %v349 = vunpack.c.l.bf16 %v295
      %v350 = vunpack.c.l.bf16 %v296
      %v351 = vunpack.c.l.bf16 %v297
      %v352 = vunpack.c.l.bf16 %v298
      %v353 = vunpack.c.l.bf16 %v299
      %v354 = vunpack.c.l.bf16 %v300
      %v355 = vunpack.c.l.bf16 %v301
      %v356 = vunpack.c.l.bf16 %v302
      %v357 = vunpack.c.l.bf16 %v303
      %v358 = vunpack.c.l.bf16 %v304
      %v359 = vunpack.c.l.bf16 %v305
      %v360 = vunpack.c.l.bf16 %v306
      %v361 = vunpack.c.l.bf16 %v307
      %v362 = vunpack.c.l.bf16 %v308
      %v363 = vunpack.c.l.bf16 %v309
      %v364 = vunpack.c.l.bf16 %v310
      %v365 = vunpack.c.l.bf16 %v311
      %v366 = vunpack.c.l.bf16 %v312
      %v367 = vunpack.c.l.bf16 %v313
      %v368 = vunpack.c.l.bf16 %v314
      %v369 = vunpack.c.l.bf16 %v315
      %v370 = vunpack.c.l.bf16 %v316
      %v371 = vunpack.c.l.bf16 %v317
      %v372 = vunpack.c.l.bf16 %v318
      %v373 = vunpack.c.l.bf16 %v319
      %v374 = vunpack.c.l.bf16 %v320
      %v375 = vunpack.c.l.bf16 %v321
      %v376 = vunpack.c.l.bf16 %v322
      %v377 = vunpack.c.l.bf16 %v323
      %v378 = vunpack.c.l.bf16 %v324
      %v379 = vunpack.c.l.bf16 %v325
      %v380 = vunpack.c.l.bf16 %v326
      %v381 = vunpack.c.l.bf16 %v327
      %v382 = vunpack.c.l.bf16 %v328
      %v383 = vunpack.c.l.bf16 %v329
      %v384 = vunpack.c.l.bf16 %v330
      %v385 = vunpack.c.l.bf16 %v331
      %v386 = vunpack.c.l.bf16 %v332
      %v387 = vunpack.c.l.bf16 %v333
      %v388 = vunpack.c.l.bf16 %v334
      %v389 = vunpack.c.l.bf16 %v335
      %v390 = vunpack.c.l.bf16 %v336
      %v391 = vunpack.c.l.bf16 %v337
      %v392 = vunpack.c.l.bf16 %v338
      %v393 = vunpack.c.l.bf16 %v339
      %v394 = vunpack.c.l.bf16 %v340
      %v395 = vunpack.c.l.bf16 %v341
      %v396 = vld [vmem:[%s2] sm:$0x1]
      %v398 = vperm.slane %v396, 0
      %v400 = vmul.f32 %v342, %v398
      %v401 = vmul.f32 %v343, %v398
      %v402 = vmul.f32 %v344, %v398
      %v403 = vmul.f32 %v345, %v398
      %v404 = vmul.f32 %v346, %v398
      %v405 = vmul.f32 %v347, %v398
      %v406 = vmul.f32 %v348, %v398
      %v407 = vmul.f32 %v349, %v398
      %v408 = vmul.f32 %v350, %v398
      %v409 = vmul.f32 %v351, %v398
      %v410 = vmul.f32 %v352, %v398
      %v411 = vmul.f32 %v353, %v398
      %v412 = vmul.f32 %v354, %v398
      %v413 = vmul.f32 %v355, %v398
      %v414 = vmul.f32 %v356, %v398
      %v415 = vmul.f32 %v357, %v398
      %v416 = vmul.f32 %v358, %v398
      %v417 = vmul.f32 %v359, %v398
      %v418 = vmul.f32 %v360, %v398
      %v419 = vmul.f32 %v361, %v398
      %v420 = vmul.f32 %v362, %v398
      %v421 = vmul.f32 %v363, %v398
      %v422 = vmul.f32 %v364, %v398
      %v423 = vmul.f32 %v365, %v398
      %v424 = vmul.f32 %v366, %v398
      %v425 = vmul.f32 %v367, %v398
      %v426 = vmul.f32 %v368, %v398
      %v427 = vmul.f32 %v369, %v398
      %v428 = vmul.f32 %v370, %v398
      %v429 = vmul.f32 %v371, %v398
      %v430 = vmul.f32 %v372, %v398
      %v431 = vmul.f32 %v373, %v398
      %v432 = vmul.f32 %v374, %v398
      %v433 = vmul.f32 %v375, %v398
      %v434 = vmul.f32 %v376, %v398
      %v435 = vmul.f32 %v377, %v398
      %v436 = vmul.f32 %v378, %v398
      %v437 = vmul.f32 %v379, %v398
      %v438 = vmul.f32 %v380, %v398
      %v439 = vmul.f32 %v381, %v398
      %v440 = vmul.f32 %v382, %v398
      %v441 = vmul.f32 %v383, %v398
      %v442 = vmul.f32 %v384, %v398
      %v443 = vmul.f32 %v385, %v398
      %v444 = vmul.f32 %v386, %v398
      %v445 = vmul.f32 %v387, %v398
      %v446 = vmul.f32 %v388, %v398
      %v447 = vmul.f32 %v389, %v398
      %v448 = vmul.f32 %v390, %v398
      %v449 = vmul.f32 %v391, %v398
      %v450 = vmul.f32 %v392, %v398
      %v451 = vmul.f32 %v393, %v398
      %v452 = vmul.f32 %v394, %v398
      %v453 = vmul.f32 %v395, %v398
      %v454 = vld [vmem:[%s3] sm:$0x1]
      %v456 = vperm.slane %v454, 0
      %v458 = vadd.f32 %v400, %v456
      %v459 = vadd.f32 %v401, %v456
      %v460 = vadd.f32 %v402, %v456
      %v461 = vadd.f32 %v403, %v456
      %v462 = vadd.f32 %v404, %v456
      %v463 = vadd.f32 %v405, %v456
      %v464 = vadd.f32 %v406, %v456
      %v465 = vadd.f32 %v407, %v456
      %v466 = vadd.f32 %v408, %v456
      %v467 = vadd.f32 %v409, %v456
      %v468 = vadd.f32 %v410, %v456
      %v469 = vadd.f32 %v411, %v456
      %v470 = vadd.f32 %v412, %v456
      %v471 = vadd.f32 %v413, %v456
      %v472 = vadd.f32 %v414, %v456
      %v473 = vadd.f32 %v415, %v456
      %v474 = vadd.f32 %v416, %v456
      %v475 = vadd.f32 %v417, %v456
      %v476 = vadd.f32 %v418, %v456
      %v477 = vadd.f32 %v419, %v456
      %v478 = vadd.f32 %v420, %v456
      %v479 = vadd.f32 %v421, %v456
      %v480 = vadd.f32 %v422, %v456
      %v481 = vadd.f32 %v423, %v456
      %v482 = vadd.f32 %v424, %v456
      %v483 = vadd.f32 %v425, %v456
      %v484 = vadd.f32 %v426, %v456
      %v485 = vadd.f32 %v427, %v456
      %v486 = vadd.f32 %v428, %v456
      %v487 = vadd.f32 %v429, %v456
      %v488 = vadd.f32 %v430, %v456
      %v489 = vadd.f32 %v431, %v456
      %v490 = vadd.f32 %v432, %v456
      %v491 = vadd.f32 %v433, %v456
      %v492 = vadd.f32 %v434, %v456
      %v493 = vadd.f32 %v435, %v456
      %v494 = vadd.f32 %v436, %v456
      %v495 = vadd.f32 %v437, %v456
      %v496 = vadd.f32 %v438, %v456
      %v497 = vadd.f32 %v439, %v456
      %v498 = vadd.f32 %v440, %v456
      %v499 = vadd.f32 %v441, %v456
      %v500 = vadd.f32 %v442, %v456
      %v501 = vadd.f32 %v443, %v456
      %v502 = vadd.f32 %v444, %v456
      %v503 = vadd.f32 %v445, %v456
      %v504 = vadd.f32 %v446, %v456
      %v505 = vadd.f32 %v447, %v456
      %v506 = vadd.f32 %v448, %v456
      %v507 = vadd.f32 %v449, %v456
      %v508 = vadd.f32 %v450, %v456
      %v509 = vadd.f32 %v451, %v456
      %v510 = vadd.f32 %v452, %v456
      %v511 = vadd.f32 %v453, %v456
      %vm512 = vcmp.ge.f32.partialorder %v458, 0.0
      %vm513 = vcmp.ge.f32.partialorder %v459, 0.0
      %vm514 = vcmp.ge.f32.partialorder %v460, 0.0
      %vm515 = vcmp.ge.f32.partialorder %v461, 0.0
      %vm516 = vcmp.ge.f32.partialorder %v462, 0.0
      %vm517 = vcmp.ge.f32.partialorder %v463, 0.0
      %vm518 = vcmp.ge.f32.partialorder %v464, 0.0
      %vm519 = vcmp.ge.f32.partialorder %v465, 0.0
      %vm520 = vcmp.ge.f32.partialorder %v466, 0.0
      %vm521 = vcmp.ge.f32.partialorder %v467, 0.0
      %vm522 = vcmp.ge.f32.partialorder %v468, 0.0
      %vm523 = vcmp.ge.f32.partialorder %v469, 0.0
      %vm524 = vcmp.ge.f32.partialorder %v470, 0.0
      %vm525 = vcmp.ge.f32.partialorder %v471, 0.0
      %vm526 = vcmp.ge.f32.partialorder %v472, 0.0
      %vm527 = vcmp.ge.f32.partialorder %v473, 0.0
      %vm528 = vcmp.ge.f32.partialorder %v474, 0.0
      %vm529 = vcmp.ge.f32.partialorder %v475, 0.0
      %vm530 = vcmp.ge.f32.partialorder %v476, 0.0
      %vm531 = vcmp.ge.f32.partialorder %v477, 0.0
      %vm532 = vcmp.ge.f32.partialorder %v478, 0.0
      %vm533 = vcmp.ge.f32.partialorder %v479, 0.0
      %vm534 = vcmp.ge.f32.partialorder %v480, 0.0
      %vm535 = vcmp.ge.f32.partialorder %v481, 0.0
      %vm536 = vcmp.ge.f32.partialorder %v482, 0.0
      %vm537 = vcmp.ge.f32.partialorder %v483, 0.0
      %vm538 = vcmp.ge.f32.partialorder %v484, 0.0
      %vm539 = vcmp.ge.f32.partialorder %v485, 0.0
      %vm540 = vcmp.ge.f32.partialorder %v486, 0.0
      %vm541 = vcmp.ge.f32.partialorder %v487, 0.0
      %vm542 = vcmp.ge.f32.partialorder %v488, 0.0
      %vm543 = vcmp.ge.f32.partialorder %v489, 0.0
      %vm544 = vcmp.ge.f32.partialorder %v490, 0.0
      %vm545 = vcmp.ge.f32.partialorder %v491, 0.0
      %vm546 = vcmp.ge.f32.partialorder %v492, 0.0
      %vm547 = vcmp.ge.f32.partialorder %v493, 0.0
      %vm548 = vcmp.ge.f32.partialorder %v494, 0.0
      %vm549 = vcmp.ge.f32.partialorder %v495, 0.0
      %vm550 = vcmp.ge.f32.partialorder %v496, 0.0
      %vm551 = vcmp.ge.f32.partialorder %v497, 0.0
      %vm552 = vcmp.ge.f32.partialorder %v498, 0.0
      %vm553 = vcmp.ge.f32.partialorder %v499, 0.0
      %vm554 = vcmp.ge.f32.partialorder %v500, 0.0
      %vm555 = vcmp.ge.f32.partialorder %v501, 0.0
      %vm556 = vcmp.ge.f32.partialorder %v502, 0.0
      %vm557 = vcmp.ge.f32.partialorder %v503, 0.0
      %vm558 = vcmp.ge.f32.partialorder %v504, 0.0
      %vm559 = vcmp.ge.f32.partialorder %v505, 0.0
      %vm560 = vcmp.ge.f32.partialorder %v506, 0.0
      %vm561 = vcmp.ge.f32.partialorder %v507, 0.0
      %vm562 = vcmp.ge.f32.partialorder %v508, 0.0
      %vm563 = vcmp.ge.f32.partialorder %v509, 0.0
      %vm564 = vcmp.ge.f32.partialorder %v510, 0.0
      %vm565 = vcmp.ge.f32.partialorder %v511, 0.0
      %v566 = vmul.f32 %v458, 0.2
      %v567 = vmul.f32 %v459, 0.2
      %v568 = vmul.f32 %v460, 0.2
      %v569 = vmul.f32 %v461, 0.2
      %v570 = vmul.f32 %v462, 0.2
      %v571 = vmul.f32 %v463, 0.2
      %v572 = vmul.f32 %v464, 0.2
      %v573 = vmul.f32 %v465, 0.2
      %v574 = vmul.f32 %v466, 0.2
      %v575 = vmul.f32 %v467, 0.2
      %v576 = vmul.f32 %v468, 0.2
      %v577 = vmul.f32 %v469, 0.2
      %v578 = vmul.f32 %v470, 0.2
      %v579 = vmul.f32 %v471, 0.2
      %v580 = vmul.f32 %v472, 0.2
      %v581 = vmul.f32 %v473, 0.2
      %v582 = vmul.f32 %v474, 0.2
      %v583 = vmul.f32 %v475, 0.2
      %v584 = vmul.f32 %v476, 0.2
      %v585 = vmul.f32 %v477, 0.2
      %v586 = vmul.f32 %v478, 0.2
      %v587 = vmul.f32 %v479, 0.2
      %v588 = vmul.f32 %v480, 0.2
      %v589 = vmul.f32 %v481, 0.2
      %v590 = vmul.f32 %v482, 0.2
      %v591 = vmul.f32 %v483, 0.2
      %v592 = vmul.f32 %v484, 0.2
      %v593 = vmul.f32 %v485, 0.2
      %v594 = vmul.f32 %v486, 0.2
      %v595 = vmul.f32 %v487, 0.2
      %v596 = vmul.f32 %v488, 0.2
      %v597 = vmul.f32 %v489, 0.2
      %v598 = vmul.f32 %v490, 0.2
      %v599 = vmul.f32 %v491, 0.2
      %v600 = vmul.f32 %v492, 0.2
      %v601 = vmul.f32 %v493, 0.2
      %v602 = vmul.f32 %v494, 0.2
      %v603 = vmul.f32 %v495, 0.2
      %v604 = vmul.f32 %v496, 0.2
      %v605 = vmul.f32 %v497, 0.2
      %v606 = vmul.f32 %v498, 0.2
      %v607 = vmul.f32 %v499, 0.2
      %v608 = vmul.f32 %v500, 0.2
      %v609 = vmul.f32 %v501, 0.2
      %v610 = vmul.f32 %v502, 0.2
      %v611 = vmul.f32 %v503, 0.2
      %v612 = vmul.f32 %v504, 0.2
      %v613 = vmul.f32 %v505, 0.2
      %v614 = vmul.f32 %v506, 0.2
      %v615 = vmul.f32 %v507, 0.2
      %v616 = vmul.f32 %v508, 0.2
      %v617 = vmul.f32 %v509, 0.2
      %v618 = vmul.f32 %v510, 0.2
      %v619 = vmul.f32 %v511, 0.2
      %v620 = vsel %vm512, %v458, %v566
      %v621 = vsel %vm513, %v459, %v567
      %v622 = vsel %vm514, %v460, %v568
      %v623 = vsel %vm515, %v461, %v569
      %v624 = vsel %vm516, %v462, %v570
      %v625 = vsel %vm517, %v463, %v571
      %v626 = vsel %vm518, %v464, %v572
      %v627 = vsel %vm519, %v465, %v573
      %v628 = vsel %vm520, %v466, %v574
      %v629 = vsel %vm521, %v467, %v575
      %v630 = vsel %vm522, %v468, %v576
      %v631 = vsel %vm523, %v469, %v577
      %v632 = vsel %vm524, %v470, %v578
      %v633 = vsel %vm525, %v471, %v579
      %v634 = vsel %vm526, %v472, %v580
      %v635 = vsel %vm527, %v473, %v581
      %v636 = vsel %vm528, %v474, %v582
      %v637 = vsel %vm529, %v475, %v583
      %v638 = vsel %vm530, %v476, %v584
      %v639 = vsel %vm531, %v477, %v585
      %v640 = vsel %vm532, %v478, %v586
      %v641 = vsel %vm533, %v479, %v587
      %v642 = vsel %vm534, %v480, %v588
      %v643 = vsel %vm535, %v481, %v589
      %v644 = vsel %vm536, %v482, %v590
      %v645 = vsel %vm537, %v483, %v591
      %v646 = vsel %vm538, %v484, %v592
      %v647 = vsel %vm539, %v485, %v593
      %v648 = vsel %vm540, %v486, %v594
      %v649 = vsel %vm541, %v487, %v595
      %v650 = vsel %vm542, %v488, %v596
      %v651 = vsel %vm543, %v489, %v597
      %v652 = vsel %vm544, %v490, %v598
      %v653 = vsel %vm545, %v491, %v599
      %v654 = vsel %vm546, %v492, %v600
      %v655 = vsel %vm547, %v493, %v601
      %v656 = vsel %vm548, %v494, %v602
      %v657 = vsel %vm549, %v495, %v603
      %v658 = vsel %vm550, %v496, %v604
      %v659 = vsel %vm551, %v497, %v605
      %v660 = vsel %vm552, %v498, %v606
      %v661 = vsel %vm553, %v499, %v607
      %v662 = vsel %vm554, %v500, %v608
      %v663 = vsel %vm555, %v501, %v609
      %v664 = vsel %vm556, %v502, %v610
      %v665 = vsel %vm557, %v503, %v611
      %v666 = vsel %vm558, %v504, %v612
      %v667 = vsel %vm559, %v505, %v613
      %v668 = vsel %vm560, %v506, %v614
      %v669 = vsel %vm561, %v507, %v615
      %v670 = vsel %vm562, %v508, %v616
      %v671 = vsel %vm563, %v509, %v617
      %v672 = vsel %vm564, %v510, %v618
      %v673 = vsel %vm565, %v511, %v619
      %s674 = smul.u32 %s22, 16
      %v675 = vstv %s674
      %v676 = vadd.s32 %v675, 1
      %v677 = vadd.s32 %v675, 2
      %v678 = vadd.s32 %v675, 3
      %v679 = vadd.s32 %v675, 4
      %v680 = vadd.s32 %v675, 5
      %v681 = vadd.s32 %v675, 6
      %v682 = vadd.s32 %v675, 7
      %v683 = vadd.s32 %v675, 8
      %v684 = vadd.s32 %v675, 9
      %v685 = vadd.s32 %v675, 10
      %v686 = vadd.s32 %v675, 11
      %v687 = vadd.s32 %v675, 12
      %v688 = vadd.s32 %v675, 13
      %v689 = vadd.s32 %v675, 14
      %v690 = vadd.s32 %v675, 15
      %v691 = vadd.s32 %v675, 16
      %v692 = vadd.s32 %v675, 17
      %v693 = vlaneseq
      %v694 = vshrl.u32 %v693, 7
      %v695 = vadd.s32 %v694, 8
      %v696 = vadd.s32 %v694, 16
      %vm697 = vcmp.eq.s32.totalorder %v694, 0
      %vm698 = vcmp.eq.s32.totalorder %v695, 0
      %vm699 = vcmp.eq.s32.totalorder %v696, 0
      %vm700 = vcmp.eq.s32.totalorder %v694, 17
      %vm701 = vcmp.eq.s32.totalorder %v695, 17
      %vm702 = vcmp.eq.s32.totalorder %v696, 17
      %vm703 = vmor %vm697, %vm700
      %vm704 = vmor %vm698, %vm701
      %vm705 = vmor %vm699, %vm702
      %vm706 = vcmp.eq.s32.totalorder %v675, 0
      %vm707 = vcmp.eq.s32.totalorder %v676, 0
      %vm708 = vcmp.eq.s32.totalorder %v677, 0
      %vm709 = vcmp.eq.s32.totalorder %v678, 0
      %vm710 = vcmp.eq.s32.totalorder %v679, 0
      %vm711 = vcmp.eq.s32.totalorder %v680, 0
      %vm712 = vcmp.eq.s32.totalorder %v681, 0
      %vm713 = vcmp.eq.s32.totalorder %v682, 0
      %vm714 = vcmp.eq.s32.totalorder %v683, 0
      %vm715 = vcmp.eq.s32.totalorder %v684, 0
      %vm716 = vcmp.eq.s32.totalorder %v685, 0
      %vm717 = vcmp.eq.s32.totalorder %v686, 0
      %vm718 = vcmp.eq.s32.totalorder %v687, 0
      %vm719 = vcmp.eq.s32.totalorder %v688, 0
      %vm720 = vcmp.eq.s32.totalorder %v689, 0
      %vm721 = vcmp.eq.s32.totalorder %v690, 0
      %vm722 = vcmp.eq.s32.totalorder %v691, 0
      %vm723 = vcmp.eq.s32.totalorder %v692, 0
      %vm724 = vmor %vm703, %vm706
      %vm725 = vmor %vm704, %vm706
      %vm726 = vmor %vm705, %vm706
      %vm727 = vmor %vm703, %vm707
      %vm728 = vmor %vm704, %vm707
      %vm729 = vmor %vm705, %vm707
      %vm730 = vmor %vm703, %vm708
      %vm731 = vmor %vm704, %vm708
      %vm732 = vmor %vm705, %vm708
      %vm733 = vmor %vm703, %vm709
      %vm734 = vmor %vm704, %vm709
      %vm735 = vmor %vm705, %vm709
      %vm736 = vmor %vm703, %vm710
      %vm737 = vmor %vm704, %vm710
      %vm738 = vmor %vm705, %vm710
      %vm739 = vmor %vm703, %vm711
      %vm740 = vmor %vm704, %vm711
      %vm741 = vmor %vm705, %vm711
      %vm742 = vmor %vm703, %vm712
      %vm743 = vmor %vm704, %vm712
      %vm744 = vmor %vm705, %vm712
      %vm745 = vmor %vm703, %vm713
      %vm746 = vmor %vm704, %vm713
      %vm747 = vmor %vm705, %vm713
      %vm748 = vmor %vm703, %vm714
      %vm749 = vmor %vm704, %vm714
      %vm750 = vmor %vm705, %vm714
      %vm751 = vmor %vm703, %vm715
      %vm752 = vmor %vm704, %vm715
      %vm753 = vmor %vm705, %vm715
      %vm754 = vmor %vm703, %vm716
      %vm755 = vmor %vm704, %vm716
      %vm756 = vmor %vm705, %vm716
      %vm757 = vmor %vm703, %vm717
      %vm758 = vmor %vm704, %vm717
      %vm759 = vmor %vm705, %vm717
      %vm760 = vmor %vm703, %vm718
      %vm761 = vmor %vm704, %vm718
      %vm762 = vmor %vm705, %vm718
      %vm763 = vmor %vm703, %vm719
      %vm764 = vmor %vm704, %vm719
      %vm765 = vmor %vm705, %vm719
      %vm766 = vmor %vm703, %vm720
      %vm767 = vmor %vm704, %vm720
      %vm768 = vmor %vm705, %vm720
      %vm769 = vmor %vm703, %vm721
      %vm770 = vmor %vm704, %vm721
      %vm771 = vmor %vm705, %vm721
      %vm772 = vmor %vm703, %vm722
      %vm773 = vmor %vm704, %vm722
      %vm774 = vmor %vm705, %vm722
      %vm775 = vmor %vm703, %vm723
      %vm776 = vmor %vm704, %vm723
      %vm777 = vmor %vm705, %vm723
      %vm778 = vcmp.ge.s32.totalorder %v675, 17
      %vm779 = vcmp.ge.s32.totalorder %v676, 17
      %vm780 = vcmp.ge.s32.totalorder %v677, 17
      %vm781 = vcmp.ge.s32.totalorder %v678, 17
      %vm782 = vcmp.ge.s32.totalorder %v679, 17
      %vm783 = vcmp.ge.s32.totalorder %v680, 17
      %vm784 = vcmp.ge.s32.totalorder %v681, 17
      %vm785 = vcmp.ge.s32.totalorder %v682, 17
      %vm786 = vcmp.ge.s32.totalorder %v683, 17
      %vm787 = vcmp.ge.s32.totalorder %v684, 17
      %vm788 = vcmp.ge.s32.totalorder %v685, 17
      %vm789 = vcmp.ge.s32.totalorder %v686, 17
      %vm790 = vcmp.ge.s32.totalorder %v687, 17
      %vm791 = vcmp.ge.s32.totalorder %v688, 17
      %vm792 = vcmp.ge.s32.totalorder %v689, 17
      %vm793 = vcmp.ge.s32.totalorder %v690, 17
      %vm794 = vcmp.ge.s32.totalorder %v691, 17
      %vm795 = vcmp.ge.s32.totalorder %v692, 17
      %vm796 = vmor %vm724, %vm778
      %vm797 = vmor %vm725, %vm778
      %vm798 = vmor %vm726, %vm778
      %vm799 = vmor %vm727, %vm779
      %vm800 = vmor %vm728, %vm779
      %vm801 = vmor %vm729, %vm779
      %vm802 = vmor %vm730, %vm780
      %vm803 = vmor %vm731, %vm780
      %vm804 = vmor %vm732, %vm780
      %vm805 = vmor %vm733, %vm781
      %vm806 = vmor %vm734, %vm781
      %vm807 = vmor %vm735, %vm781
      %vm808 = vmor %vm736, %vm782
      %vm809 = vmor %vm737, %vm782
      %vm810 = vmor %vm738, %vm782
      %vm811 = vmor %vm739, %vm783
      %vm812 = vmor %vm740, %vm783
      %vm813 = vmor %vm741, %vm783
      %vm814 = vmor %vm742, %vm784
      %vm815 = vmor %vm743, %vm784
      %vm816 = vmor %vm744, %vm784
      %vm817 = vmor %vm745, %vm785
      %vm818 = vmor %vm746, %vm785
      %vm819 = vmor %vm747, %vm785
      %vm820 = vmor %vm748, %vm786
      %vm821 = vmor %vm749, %vm786
      %vm822 = vmor %vm750, %vm786
      %vm823 = vmor %vm751, %vm787
      %vm824 = vmor %vm752, %vm787
      %vm825 = vmor %vm753, %vm787
      %vm826 = vmor %vm754, %vm788
      %vm827 = vmor %vm755, %vm788
      %vm828 = vmor %vm756, %vm788
      %vm829 = vmor %vm757, %vm789
      %vm830 = vmor %vm758, %vm789
      %vm831 = vmor %vm759, %vm789
      %vm832 = vmor %vm760, %vm790
      %vm833 = vmor %vm761, %vm790
      %vm834 = vmor %vm762, %vm790
      %vm835 = vmor %vm763, %vm791
      %vm836 = vmor %vm764, %vm791
      %vm837 = vmor %vm765, %vm791
      %vm838 = vmor %vm766, %vm792
      %vm839 = vmor %vm767, %vm792
      %vm840 = vmor %vm768, %vm792
      %vm841 = vmor %vm769, %vm793
      %vm842 = vmor %vm770, %vm793
      %vm843 = vmor %vm771, %vm793
      %vm844 = vmor %vm772, %vm794
      %vm845 = vmor %vm773, %vm794
      %vm846 = vmor %vm774, %vm794
      %vm847 = vmor %vm775, %vm795
      %vm848 = vmor %vm776, %vm795
      %vm849 = vmor %vm777, %vm795
      %v850 = vsel %vm796, 1, 0
      %v851 = vsel %vm797, 1, 0
      %v852 = vsel %vm798, 1, 0
      %v853 = vsel %vm799, 1, 0
      %v854 = vsel %vm800, 1, 0
      %v855 = vsel %vm801, 1, 0
      %v856 = vsel %vm802, 1, 0
      %v857 = vsel %vm803, 1, 0
      %v858 = vsel %vm804, 1, 0
      %v859 = vsel %vm805, 1, 0
      %v860 = vsel %vm806, 1, 0
      %v861 = vsel %vm807, 1, 0
      %v862 = vsel %vm808, 1, 0
      %v863 = vsel %vm809, 1, 0
      %v864 = vsel %vm810, 1, 0
      %v865 = vsel %vm811, 1, 0
      %v866 = vsel %vm812, 1, 0
      %v867 = vsel %vm813, 1, 0
      %v868 = vsel %vm814, 1, 0
      %v869 = vsel %vm815, 1, 0
      %v870 = vsel %vm816, 1, 0
      %v871 = vsel %vm817, 1, 0
      %v872 = vsel %vm818, 1, 0
      %v873 = vsel %vm819, 1, 0
      %v874 = vsel %vm820, 1, 0
      %v875 = vsel %vm821, 1, 0
      %v876 = vsel %vm822, 1, 0
      %v877 = vsel %vm823, 1, 0
      %v878 = vsel %vm824, 1, 0
      %v879 = vsel %vm825, 1, 0
      %v880 = vsel %vm826, 1, 0
      %v881 = vsel %vm827, 1, 0
      %v882 = vsel %vm828, 1, 0
      %v883 = vsel %vm829, 1, 0
      %v884 = vsel %vm830, 1, 0
      %v885 = vsel %vm831, 1, 0
      %v886 = vsel %vm832, 1, 0
      %v887 = vsel %vm833, 1, 0
      %v888 = vsel %vm834, 1, 0
      %v889 = vsel %vm835, 1, 0
      %v890 = vsel %vm836, 1, 0
      %v891 = vsel %vm837, 1, 0
      %v892 = vsel %vm838, 1, 0
      %v893 = vsel %vm839, 1, 0
      %v894 = vsel %vm840, 1, 0
      %v895 = vsel %vm841, 1, 0
      %v896 = vsel %vm842, 1, 0
      %v897 = vsel %vm843, 1, 0
      %v898 = vsel %vm844, 1, 0
      %v899 = vsel %vm845, 1, 0
      %v900 = vsel %vm846, 1, 0
      %v901 = vsel %vm847, 1, 0
      %v902 = vsel %vm848, 1, 0
      %v903 = vsel %vm849, 1, 0
      %vm904 = vcmp.eq.s32.totalorder %v850, 1
      %vm905 = vcmp.eq.s32.totalorder %v851, 1
      %vm906 = vcmp.eq.s32.totalorder %v852, 1
      %vm907 = vcmp.eq.s32.totalorder %v853, 1
      %vm908 = vcmp.eq.s32.totalorder %v854, 1
      %vm909 = vcmp.eq.s32.totalorder %v855, 1
      %vm910 = vcmp.eq.s32.totalorder %v856, 1
      %vm911 = vcmp.eq.s32.totalorder %v857, 1
      %vm912 = vcmp.eq.s32.totalorder %v858, 1
      %vm913 = vcmp.eq.s32.totalorder %v859, 1
      %vm914 = vcmp.eq.s32.totalorder %v860, 1
      %vm915 = vcmp.eq.s32.totalorder %v861, 1
      %vm916 = vcmp.eq.s32.totalorder %v862, 1
      %vm917 = vcmp.eq.s32.totalorder %v863, 1
      %vm918 = vcmp.eq.s32.totalorder %v864, 1
      %vm919 = vcmp.eq.s32.totalorder %v865, 1
      %vm920 = vcmp.eq.s32.totalorder %v866, 1
      %vm921 = vcmp.eq.s32.totalorder %v867, 1
      %vm922 = vcmp.eq.s32.totalorder %v868, 1
      %vm923 = vcmp.eq.s32.totalorder %v869, 1
      %vm924 = vcmp.eq.s32.totalorder %v870, 1
      %vm925 = vcmp.eq.s32.totalorder %v871, 1
      %vm926 = vcmp.eq.s32.totalorder %v872, 1
      %vm927 = vcmp.eq.s32.totalorder %v873, 1
      %vm928 = vcmp.eq.s32.totalorder %v874, 1
      %vm929 = vcmp.eq.s32.totalorder %v875, 1
      %vm930 = vcmp.eq.s32.totalorder %v876, 1
      %vm931 = vcmp.eq.s32.totalorder %v877, 1
      %vm932 = vcmp.eq.s32.totalorder %v878, 1
      %vm933 = vcmp.eq.s32.totalorder %v879, 1
      %vm934 = vcmp.eq.s32.totalorder %v880, 1
      %vm935 = vcmp.eq.s32.totalorder %v881, 1
      %vm936 = vcmp.eq.s32.totalorder %v882, 1
      %vm937 = vcmp.eq.s32.totalorder %v883, 1
      %vm938 = vcmp.eq.s32.totalorder %v884, 1
      %vm939 = vcmp.eq.s32.totalorder %v885, 1
      %vm940 = vcmp.eq.s32.totalorder %v886, 1
      %vm941 = vcmp.eq.s32.totalorder %v887, 1
      %vm942 = vcmp.eq.s32.totalorder %v888, 1
      %vm943 = vcmp.eq.s32.totalorder %v889, 1
      %vm944 = vcmp.eq.s32.totalorder %v890, 1
      %vm945 = vcmp.eq.s32.totalorder %v891, 1
      %vm946 = vcmp.eq.s32.totalorder %v892, 1
      %vm947 = vcmp.eq.s32.totalorder %v893, 1
      %vm948 = vcmp.eq.s32.totalorder %v894, 1
      %vm949 = vcmp.eq.s32.totalorder %v895, 1
      %vm950 = vcmp.eq.s32.totalorder %v896, 1
      %vm951 = vcmp.eq.s32.totalorder %v897, 1
      %vm952 = vcmp.eq.s32.totalorder %v898, 1
      %vm953 = vcmp.eq.s32.totalorder %v899, 1
      %vm954 = vcmp.eq.s32.totalorder %v900, 1
      %vm955 = vcmp.eq.s32.totalorder %v901, 1
      %vm956 = vcmp.eq.s32.totalorder %v902, 1
      %vm957 = vcmp.eq.s32.totalorder %v903, 1
      %v958 = vsel %vm904, 0.0, %v620
      %v959 = vsel %vm905, 0.0, %v621
      %v960 = vsel %vm906, 0.0, %v622
      %v961 = vsel %vm907, 0.0, %v623
      %v962 = vsel %vm908, 0.0, %v624
      %v963 = vsel %vm909, 0.0, %v625
      %v964 = vsel %vm910, 0.0, %v626
      %v965 = vsel %vm911, 0.0, %v627
      %v966 = vsel %vm912, 0.0, %v628
      %v967 = vsel %vm913, 0.0, %v629
      %v968 = vsel %vm914, 0.0, %v630
      %v969 = vsel %vm915, 0.0, %v631
      %v970 = vsel %vm916, 0.0, %v632
      %v971 = vsel %vm917, 0.0, %v633
      %v972 = vsel %vm918, 0.0, %v634
      %v973 = vsel %vm919, 0.0, %v635
      %v974 = vsel %vm920, 0.0, %v636
      %v975 = vsel %vm921, 0.0, %v637
      %v976 = vsel %vm922, 0.0, %v638
      %v977 = vsel %vm923, 0.0, %v639
      %v978 = vsel %vm924, 0.0, %v640
      %v979 = vsel %vm925, 0.0, %v641
      %v980 = vsel %vm926, 0.0, %v642
      %v981 = vsel %vm927, 0.0, %v643
      %v982 = vsel %vm928, 0.0, %v644
      %v983 = vsel %vm929, 0.0, %v645
      %v984 = vsel %vm930, 0.0, %v646
      %v985 = vsel %vm931, 0.0, %v647
      %v986 = vsel %vm932, 0.0, %v648
      %v987 = vsel %vm933, 0.0, %v649
      %v988 = vsel %vm934, 0.0, %v650
      %v989 = vsel %vm935, 0.0, %v651
      %v990 = vsel %vm936, 0.0, %v652
      %v991 = vsel %vm937, 0.0, %v653
      %v992 = vsel %vm938, 0.0, %v654
      %v993 = vsel %vm939, 0.0, %v655
      %v994 = vsel %vm940, 0.0, %v656
      %v995 = vsel %vm941, 0.0, %v657
      %v996 = vsel %vm942, 0.0, %v658
      %v997 = vsel %vm943, 0.0, %v659
      %v998 = vsel %vm944, 0.0, %v660
      %v999 = vsel %vm945, 0.0, %v661
      %v1000 = vsel %vm946, 0.0, %v662
      %v1001 = vsel %vm947, 0.0, %v663
      %v1002 = vsel %vm948, 0.0, %v664
      %v1003 = vsel %vm949, 0.0, %v665
      %v1004 = vsel %vm950, 0.0, %v666
      %v1005 = vsel %vm951, 0.0, %v667
      %v1006 = vsel %vm952, 0.0, %v668
      %v1007 = vsel %vm953, 0.0, %v669
      %v1008 = vsel %vm954, 0.0, %v670
      %v1009 = vsel %vm955, 0.0, %v671
      %v1010 = vsel %vm956, 0.0, %v672
      %v1011 = vsel %vm957, 0.0, %v673
      %v1012 = vpack.c.bf16 %v958, %v958
      %v1013 = vpack.c.bf16 %v959, %v959
      %v1014 = vpack.c.bf16 %v960, %v960
      %v1015 = vpack.c.bf16 %v961, %v961
      %v1016 = vpack.c.bf16 %v962, %v962
      %v1017 = vpack.c.bf16 %v963, %v963
      %v1018 = vpack.c.bf16 %v964, %v964
      %v1019 = vpack.c.bf16 %v965, %v965
      %v1020 = vpack.c.bf16 %v966, %v966
      %v1021 = vpack.c.bf16 %v967, %v967
      %v1022 = vpack.c.bf16 %v968, %v968
      %v1023 = vpack.c.bf16 %v969, %v969
      %v1024 = vpack.c.bf16 %v970, %v970
      %v1025 = vpack.c.bf16 %v971, %v971
      %v1026 = vpack.c.bf16 %v972, %v972
      %v1027 = vpack.c.bf16 %v973, %v973
      %v1028 = vpack.c.bf16 %v974, %v974
      %v1029 = vpack.c.bf16 %v975, %v975
      %v1030 = vpack.c.bf16 %v976, %v976
      %v1031 = vpack.c.bf16 %v977, %v977
      %v1032 = vpack.c.bf16 %v978, %v978
      %v1033 = vpack.c.bf16 %v979, %v979
      %v1034 = vpack.c.bf16 %v980, %v980
      %v1035 = vpack.c.bf16 %v981, %v981
      %v1036 = vpack.c.bf16 %v982, %v982
      %v1037 = vpack.c.bf16 %v983, %v983
      %v1038 = vpack.c.bf16 %v984, %v984
      %v1039 = vpack.c.bf16 %v985, %v985
      %v1040 = vpack.c.bf16 %v986, %v986
      %v1041 = vpack.c.bf16 %v987, %v987
      %v1042 = vpack.c.bf16 %v988, %v988
      %v1043 = vpack.c.bf16 %v989, %v989
      %v1044 = vpack.c.bf16 %v990, %v990
      %v1045 = vpack.c.bf16 %v991, %v991
      %v1046 = vpack.c.bf16 %v992, %v992
      %v1047 = vpack.c.bf16 %v993, %v993
      %v1048 = vpack.c.bf16 %v994, %v994
      %v1049 = vpack.c.bf16 %v995, %v995
      %v1050 = vpack.c.bf16 %v996, %v996
      %v1051 = vpack.c.bf16 %v997, %v997
      %v1052 = vpack.c.bf16 %v998, %v998
      %v1053 = vpack.c.bf16 %v999, %v999
      %v1054 = vpack.c.bf16 %v1000, %v1000
      %v1055 = vpack.c.bf16 %v1001, %v1001
      %v1056 = vpack.c.bf16 %v1002, %v1002
      %v1057 = vpack.c.bf16 %v1003, %v1003
      %v1058 = vpack.c.bf16 %v1004, %v1004
      %v1059 = vpack.c.bf16 %v1005, %v1005
      %v1060 = vpack.c.bf16 %v1006, %v1006
      %v1061 = vpack.c.bf16 %v1007, %v1007
      %v1062 = vpack.c.bf16 %v1008, %v1008
      %v1063 = vpack.c.bf16 %v1009, %v1009
      %v1064 = vpack.c.bf16 %v1010, %v1010
      %v1065 = vpack.c.bf16 %v1011, %v1011
      %1066 = vst [vmem:[#allocation2] sm:$0xf] %v1012
      %1067 = vst [vmem:[#allocation2 + $0x24] sm:$0xf] %v1013
      %1068 = vst [vmem:[#allocation2 + $0x48] sm:$0xf] %v1015
      %1069 = vst [vmem:[#allocation2 + $0x6c] sm:$0xf] %v1016
      %1070 = vst [vmem:[#allocation2 + $0x90] sm:$0xf] %v1018
      %1071 = vst [vmem:[#allocation2 + $0xb4] sm:$0xf] %v1019
      %1072 = vst [vmem:[#allocation2 + $0xd8] sm:$0xf] %v1021
      %1073 = vst [vmem:[#allocation2 + $0xfc] sm:$0xf] %v1022
      %1074 = vst [vmem:[#allocation2 + $0x120] sm:$0xf] %v1024
      %1075 = vst [vmem:[#allocation2 + $0x144] sm:$0xf] %v1025
      %1076 = vst [vmem:[#allocation2 + $0x168] sm:$0xf] %v1027
      %1077 = vst [vmem:[#allocation2 + $0x18c] sm:$0xf] %v1028
      %1078 = vst [vmem:[#allocation2 + $0x1b0] sm:$0xf] %v1030
      %1079 = vst [vmem:[#allocation2 + $0x1d4] sm:$0xf] %v1031
      %1080 = vst [vmem:[#allocation2 + $0x1f8] sm:$0xf] %v1033
      %1081 = vst [vmem:[#allocation2 + $0x21c] sm:$0xf] %v1034
      %1082 = vst [vmem:[#allocation2 + $0x240] sm:$0xf] %v1036
      %1083 = vst [vmem:[#allocation2 + $0x264] sm:$0xf] %v1037
      %1084 = vst [vmem:[#allocation2 + $0x288] sm:$0xf] %v1039
      %1085 = vst [vmem:[#allocation2 + $0x2ac] sm:$0xf] %v1040
      %1086 = vst [vmem:[#allocation2 + $0x2d0] sm:$0xf] %v1042
      %1087 = vst [vmem:[#allocation2 + $0x2f4] sm:$0xf] %v1043
      %1088 = vst [vmem:[#allocation2 + $0x318] sm:$0xf] %v1045
      %1089 = vst [vmem:[#allocation2 + $0x33c] sm:$0xf] %v1046
      %1090 = vst [vmem:[#allocation2 + $0x360] sm:$0xf] %v1048
      %1091 = vst [vmem:[#allocation2 + $0x384] sm:$0xf] %v1049
      %1092 = vst [vmem:[#allocation2 + $0x3a8] sm:$0xf] %v1051
      %1093 = vst [vmem:[#allocation2 + $0x3cc] sm:$0xf] %v1052
      %1094 = vst [vmem:[#allocation2 + $0x3f0] sm:$0xf] %v1054
      %1095 = vst [vmem:[#allocation2 + $0x414] sm:$0xf] %v1055
      %1096 = vst [vmem:[#allocation2 + $0x438] sm:$0xf] %v1057
      %1097 = vst [vmem:[#allocation2 + $0x45c] sm:$0xf] %v1058
      %vm1098 = vsmask.f32 3328
      %vm1099 = vsmask.f32 7440
      %vm1100 = vmor %vm1098, %vm1099
      %v1102 = vshrl.u32 %v1012, 16
      %v1104 = vrot.slane %v1102, 4
      %v1105 = vshll.u32 %v1012, 16
      %v1107 = vrot.slane %v1105, 5
      %v1108 = vor.u32 %v1104, %v1107
      %v1109 = vrot.slane %v1108, 4
      %v1111 = vshll.u32 %v1013, 16
      %v1113 = vrot.slane %v1111, 5
      %v1114 = vsel %vm1100, %v1109, %v1113
      %v1115 = vshrl.u32 %v1013, 16
      %v1117 = vrot.slane %v1115, 4
      %v1118 = vor.u32 %v1117, %v1113
      %v1119 = vrot.slane %v1118, 4
      %v1121 = vshll.u32 %v1014, 16
      %v1123 = vrot.slane %v1121, 5
      %v1124 = vsel %vm1100, %v1119, %v1123
      %v1126 = vshrl.u32 %v1015, 16
      %v1128 = vrot.slane %v1126, 4
      %v1129 = vshll.u32 %v1015, 16
      %v1131 = vrot.slane %v1129, 5
      %v1132 = vor.u32 %v1128, %v1131
      %v1133 = vrot.slane %v1132, 4
      %v1135 = vshll.u32 %v1016, 16
      %v1137 = vrot.slane %v1135, 5
      %v1138 = vsel %vm1100, %v1133, %v1137
      %v1139 = vshrl.u32 %v1016, 16
      %v1141 = vrot.slane %v1139, 4
      %v1142 = vor.u32 %v1141, %v1137
      %v1143 = vrot.slane %v1142, 4
      %v1145 = vshll.u32 %v1017, 16
      %v1147 = vrot.slane %v1145, 5
      %v1148 = vsel %vm1100, %v1143, %v1147
      %v1150 = vshrl.u32 %v1018, 16
      %v1152 = vrot.slane %v1150, 4
      %v1153 = vshll.u32 %v1018, 16
      %v1155 = vrot.slane %v1153, 5
      %v1156 = vor.u32 %v1152, %v1155
      %v1157 = vrot.slane %v1156, 4
      %v1159 = vshll.u32 %v1019, 16
      %v1161 = vrot.slane %v1159, 5
      %v1162 = vsel %vm1100, %v1157, %v1161
      %v1163 = vshrl.u32 %v1019, 16
      %v1165 = vrot.slane %v1163, 4
      %v1166 = vor.u32 %v1165, %v1161
      %v1167 = vrot.slane %v1166, 4
      %v1169 = vshll.u32 %v1020, 16
      %v1171 = vrot.slane %v1169, 5
      %v1172 = vsel %vm1100, %v1167, %v1171
      %v1174 = vshrl.u32 %v1021, 16
      %v1176 = vrot.slane %v1174, 4
      %v1177 = vshll.u32 %v1021, 16
      %v1179 = vrot.slane %v1177, 5
      %v1180 = vor.u32 %v1176, %v1179
      %v1181 = vrot.slane %v1180, 4
      %v1183 = vshll.u32 %v1022, 16
      %v1185 = vrot.slane %v1183, 5
      %v1186 = vsel %vm1100, %v1181, %v1185
      %v1187 = vshrl.u32 %v1022, 16
      %v1189 = vrot.slane %v1187, 4
      %v1190 = vor.u32 %v1189, %v1185
      %v1191 = vrot.slane %v1190, 4
      %v1193 = vshll.u32 %v1023, 16
      %v1195 = vrot.slane %v1193, 5
      %v1196 = vsel %vm1100, %v1191, %v1195
      %v1198 = vshrl.u32 %v1024, 16
      %v1200 = vrot.slane %v1198, 4
      %v1201 = vshll.u32 %v1024, 16
      %v1203 = vrot.slane %v1201, 5
      %v1204 = vor.u32 %v1200, %v1203
      %v1205 = vrot.slane %v1204, 4
      %v1207 = vshll.u32 %v1025, 16
      %v1209 = vrot.slane %v1207, 5
      %v1210 = vsel %vm1100, %v1205, %v1209
      %v1211 = vshrl.u32 %v1025, 16
      %v1213 = vrot.slane %v1211, 4
      %v1214 = vor.u32 %v1213, %v1209
      %v1215 = vrot.slane %v1214, 4
      %v1217 = vshll.u32 %v1026, 16
      %v1219 = vrot.slane %v1217, 5
      %v1220 = vsel %vm1100, %v1215, %v1219
      %v1222 = vshrl.u32 %v1027, 16
      %v1224 = vrot.slane %v1222, 4
      %v1225 = vshll.u32 %v1027, 16
      %v1227 = vrot.slane %v1225, 5
      %v1228 = vor.u32 %v1224, %v1227
      %v1229 = vrot.slane %v1228, 4
      %v1231 = vshll.u32 %v1028, 16
      %v1233 = vrot.slane %v1231, 5
      %v1234 = vsel %vm1100, %v1229, %v1233
      %v1235 = vshrl.u32 %v1028, 16
      %v1237 = vrot.slane %v1235, 4
      %v1238 = vor.u32 %v1237, %v1233
      %v1239 = vrot.slane %v1238, 4
      %v1241 = vshll.u32 %v1029, 16
      %v1243 = vrot.slane %v1241, 5
      %v1244 = vsel %vm1100, %v1239, %v1243
      %v1246 = vshrl.u32 %v1030, 16
      %v1248 = vrot.slane %v1246, 4
      %v1249 = vshll.u32 %v1030, 16
      %v1251 = vrot.slane %v1249, 5
      %v1252 = vor.u32 %v1248, %v1251
      %v1253 = vrot.slane %v1252, 4
      %v1255 = vshll.u32 %v1031, 16
      %v1257 = vrot.slane %v1255, 5
      %v1258 = vsel %vm1100, %v1253, %v1257
      %v1259 = vshrl.u32 %v1031, 16
      %v1261 = vrot.slane %v1259, 4
      %v1262 = vor.u32 %v1261, %v1257
      %v1263 = vrot.slane %v1262, 4
      %v1265 = vshll.u32 %v1032, 16
      %v1267 = vrot.slane %v1265, 5
      %v1268 = vsel %vm1100, %v1263, %v1267
      %v1270 = vshrl.u32 %v1033, 16
      %v1272 = vrot.slane %v1270, 4
      %v1273 = vshll.u32 %v1033, 16
      %v1275 = vrot.slane %v1273, 5
      %v1276 = vor.u32 %v1272, %v1275
      %v1277 = vrot.slane %v1276, 4
      %v1279 = vshll.u32 %v1034, 16
      %v1281 = vrot.slane %v1279, 5
      %v1282 = vsel %vm1100, %v1277, %v1281
      %v1283 = vshrl.u32 %v1034, 16
      %v1285 = vrot.slane %v1283, 4
      %v1286 = vor.u32 %v1285, %v1281
      %v1287 = vrot.slane %v1286, 4
      %v1289 = vshll.u32 %v1035, 16
      %v1291 = vrot.slane %v1289, 5
      %v1292 = vsel %vm1100, %v1287, %v1291
      %v1294 = vshrl.u32 %v1036, 16
      %v1296 = vrot.slane %v1294, 4
      %v1297 = vshll.u32 %v1036, 16
      %v1299 = vrot.slane %v1297, 5
      %v1300 = vor.u32 %v1296, %v1299
      %v1301 = vrot.slane %v1300, 4
      %v1303 = vshll.u32 %v1037, 16
      %v1305 = vrot.slane %v1303, 5
      %v1306 = vsel %vm1100, %v1301, %v1305
      %v1307 = vshrl.u32 %v1037, 16
      %v1309 = vrot.slane %v1307, 4
      %v1310 = vor.u32 %v1309, %v1305
      %v1311 = vrot.slane %v1310, 4
      %v1313 = vshll.u32 %v1038, 16
      %v1315 = vrot.slane %v1313, 5
      %v1316 = vsel %vm1100, %v1311, %v1315
      %v1318 = vshrl.u32 %v1039, 16
      %v1320 = vrot.slane %v1318, 4
      %v1321 = vshll.u32 %v1039, 16
      %v1323 = vrot.slane %v1321, 5
      %v1324 = vor.u32 %v1320, %v1323
      %v1325 = vrot.slane %v1324, 4
      %v1327 = vshll.u32 %v1040, 16
      %v1329 = vrot.slane %v1327, 5
      %v1330 = vsel %vm1100, %v1325, %v1329
      %v1331 = vshrl.u32 %v1040, 16
      %v1333 = vrot.slane %v1331, 4
      %v1334 = vor.u32 %v1333, %v1329
      %v1335 = vrot.slane %v1334, 4
      %v1337 = vshll.u32 %v1041, 16
      %v1339 = vrot.slane %v1337, 5
      %v1340 = vsel %vm1100, %v1335, %v1339
      %v1342 = vshrl.u32 %v1042, 16
      %v1344 = vrot.slane %v1342, 4
      %v1345 = vshll.u32 %v1042, 16
      %v1347 = vrot.slane %v1345, 5
      %v1348 = vor.u32 %v1344, %v1347
      %v1349 = vrot.slane %v1348, 4
      %v1351 = vshll.u32 %v1043, 16
      %v1353 = vrot.slane %v1351, 5
      %v1354 = vsel %vm1100, %v1349, %v1353
      %v1355 = vshrl.u32 %v1043, 16
      %v1357 = vrot.slane %v1355, 4
      %v1358 = vor.u32 %v1357, %v1353
      %v1359 = vrot.slane %v1358, 4
      %v1361 = vshll.u32 %v1044, 16
      %v1363 = vrot.slane %v1361, 5
      %v1364 = vsel %vm1100, %v1359, %v1363
      %v1366 = vshrl.u32 %v1045, 16
      %v1368 = vrot.slane %v1366, 4
      %v1369 = vshll.u32 %v1045, 16
      %v1371 = vrot.slane %v1369, 5
      %v1372 = vor.u32 %v1368, %v1371
      %v1373 = vrot.slane %v1372, 4
      %v1375 = vshll.u32 %v1046, 16
      %v1377 = vrot.slane %v1375, 5
      %v1378 = vsel %vm1100, %v1373, %v1377
      %v1379 = vshrl.u32 %v1046, 16
      %v1381 = vrot.slane %v1379, 4
      %v1382 = vor.u32 %v1381, %v1377
      %v1383 = vrot.slane %v1382, 4
      %v1385 = vshll.u32 %v1047, 16
      %v1387 = vrot.slane %v1385, 5
      %v1388 = vsel %vm1100, %v1383, %v1387
      %v1390 = vshrl.u32 %v1048, 16
      %v1392 = vrot.slane %v1390, 4
      %v1393 = vshll.u32 %v1048, 16
      %v1395 = vrot.slane %v1393, 5
      %v1396 = vor.u32 %v1392, %v1395
      %v1397 = vrot.slane %v1396, 4
      %v1399 = vshll.u32 %v1049, 16
      %v1401 = vrot.slane %v1399, 5
      %v1402 = vsel %vm1100, %v1397, %v1401
      %v1403 = vshrl.u32 %v1049, 16
      %v1405 = vrot.slane %v1403, 4
      %v1406 = vor.u32 %v1405, %v1401
      %v1407 = vrot.slane %v1406, 4
      %v1409 = vshll.u32 %v1050, 16
      %v1411 = vrot.slane %v1409, 5
      %v1412 = vsel %vm1100, %v1407, %v1411
      %v1414 = vshrl.u32 %v1051, 16
      %v1416 = vrot.slane %v1414, 4
      %v1417 = vshll.u32 %v1051, 16
      %v1419 = vrot.slane %v1417, 5
      %v1420 = vor.u32 %v1416, %v1419
      %v1421 = vrot.slane %v1420, 4
      %v1423 = vshll.u32 %v1052, 16
      %v1425 = vrot.slane %v1423, 5
      %v1426 = vsel %vm1100, %v1421, %v1425
      %v1427 = vshrl.u32 %v1052, 16
      %v1429 = vrot.slane %v1427, 4
      %v1430 = vor.u32 %v1429, %v1425
      %v1431 = vrot.slane %v1430, 4
      %v1433 = vshll.u32 %v1053, 16
      %v1435 = vrot.slane %v1433, 5
      %v1436 = vsel %vm1100, %v1431, %v1435
      %v1438 = vshrl.u32 %v1054, 16
      %v1440 = vrot.slane %v1438, 4
      %v1441 = vshll.u32 %v1054, 16
      %v1443 = vrot.slane %v1441, 5
      %v1444 = vor.u32 %v1440, %v1443
      %v1445 = vrot.slane %v1444, 4
      %v1447 = vshll.u32 %v1055, 16
      %v1449 = vrot.slane %v1447, 5
      %v1450 = vsel %vm1100, %v1445, %v1449
      %v1451 = vshrl.u32 %v1055, 16
      %v1453 = vrot.slane %v1451, 4
      %v1454 = vor.u32 %v1453, %v1449
      %v1455 = vrot.slane %v1454, 4
      %v1457 = vshll.u32 %v1056, 16
      %v1459 = vrot.slane %v1457, 5
      %v1460 = vsel %vm1100, %v1455, %v1459
      %v1462 = vshrl.u32 %v1057, 16
      %v1464 = vrot.slane %v1462, 4
      %v1465 = vshll.u32 %v1057, 16
      %v1467 = vrot.slane %v1465, 5
      %v1468 = vor.u32 %v1464, %v1467
      %v1469 = vrot.slane %v1468, 4
      %v1471 = vshll.u32 %v1058, 16
      %v1473 = vrot.slane %v1471, 5
      %v1474 = vsel %vm1100, %v1469, %v1473
      %v1475 = vshrl.u32 %v1058, 16
      %v1477 = vrot.slane %v1475, 4
      %v1478 = vor.u32 %v1477, %v1473
      %v1479 = vrot.slane %v1478, 4
      %v1481 = vshll.u32 %v1059, 16
      %v1483 = vrot.slane %v1481, 5
      %v1484 = vsel %vm1100, %v1479, %v1483
      %1517 = vst [vmem:[#allocation2 + $0x4] sm:$0xf] %v1114
      %1518 = vst [vmem:[#allocation2 + $0x28] sm:$0xf] %v1124
      %1519 = vst [vmem:[#allocation2 + $0x4c] sm:$0xf] %v1138
      %1520 = vst [vmem:[#allocation2 + $0x70] sm:$0xf] %v1148
      %1521 = vst [vmem:[#allocation2 + $0x94] sm:$0xf] %v1162
      %1522 = vst [vmem:[#allocation2 + $0xb8] sm:$0xf] %v1172
      %1523 = vst [vmem:[#allocation2 + $0xdc] sm:$0xf] %v1186
      %1524 = vst [vmem:[#allocation2 + $0x100] sm:$0xf] %v1196
      %1525 = vst [vmem:[#allocation2 + $0x124] sm:$0xf] %v1210
      %1526 = vst [vmem:[#allocation2 + $0x148] sm:$0xf] %v1220
      %1527 = vst [vmem:[#allocation2 + $0x16c] sm:$0xf] %v1234
      %1528 = vst [vmem:[#allocation2 + $0x190] sm:$0xf] %v1244
      %1529 = vst [vmem:[#allocation2 + $0x1b4] sm:$0xf] %v1258
      %1530 = vst [vmem:[#allocation2 + $0x1d8] sm:$0xf] %v1268
      %1531 = vst [vmem:[#allocation2 + $0x1fc] sm:$0xf] %v1282
      %1532 = vst [vmem:[#allocation2 + $0x220] sm:$0xf] %v1292
      %1533 = vst [vmem:[#allocation2 + $0x244] sm:$0xf] %v1306
      %1534 = vst [vmem:[#allocation2 + $0x268] sm:$0xf] %v1316
      %1535 = vst [vmem:[#allocation2 + $0x28c] sm:$0xf] %v1330
      %1536 = vst [vmem:[#allocation2 + $0x2b0] sm:$0xf] %v1340
      %1537 = vst [vmem:[#allocation2 + $0x2d4] sm:$0xf] %v1354
      %1538 = vst [vmem:[#allocation2 + $0x2f8] sm:$0xf] %v1364
      %1539 = vst [vmem:[#allocation2 + $0x31c] sm:$0xf] %v1378
      %1540 = vst [vmem:[#allocation2 + $0x340] sm:$0xf] %v1388
      %1541 = vst [vmem:[#allocation2 + $0x364] sm:$0xf] %v1402
      %1542 = vst [vmem:[#allocation2 + $0x388] sm:$0xf] %v1412
      %1543 = vst [vmem:[#allocation2 + $0x3ac] sm:$0xf] %v1426
      %1544 = vst [vmem:[#allocation2 + $0x3d0] sm:$0xf] %v1436
      %1545 = vst [vmem:[#allocation2 + $0x3f4] sm:$0xf] %v1450
      %1546 = vst [vmem:[#allocation2 + $0x418] sm:$0xf] %v1460
      %1547 = vst [vmem:[#allocation2 + $0x43c] sm:$0xf] %v1474
      %1548 = vst [vmem:[#allocation2 + $0x460] sm:$0xf] %v1484
      %vm1597 = vcmask 1042432
      %vm1598 = vcmask 1046532
      %vm1599 = vmor %vm1597, %vm1598
      %v1600 = vrot.slane %v1012, 5
      %v1601 = vrot.slane %v1600, 4
      %v1602 = vrot.slane %v1013, 5
      %v1603 = vsel %vm1599, %v1601, %v1602
      %v1604 = vrot.slane %v1602, 4
      %v1605 = vrot.slane %v1014, 5
      %v1606 = vsel %vm1599, %v1604, %v1605
      %v1607 = vrot.slane %v1015, 5
      %v1608 = vrot.slane %v1607, 4
      %v1609 = vrot.slane %v1016, 5
      %v1610 = vsel %vm1599, %v1608, %v1609
      %v1611 = vrot.slane %v1609, 4
      %v1612 = vrot.slane %v1017, 5
      %v1613 = vsel %vm1599, %v1611, %v1612
      %v1614 = vrot.slane %v1018, 5
      %v1615 = vrot.slane %v1614, 4
      %v1616 = vrot.slane %v1019, 5
      %v1617 = vsel %vm1599, %v1615, %v1616
      %v1618 = vrot.slane %v1616, 4
      %v1619 = vrot.slane %v1020, 5
      %v1620 = vsel %vm1599, %v1618, %v1619
      %v1621 = vrot.slane %v1021, 5
      %v1622 = vrot.slane %v1621, 4
      %v1623 = vrot.slane %v1022, 5
      %v1624 = vsel %vm1599, %v1622, %v1623
      %v1625 = vrot.slane %v1623, 4
      %v1626 = vrot.slane %v1023, 5
      %v1627 = vsel %vm1599, %v1625, %v1626
      %v1628 = vrot.slane %v1024, 5
      %v1629 = vrot.slane %v1628, 4
      %v1630 = vrot.slane %v1025, 5
      %v1631 = vsel %vm1599, %v1629, %v1630
      %v1632 = vrot.slane %v1630, 4
      %v1633 = vrot.slane %v1026, 5
      %v1634 = vsel %vm1599, %v1632, %v1633
      %v1635 = vrot.slane %v1027, 5
      %v1636 = vrot.slane %v1635, 4
      %v1637 = vrot.slane %v1028, 5
      %v1638 = vsel %vm1599, %v1636, %v1637
      %v1639 = vrot.slane %v1637, 4
      %v1640 = vrot.slane %v1029, 5
      %v1641 = vsel %vm1599, %v1639, %v1640
      %v1642 = vrot.slane %v1030, 5
      %v1643 = vrot.slane %v1642, 4
      %v1644 = vrot.slane %v1031, 5
      %v1645 = vsel %vm1599, %v1643, %v1644
      %v1646 = vrot.slane %v1644, 4
      %v1647 = vrot.slane %v1032, 5
      %v1648 = vsel %vm1599, %v1646, %v1647
      %v1649 = vrot.slane %v1033, 5
      %v1650 = vrot.slane %v1649, 4
      %v1651 = vrot.slane %v1034, 5
      %v1652 = vsel %vm1599, %v1650, %v1651
      %v1653 = vrot.slane %v1651, 4
      %v1654 = vrot.slane %v1035, 5
      %v1655 = vsel %vm1599, %v1653, %v1654
      %v1656 = vrot.slane %v1036, 5
      %v1657 = vrot.slane %v1656, 4
      %v1658 = vrot.slane %v1037, 5
      %v1659 = vsel %vm1599, %v1657, %v1658
      %v1660 = vrot.slane %v1658, 4
      %v1661 = vrot.slane %v1038, 5
      %v1662 = vsel %vm1599, %v1660, %v1661
      %v1663 = vrot.slane %v1039, 5
      %v1664 = vrot.slane %v1663, 4
      %v1665 = vrot.slane %v1040, 5
      %v1666 = vsel %vm1599, %v1664, %v1665
      %v1667 = vrot.slane %v1665, 4
      %v1668 = vrot.slane %v1041, 5
      %v1669 = vsel %vm1599, %v1667, %v1668
      %v1670 = vrot.slane %v1042, 5
      %v1671 = vrot.slane %v1670, 4
      %v1672 = vrot.slane %v1043, 5
      %v1673 = vsel %vm1599, %v1671, %v1672
      %v1674 = vrot.slane %v1672, 4
      %v1675 = vrot.slane %v1044, 5
      %v1676 = vsel %vm1599, %v1674, %v1675
      %v1677 = vrot.slane %v1045, 5
      %v1678 = vrot.slane %v1677, 4
      %v1679 = vrot.slane %v1046, 5
      %v1680 = vsel %vm1599, %v1678, %v1679
      %v1681 = vrot.slane %v1679, 4
      %v1682 = vrot.slane %v1047, 5
      %v1683 = vsel %vm1599, %v1681, %v1682
      %v1684 = vrot.slane %v1048, 5
      %v1685 = vrot.slane %v1684, 4
      %v1686 = vrot.slane %v1049, 5
      %v1687 = vsel %vm1599, %v1685, %v1686
      %v1688 = vrot.slane %v1686, 4
      %v1689 = vrot.slane %v1050, 5
      %v1690 = vsel %vm1599, %v1688, %v1689
      %v1691 = vrot.slane %v1051, 5
      %v1692 = vrot.slane %v1691, 4
      %v1693 = vrot.slane %v1052, 5
      %v1694 = vsel %vm1599, %v1692, %v1693
      %v1695 = vrot.slane %v1693, 4
      %v1696 = vrot.slane %v1053, 5
      %v1697 = vsel %vm1599, %v1695, %v1696
      %v1698 = vrot.slane %v1054, 5
      %v1699 = vrot.slane %v1698, 4
      %v1700 = vrot.slane %v1055, 5
      %v1701 = vsel %vm1599, %v1699, %v1700
      %v1702 = vrot.slane %v1700, 4
      %v1703 = vrot.slane %v1056, 5
      %v1704 = vsel %vm1599, %v1702, %v1703
      %v1705 = vrot.slane %v1057, 5
      %v1706 = vrot.slane %v1705, 4
      %v1707 = vrot.slane %v1058, 5
      %v1708 = vsel %vm1599, %v1706, %v1707
      %v1709 = vrot.slane %v1707, 4
      %v1710 = vrot.slane %v1059, 5
      %v1711 = vsel %vm1599, %v1709, %v1710
      %1744 = vst [vmem:[#allocation2 + $0x8] sm:$0xf] %v1603
      %1745 = vst [vmem:[#allocation2 + $0x2c] sm:$0xf] %v1606
      %1746 = vst [vmem:[#allocation2 + $0x50] sm:$0xf] %v1610
      %1747 = vst [vmem:[#allocation2 + $0x74] sm:$0xf] %v1613
      %1748 = vst [vmem:[#allocation2 + $0x98] sm:$0xf] %v1617
      %1749 = vst [vmem:[#allocation2 + $0xbc] sm:$0xf] %v1620
      %1750 = vst [vmem:[#allocation2 + $0xe0] sm:$0xf] %v1624
      %1751 = vst [vmem:[#allocation2 + $0x104] sm:$0xf] %v1627
      %1752 = vst [vmem:[#allocation2 + $0x128] sm:$0xf] %v1631
      %1753 = vst [vmem:[#allocation2 + $0x14c] sm:$0xf] %v1634
      %1754 = vst [vmem:[#allocation2 + $0x170] sm:$0xf] %v1638
      %1755 = vst [vmem:[#allocation2 + $0x194] sm:$0xf] %v1641
      %1756 = vst [vmem:[#allocation2 + $0x1b8] sm:$0xf] %v1645
      %1757 = vst [vmem:[#allocation2 + $0x1dc] sm:$0xf] %v1648
      %1758 = vst [vmem:[#allocation2 + $0x200] sm:$0xf] %v1652
      %1759 = vst [vmem:[#allocation2 + $0x224] sm:$0xf] %v1655
      %1760 = vst [vmem:[#allocation2 + $0x248] sm:$0xf] %v1659
      %1761 = vst [vmem:[#allocation2 + $0x26c] sm:$0xf] %v1662
      %1762 = vst [vmem:[#allocation2 + $0x290] sm:$0xf] %v1666
      %1763 = vst [vmem:[#allocation2 + $0x2b4] sm:$0xf] %v1669
      %1764 = vst [vmem:[#allocation2 + $0x2d8] sm:$0xf] %v1673
      %1765 = vst [vmem:[#allocation2 + $0x2fc] sm:$0xf] %v1676
      %1766 = vst [vmem:[#allocation2 + $0x320] sm:$0xf] %v1680
      %1767 = vst [vmem:[#allocation2 + $0x344] sm:$0xf] %v1683
      %1768 = vst [vmem:[#allocation2 + $0x368] sm:$0xf] %v1687
      %1769 = vst [vmem:[#allocation2 + $0x38c] sm:$0xf] %v1690
      %1770 = vst [vmem:[#allocation2 + $0x3b0] sm:$0xf] %v1694
      %1771 = vst [vmem:[#allocation2 + $0x3d4] sm:$0xf] %v1697
      %1772 = vst [vmem:[#allocation2 + $0x3f8] sm:$0xf] %v1701
      %1773 = vst [vmem:[#allocation2 + $0x41c] sm:$0xf] %v1704
      %1774 = vst [vmem:[#allocation2 + $0x440] sm:$0xf] %v1708
      %1775 = vst [vmem:[#allocation2 + $0x464] sm:$0xf] %v1711
      %1776 = vst [vmem:[#allocation2 + $0xc] sm:$0xf] %v1015
      %1777 = vst [vmem:[#allocation2 + $0x30] sm:$0xf] %v1016
      %1778 = vst [vmem:[#allocation2 + $0x54] sm:$0xf] %v1018
      %1779 = vst [vmem:[#allocation2 + $0x78] sm:$0xf] %v1019
      %1780 = vst [vmem:[#allocation2 + $0x9c] sm:$0xf] %v1021
      %1781 = vst [vmem:[#allocation2 + $0xc0] sm:$0xf] %v1022
      %1782 = vst [vmem:[#allocation2 + $0xe4] sm:$0xf] %v1024
      %1783 = vst [vmem:[#allocation2 + $0x108] sm:$0xf] %v1025
      %1784 = vst [vmem:[#allocation2 + $0x12c] sm:$0xf] %v1027
      %1785 = vst [vmem:[#allocation2 + $0x150] sm:$0xf] %v1028
      %1786 = vst [vmem:[#allocation2 + $0x174] sm:$0xf] %v1030
      %1787 = vst [vmem:[#allocation2 + $0x198] sm:$0xf] %v1031
      %1788 = vst [vmem:[#allocation2 + $0x1bc] sm:$0xf] %v1033
      %1789 = vst [vmem:[#allocation2 + $0x1e0] sm:$0xf] %v1034
      %1790 = vst [vmem:[#allocation2 + $0x204] sm:$0xf] %v1036
      %1791 = vst [vmem:[#allocation2 + $0x228] sm:$0xf] %v1037
      %1792 = vst [vmem:[#allocation2 + $0x24c] sm:$0xf] %v1039
      %1793 = vst [vmem:[#allocation2 + $0x270] sm:$0xf] %v1040
      %1794 = vst [vmem:[#allocation2 + $0x294] sm:$0xf] %v1042
      %1795 = vst [vmem:[#allocation2 + $0x2b8] sm:$0xf] %v1043
      %1796 = vst [vmem:[#allocation2 + $0x2dc] sm:$0xf] %v1045
      %1797 = vst [vmem:[#allocation2 + $0x300] sm:$0xf] %v1046
      %1798 = vst [vmem:[#allocation2 + $0x324] sm:$0xf] %v1048
      %1799 = vst [vmem:[#allocation2 + $0x348] sm:$0xf] %v1049
      %1800 = vst [vmem:[#allocation2 + $0x36c] sm:$0xf] %v1051
      %1801 = vst [vmem:[#allocation2 + $0x390] sm:$0xf] %v1052
      %1802 = vst [vmem:[#allocation2 + $0x3b4] sm:$0xf] %v1054
      %1803 = vst [vmem:[#allocation2 + $0x3d8] sm:$0xf] %v1055
      %1804 = vst [vmem:[#allocation2 + $0x3fc] sm:$0xf] %v1057
      %1805 = vst [vmem:[#allocation2 + $0x420] sm:$0xf] %v1058
      %1806 = vst [vmem:[#allocation2 + $0x444] sm:$0xf] %v1060
      %1807 = vst [vmem:[#allocation2 + $0x468] sm:$0xf] %v1061
      %v1809 = vshrl.u32 %v1060, 16
      %v1811 = vrot.slane %v1809, 4
      %v1812 = vshll.u32 %v1060, 16
      %v1814 = vrot.slane %v1812, 5
      %v1815 = vor.u32 %v1811, %v1814
      %v1816 = vrot.slane %v1815, 4
      %v1818 = vshll.u32 %v1061, 16
      %v1820 = vrot.slane %v1818, 5
      %v1821 = vsel %vm1100, %v1816, %v1820
      %v1822 = vshrl.u32 %v1061, 16
      %v1824 = vrot.slane %v1822, 4
      %v1825 = vor.u32 %v1824, %v1820
      %v1826 = vrot.slane %v1825, 4
      %v1828 = vshll.u32 %v1062, 16
      %v1830 = vrot.slane %v1828, 5
      %v1831 = vsel %vm1100, %v1826, %v1830
      %1834 = vst [vmem:[#allocation2 + $0x10] sm:$0xf] %v1138
      %1835 = vst [vmem:[#allocation2 + $0x34] sm:$0xf] %v1148
      %1836 = vst [vmem:[#allocation2 + $0x58] sm:$0xf] %v1162
      %1837 = vst [vmem:[#allocation2 + $0x7c] sm:$0xf] %v1172
      %1838 = vst [vmem:[#allocation2 + $0xa0] sm:$0xf] %v1186
      %1839 = vst [vmem:[#allocation2 + $0xc4] sm:$0xf] %v1196
      %1840 = vst [vmem:[#allocation2 + $0xe8] sm:$0xf] %v1210
      %1841 = vst [vmem:[#allocation2 + $0x10c] sm:$0xf] %v1220
      %1842 = vst [vmem:[#allocation2 + $0x130] sm:$0xf] %v1234
      %1843 = vst [vmem:[#allocation2 + $0x154] sm:$0xf] %v1244
      %1844 = vst [vmem:[#allocation2 + $0x178] sm:$0xf] %v1258
      %1845 = vst [vmem:[#allocation2 + $0x19c] sm:$0xf] %v1268
      %1846 = vst [vmem:[#allocation2 + $0x1c0] sm:$0xf] %v1282
      %1847 = vst [vmem:[#allocation2 + $0x1e4] sm:$0xf] %v1292
      %1848 = vst [vmem:[#allocation2 + $0x208] sm:$0xf] %v1306
      %1849 = vst [vmem:[#allocation2 + $0x22c] sm:$0xf] %v1316
      %1850 = vst [vmem:[#allocation2 + $0x250] sm:$0xf] %v1330
      %1851 = vst [vmem:[#allocation2 + $0x274] sm:$0xf] %v1340
      %1852 = vst [vmem:[#allocation2 + $0x298] sm:$0xf] %v1354
      %1853 = vst [vmem:[#allocation2 + $0x2bc] sm:$0xf] %v1364
      %1854 = vst [vmem:[#allocation2 + $0x2e0] sm:$0xf] %v1378
      %1855 = vst [vmem:[#allocation2 + $0x304] sm:$0xf] %v1388
      %1856 = vst [vmem:[#allocation2 + $0x328] sm:$0xf] %v1402
      %1857 = vst [vmem:[#allocation2 + $0x34c] sm:$0xf] %v1412
      %1858 = vst [vmem:[#allocation2 + $0x370] sm:$0xf] %v1426
      %1859 = vst [vmem:[#allocation2 + $0x394] sm:$0xf] %v1436
      %1860 = vst [vmem:[#allocation2 + $0x3b8] sm:$0xf] %v1450
      %1861 = vst [vmem:[#allocation2 + $0x3dc] sm:$0xf] %v1460
      %1862 = vst [vmem:[#allocation2 + $0x400] sm:$0xf] %v1474
      %1863 = vst [vmem:[#allocation2 + $0x424] sm:$0xf] %v1484
      %1864 = vst [vmem:[#allocation2 + $0x448] sm:$0xf] %v1821
      %1865 = vst [vmem:[#allocation2 + $0x46c] sm:$0xf] %v1831
      %v1869 = vrot.slane %v1060, 5
      %v1870 = vrot.slane %v1869, 4
      %v1871 = vrot.slane %v1061, 5
      %v1872 = vsel %vm1599, %v1870, %v1871
      %v1873 = vrot.slane %v1871, 4
      %v1874 = vrot.slane %v1062, 5
      %v1875 = vsel %vm1599, %v1873, %v1874
      %1878 = vst [vmem:[#allocation2 + $0x14] sm:$0xf] %v1610
      %1879 = vst [vmem:[#allocation2 + $0x38] sm:$0xf] %v1613
      %1880 = vst [vmem:[#allocation2 + $0x5c] sm:$0xf] %v1617
      %1881 = vst [vmem:[#allocation2 + $0x80] sm:$0xf] %v1620
      %1882 = vst [vmem:[#allocation2 + $0xa4] sm:$0xf] %v1624
      %1883 = vst [vmem:[#allocation2 + $0xc8] sm:$0xf] %v1627
      %1884 = vst [vmem:[#allocation2 + $0xec] sm:$0xf] %v1631
      %1885 = vst [vmem:[#allocation2 + $0x110] sm:$0xf] %v1634
      %1886 = vst [vmem:[#allocation2 + $0x134] sm:$0xf] %v1638
      %1887 = vst [vmem:[#allocation2 + $0x158] sm:$0xf] %v1641
      %1888 = vst [vmem:[#allocation2 + $0x17c] sm:$0xf] %v1645
      %1889 = vst [vmem:[#allocation2 + $0x1a0] sm:$0xf] %v1648
      %1890 = vst [vmem:[#allocation2 + $0x1c4] sm:$0xf] %v1652
      %1891 = vst [vmem:[#allocation2 + $0x1e8] sm:$0xf] %v1655
      %1892 = vst [vmem:[#allocation2 + $0x20c] sm:$0xf] %v1659
      %1893 = vst [vmem:[#allocation2 + $0x230] sm:$0xf] %v1662
      %1894 = vst [vmem:[#allocation2 + $0x254] sm:$0xf] %v1666
      %1895 = vst [vmem:[#allocation2 + $0x278] sm:$0xf] %v1669
      %1896 = vst [vmem:[#allocation2 + $0x29c] sm:$0xf] %v1673
      %1897 = vst [vmem:[#allocation2 + $0x2c0] sm:$0xf] %v1676
      %1898 = vst [vmem:[#allocation2 + $0x2e4] sm:$0xf] %v1680
      %1899 = vst [vmem:[#allocation2 + $0x308] sm:$0xf] %v1683
      %1900 = vst [vmem:[#allocation2 + $0x32c] sm:$0xf] %v1687
      %1901 = vst [vmem:[#allocation2 + $0x350] sm:$0xf] %v1690
      %1902 = vst [vmem:[#allocation2 + $0x374] sm:$0xf] %v1694
      %1903 = vst [vmem:[#allocation2 + $0x398] sm:$0xf] %v1697
      %1904 = vst [vmem:[#allocation2 + $0x3bc] sm:$0xf] %v1701
      %1905 = vst [vmem:[#allocation2 + $0x3e0] sm:$0xf] %v1704
      %1906 = vst [vmem:[#allocation2 + $0x404] sm:$0xf] %v1708
      %1907 = vst [vmem:[#allocation2 + $0x428] sm:$0xf] %v1711
      %1908 = vst [vmem:[#allocation2 + $0x44c] sm:$0xf] %v1872
      %1909 = vst [vmem:[#allocation2 + $0x470] sm:$0xf] %v1875
      %1910 = vst [vmem:[#allocation2 + $0x18] sm:$0xf] %v1018
      %1911 = vst [vmem:[#allocation2 + $0x3c] sm:$0xf] %v1019
      %1912 = vst [vmem:[#allocation2 + $0x60] sm:$0xf] %v1021
      %1913 = vst [vmem:[#allocation2 + $0x84] sm:$0xf] %v1022
      %1914 = vst [vmem:[#allocation2 + $0xa8] sm:$0xf] %v1024
      %1915 = vst [vmem:[#allocation2 + $0xcc] sm:$0xf] %v1025
      %1916 = vst [vmem:[#allocation2 + $0xf0] sm:$0xf] %v1027
      %1917 = vst [vmem:[#allocation2 + $0x114] sm:$0xf] %v1028
      %1918 = vst [vmem:[#allocation2 + $0x138] sm:$0xf] %v1030
      %1919 = vst [vmem:[#allocation2 + $0x15c] sm:$0xf] %v1031
      %1920 = vst [vmem:[#allocation2 + $0x180] sm:$0xf] %v1033
      %1921 = vst [vmem:[#allocation2 + $0x1a4] sm:$0xf] %v1034
      %1922 = vst [vmem:[#allocation2 + $0x1c8] sm:$0xf] %v1036
      %1923 = vst [vmem:[#allocation2 + $0x1ec] sm:$0xf] %v1037
      %1924 = vst [vmem:[#allocation2 + $0x210] sm:$0xf] %v1039
      %1925 = vst [vmem:[#allocation2 + $0x234] sm:$0xf] %v1040
      %1926 = vst [vmem:[#allocation2 + $0x258] sm:$0xf] %v1042
      %1927 = vst [vmem:[#allocation2 + $0x27c] sm:$0xf] %v1043
      %1928 = vst [vmem:[#allocation2 + $0x2a0] sm:$0xf] %v1045
      %1929 = vst [vmem:[#allocation2 + $0x2c4] sm:$0xf] %v1046
      %1930 = vst [vmem:[#allocation2 + $0x2e8] sm:$0xf] %v1048
      %1931 = vst [vmem:[#allocation2 + $0x30c] sm:$0xf] %v1049
      %1932 = vst [vmem:[#allocation2 + $0x330] sm:$0xf] %v1051
      %1933 = vst [vmem:[#allocation2 + $0x354] sm:$0xf] %v1052
      %1934 = vst [vmem:[#allocation2 + $0x378] sm:$0xf] %v1054
      %1935 = vst [vmem:[#allocation2 + $0x39c] sm:$0xf] %v1055
      %1936 = vst [vmem:[#allocation2 + $0x3c0] sm:$0xf] %v1057
      %1937 = vst [vmem:[#allocation2 + $0x3e4] sm:$0xf] %v1058
      %1938 = vst [vmem:[#allocation2 + $0x408] sm:$0xf] %v1060
      %1939 = vst [vmem:[#allocation2 + $0x42c] sm:$0xf] %v1061
      %1940 = vst [vmem:[#allocation2 + $0x450] sm:$0xf] %v1063
      %1941 = vst [vmem:[#allocation2 + $0x474] sm:$0xf] %v1064
      %v1943 = vshrl.u32 %v1063, 16
      %v1945 = vrot.slane %v1943, 4
      %v1946 = vshll.u32 %v1063, 16
      %v1948 = vrot.slane %v1946, 5
      %v1949 = vor.u32 %v1945, %v1948
      %v1950 = vrot.slane %v1949, 4
      %v1952 = vshll.u32 %v1064, 16
      %v1954 = vrot.slane %v1952, 5
      %v1955 = vsel %vm1100, %v1950, %v1954
      %v1956 = vshrl.u32 %v1064, 16
      %v1958 = vrot.slane %v1956, 4
      %v1959 = vor.u32 %v1958, %v1954
      %v1960 = vrot.slane %v1959, 4
      %v1962 = vshll.u32 %v1065, 16
      %v1964 = vrot.slane %v1962, 5
      %v1965 = vsel %vm1100, %v1960, %v1964
      %1968 = vst [vmem:[#allocation2 + $0x1c] sm:$0xf] %v1162
      %1969 = vst [vmem:[#allocation2 + $0x40] sm:$0xf] %v1172
      %1970 = vst [vmem:[#allocation2 + $0x64] sm:$0xf] %v1186
      %1971 = vst [vmem:[#allocation2 + $0x88] sm:$0xf] %v1196
      %1972 = vst [vmem:[#allocation2 + $0xac] sm:$0xf] %v1210
      %1973 = vst [vmem:[#allocation2 + $0xd0] sm:$0xf] %v1220
      %1974 = vst [vmem:[#allocation2 + $0xf4] sm:$0xf] %v1234
      %1975 = vst [vmem:[#allocation2 + $0x118] sm:$0xf] %v1244
      %1976 = vst [vmem:[#allocation2 + $0x13c] sm:$0xf] %v1258
      %1977 = vst [vmem:[#allocation2 + $0x160] sm:$0xf] %v1268
      %1978 = vst [vmem:[#allocation2 + $0x184] sm:$0xf] %v1282
      %1979 = vst [vmem:[#allocation2 + $0x1a8] sm:$0xf] %v1292
      %1980 = vst [vmem:[#allocation2 + $0x1cc] sm:$0xf] %v1306
      %1981 = vst [vmem:[#allocation2 + $0x1f0] sm:$0xf] %v1316
      %1982 = vst [vmem:[#allocation2 + $0x214] sm:$0xf] %v1330
      %1983 = vst [vmem:[#allocation2 + $0x238] sm:$0xf] %v1340
      %1984 = vst [vmem:[#allocation2 + $0x25c] sm:$0xf] %v1354
      %1985 = vst [vmem:[#allocation2 + $0x280] sm:$0xf] %v1364
      %1986 = vst [vmem:[#allocation2 + $0x2a4] sm:$0xf] %v1378
      %1987 = vst [vmem:[#allocation2 + $0x2c8] sm:$0xf] %v1388
      %1988 = vst [vmem:[#allocation2 + $0x2ec] sm:$0xf] %v1402
      %1989 = vst [vmem:[#allocation2 + $0x310] sm:$0xf] %v1412
      %1990 = vst [vmem:[#allocation2 + $0x334] sm:$0xf] %v1426
      %1991 = vst [vmem:[#allocation2 + $0x358] sm:$0xf] %v1436
      %1992 = vst [vmem:[#allocation2 + $0x37c] sm:$0xf] %v1450
      %1993 = vst [vmem:[#allocation2 + $0x3a0] sm:$0xf] %v1460
      %1994 = vst [vmem:[#allocation2 + $0x3c4] sm:$0xf] %v1474
      %1995 = vst [vmem:[#allocation2 + $0x3e8] sm:$0xf] %v1484
      %1996 = vst [vmem:[#allocation2 + $0x40c] sm:$0xf] %v1821
      %1997 = vst [vmem:[#allocation2 + $0x430] sm:$0xf] %v1831
      %1998 = vst [vmem:[#allocation2 + $0x454] sm:$0xf] %v1955
      %1999 = vst [vmem:[#allocation2 + $0x478] sm:$0xf] %v1965
      %v2003 = vrot.slane %v1063, 5
      %v2004 = vrot.slane %v2003, 4
      %v2005 = vrot.slane %v1064, 5
      %v2006 = vsel %vm1599, %v2004, %v2005
      %v2007 = vrot.slane %v2005, 4
      %v2008 = vrot.slane %v1065, 5
      %v2009 = vsel %vm1599, %v2007, %v2008
      %2012 = vst [vmem:[#allocation2 + $0x20] sm:$0xf] %v1617
      %2013 = vst [vmem:[#allocation2 + $0x44] sm:$0xf] %v1620
      %2014 = vst [vmem:[#allocation2 + $0x68] sm:$0xf] %v1624
      %2015 = vst [vmem:[#allocation2 + $0x8c] sm:$0xf] %v1627
      %2016 = vst [vmem:[#allocation2 + $0xb0] sm:$0xf] %v1631
      %2017 = vst [vmem:[#allocation2 + $0xd4] sm:$0xf] %v1634
      %2018 = vst [vmem:[#allocation2 + $0xf8] sm:$0xf] %v1638
      %2019 = vst [vmem:[#allocation2 + $0x11c] sm:$0xf] %v1641
      %2020 = vst [vmem:[#allocation2 + $0x140] sm:$0xf] %v1645
      %2021 = vst [vmem:[#allocation2 + $0x164] sm:$0xf] %v1648
      %2022 = vst [vmem:[#allocation2 + $0x188] sm:$0xf] %v1652
      %2023 = vst [vmem:[#allocation2 + $0x1ac] sm:$0xf] %v1655
      %2024 = vst [vmem:[#allocation2 + $0x1d0] sm:$0xf] %v1659
      %2025 = vst [vmem:[#allocation2 + $0x1f4] sm:$0xf] %v1662
      %2026 = vst [vmem:[#allocation2 + $0x218] sm:$0xf] %v1666
      %2027 = vst [vmem:[#allocation2 + $0x23c] sm:$0xf] %v1669
      %2028 = vst [vmem:[#allocation2 + $0x260] sm:$0xf] %v1673
      %2029 = vst [vmem:[#allocation2 + $0x284] sm:$0xf] %v1676
      %2030 = vst [vmem:[#allocation2 + $0x2a8] sm:$0xf] %v1680
      %2031 = vst [vmem:[#allocation2 + $0x2cc] sm:$0xf] %v1683
      %2032 = vst [vmem:[#allocation2 + $0x2f0] sm:$0xf] %v1687
      %2033 = vst [vmem:[#allocation2 + $0x314] sm:$0xf] %v1690
      %2034 = vst [vmem:[#allocation2 + $0x338] sm:$0xf] %v1694
      %2035 = vst [vmem:[#allocation2 + $0x35c] sm:$0xf] %v1697
      %2036 = vst [vmem:[#allocation2 + $0x380] sm:$0xf] %v1701
      %2037 = vst [vmem:[#allocation2 + $0x3a4] sm:$0xf] %v1704
      %2038 = vst [vmem:[#allocation2 + $0x3c8] sm:$0xf] %v1708
      %2039 = vst [vmem:[#allocation2 + $0x3ec] sm:$0xf] %v1711
      %2040 = vst [vmem:[#allocation2 + $0x410] sm:$0xf] %v1872
      %2041 = vst [vmem:[#allocation2 + $0x434] sm:$0xf] %v1875
      %2042 = vst [vmem:[#allocation2 + $0x458] sm:$0xf] %v2006
      %2043 = vst [vmem:[#allocation2 + $0x47c] sm:$0xf] %v2009
      %v2044 = vld [vmem:[#allocation2] sm:$0xff]
      %v2045 = vld [vmem:[#allocation2 + $0x8] sm:$0xff]
      %v2046 = vld [vmem:[#allocation2 + $0x10] sm:$0xff]
      %v2047 = vld [vmem:[#allocation2 + $0x18] sm:$0xff]
      %v2048 = vld [vmem:[#allocation2 + $0x20] sm:$0xf]
      %v2049 = vld [vmem:[#allocation2 + $0x24] sm:$0xff]
      %v2050 = vld [vmem:[#allocation2 + $0x2c] sm:$0xff]
      %v2051 = vld [vmem:[#allocation2 + $0x34] sm:$0xff]
      %v2052 = vld [vmem:[#allocation2 + $0x3c] sm:$0xff]
      %v2053 = vld [vmem:[#allocation2 + $0x44] sm:$0xf]
      %v2054 = vld [vmem:[#allocation2 + $0x48] sm:$0xff]
      %v2055 = vld [vmem:[#allocation2 + $0x50] sm:$0xff]
      %v2056 = vld [vmem:[#allocation2 + $0x58] sm:$0xff]
      %v2057 = vld [vmem:[#allocation2 + $0x60] sm:$0xff]
      %v2058 = vld [vmem:[#allocation2 + $0x68] sm:$0xf]
      %v2059 = vld [vmem:[#allocation2 + $0x6c] sm:$0xff]
      %v2060 = vld [vmem:[#allocation2 + $0x74] sm:$0xff]
      %v2061 = vld [vmem:[#allocation2 + $0x7c] sm:$0xff]
      %v2062 = vld [vmem:[#allocation2 + $0x84] sm:$0xff]
      %v2063 = vld [vmem:[#allocation2 + $0x8c] sm:$0xf]
      %v2064 = vld [vmem:[#allocation2 + $0x90] sm:$0xff]
      %v2065 = vld [vmem:[#allocation2 + $0x98] sm:$0xff]
      %v2066 = vld [vmem:[#allocation2 + $0xa0] sm:$0xff]
      %v2067 = vld [vmem:[#allocation2 + $0xa8] sm:$0xff]
      %v2068 = vld [vmem:[#allocation2 + $0xb0] sm:$0xf]
      %v2069 = vld [vmem:[#allocation2 + $0xb4] sm:$0xff]
      %v2070 = vld [vmem:[#allocation2 + $0xbc] sm:$0xff]
      %v2071 = vld [vmem:[#allocation2 + $0xc4] sm:$0xff]
      %v2072 = vld [vmem:[#allocation2 + $0xcc] sm:$0xff]
      %v2073 = vld [vmem:[#allocation2 + $0xd4] sm:$0xf]
      %v2074 = vld [vmem:[#allocation2 + $0xd8] sm:$0xff]
      %v2075 = vld [vmem:[#allocation2 + $0xe0] sm:$0xff]
      %v2076 = vld [vmem:[#allocation2 + $0xe8] sm:$0xff]
      %v2077 = vld [vmem:[#allocation2 + $0xf0] sm:$0xff]
      %v2078 = vld [vmem:[#allocation2 + $0xf8] sm:$0xf]
      %v2079 = vld [vmem:[#allocation2 + $0xfc] sm:$0xff]
      %v2080 = vld [vmem:[#allocation2 + $0x104] sm:$0xff]
      %v2081 = vld [vmem:[#allocation2 + $0x10c] sm:$0xff]
      %v2082 = vld [vmem:[#allocation2 + $0x114] sm:$0xff]
      %v2083 = vld [vmem:[#allocation2 + $0x11c] sm:$0xf]
      %v2084 = vld [vmem:[#allocation2 + $0x120] sm:$0xff]
      %v2085 = vld [vmem:[#allocation2 + $0x128] sm:$0xff]
      %v2086 = vld [vmem:[#allocation2 + $0x130] sm:$0xff]
      %v2087 = vld [vmem:[#allocation2 + $0x138] sm:$0xff]
      %v2088 = vld [vmem:[#allocation2 + $0x140] sm:$0xf]
      %v2089 = vld [vmem:[#allocation2 + $0x144] sm:$0xff]
      %v2090 = vld [vmem:[#allocation2 + $0x14c] sm:$0xff]
      %v2091 = vld [vmem:[#allocation2 + $0x154] sm:$0xff]
      %v2092 = vld [vmem:[#allocation2 + $0x15c] sm:$0xff]
      %v2093 = vld [vmem:[#allocation2 + $0x164] sm:$0xf]
      %v2094 = vld [vmem:[#allocation2 + $0x168] sm:$0xff]
      %v2095 = vld [vmem:[#allocation2 + $0x170] sm:$0xff]
      %v2096 = vld [vmem:[#allocation2 + $0x178] sm:$0xff]
      %v2097 = vld [vmem:[#allocation2 + $0x180] sm:$0xff]
      %v2098 = vld [vmem:[#allocation2 + $0x188] sm:$0xf]
      %v2099 = vld [vmem:[#allocation2 + $0x18c] sm:$0xff]
      %v2100 = vld [vmem:[#allocation2 + $0x194] sm:$0xff]
      %v2101 = vld [vmem:[#allocation2 + $0x19c] sm:$0xff]
      %v2102 = vld [vmem:[#allocation2 + $0x1a4] sm:$0xff]
      %v2103 = vld [vmem:[#allocation2 + $0x1ac] sm:$0xf]
      %v2104 = vld [vmem:[#allocation2 + $0x1b0] sm:$0xff]
      %v2105 = vld [vmem:[#allocation2 + $0x1b8] sm:$0xff]
      %v2106 = vld [vmem:[#allocation2 + $0x1c0] sm:$0xff]
      %v2107 = vld [vmem:[#allocation2 + $0x1c8] sm:$0xff]
      %v2108 = vld [vmem:[#allocation2 + $0x1d0] sm:$0xf]
      %v2109 = vld [vmem:[#allocation2 + $0x1d4] sm:$0xff]
      %v2110 = vld [vmem:[#allocation2 + $0x1dc] sm:$0xff]
      %v2111 = vld [vmem:[#allocation2 + $0x1e4] sm:$0xff]
      %v2112 = vld [vmem:[#allocation2 + $0x1ec] sm:$0xff]
      %v2113 = vld [vmem:[#allocation2 + $0x1f4] sm:$0xf]
      %v2114 = vld [vmem:[#allocation2 + $0x1f8] sm:$0xff]
      %v2115 = vld [vmem:[#allocation2 + $0x200] sm:$0xff]
      %v2116 = vld [vmem:[#allocation2 + $0x208] sm:$0xff]
      %v2117 = vld [vmem:[#allocation2 + $0x210] sm:$0xff]
      %v2118 = vld [vmem:[#allocation2 + $0x218] sm:$0xf]
      %v2119 = vld [vmem:[#allocation2 + $0x21c] sm:$0xff]
      %v2120 = vld [vmem:[#allocation2 + $0x224] sm:$0xff]
      %v2121 = vld [vmem:[#allocation2 + $0x22c] sm:$0xff]
      %v2122 = vld [vmem:[#allocation2 + $0x234] sm:$0xff]
      %v2123 = vld [vmem:[#allocation2 + $0x23c] sm:$0xf]
      %v2124 = vld [vmem:[#allocation2 + $0x240] sm:$0xff]
      %v2125 = vld [vmem:[#allocation2 + $0x248] sm:$0xff]
      %v2126 = vld [vmem:[#allocation2 + $0x250] sm:$0xff]
      %v2127 = vld [vmem:[#allocation2 + $0x258] sm:$0xff]
      %v2128 = vld [vmem:[#allocation2 + $0x260] sm:$0xf]
      %v2129 = vld [vmem:[#allocation2 + $0x264] sm:$0xff]
      %v2130 = vld [vmem:[#allocation2 + $0x26c] sm:$0xff]
      %v2131 = vld [vmem:[#allocation2 + $0x274] sm:$0xff]
      %v2132 = vld [vmem:[#allocation2 + $0x27c] sm:$0xff]
      %v2133 = vld [vmem:[#allocation2 + $0x284] sm:$0xf]
      %v2134 = vld [vmem:[#allocation2 + $0x288] sm:$0xff]
      %v2135 = vld [vmem:[#allocation2 + $0x290] sm:$0xff]
      %v2136 = vld [vmem:[#allocation2 + $0x298] sm:$0xff]
      %v2137 = vld [vmem:[#allocation2 + $0x2a0] sm:$0xff]
      %v2138 = vld [vmem:[#allocation2 + $0x2a8] sm:$0xf]
      %v2139 = vld [vmem:[#allocation2 + $0x2ac] sm:$0xff]
      %v2140 = vld [vmem:[#allocation2 + $0x2b4] sm:$0xff]
      %v2141 = vld [vmem:[#allocation2 + $0x2bc] sm:$0xff]
      %v2142 = vld [vmem:[#allocation2 + $0x2c4] sm:$0xff]
      %v2143 = vld [vmem:[#allocation2 + $0x2cc] sm:$0xf]
      %v2144 = vld [vmem:[#allocation2 + $0x2d0] sm:$0xff]
      %v2145 = vld [vmem:[#allocation2 + $0x2d8] sm:$0xff]
      %v2146 = vld [vmem:[#allocation2 + $0x2e0] sm:$0xff]
      %v2147 = vld [vmem:[#allocation2 + $0x2e8] sm:$0xff]
      %v2148 = vld [vmem:[#allocation2 + $0x2f0] sm:$0xf]
      %v2149 = vld [vmem:[#allocation2 + $0x2f4] sm:$0xff]
      %v2150 = vld [vmem:[#allocation2 + $0x2fc] sm:$0xff]
      %v2151 = vld [vmem:[#allocation2 + $0x304] sm:$0xff]
      %v2152 = vld [vmem:[#allocation2 + $0x30c] sm:$0xff]
      %v2153 = vld [vmem:[#allocation2 + $0x314] sm:$0xf]
      %v2154 = vld [vmem:[#allocation2 + $0x318] sm:$0xff]
      %v2155 = vld [vmem:[#allocation2 + $0x320] sm:$0xff]
      %v2156 = vld [vmem:[#allocation2 + $0x328] sm:$0xff]
      %v2157 = vld [vmem:[#allocation2 + $0x330] sm:$0xff]
      %v2158 = vld [vmem:[#allocation2 + $0x338] sm:$0xf]
      %v2159 = vld [vmem:[#allocation2 + $0x33c] sm:$0xff]
      %v2160 = vld [vmem:[#allocation2 + $0x344] sm:$0xff]
      %v2161 = vld [vmem:[#allocation2 + $0x34c] sm:$0xff]
      %v2162 = vld [vmem:[#allocation2 + $0x354] sm:$0xff]
      %v2163 = vld [vmem:[#allocation2 + $0x35c] sm:$0xf]
      %v2164 = vld [vmem:[#allocation2 + $0x360] sm:$0xff]
      %v2165 = vld [vmem:[#allocation2 + $0x368] sm:$0xff]
      %v2166 = vld [vmem:[#allocation2 + $0x370] sm:$0xff]
      %v2167 = vld [vmem:[#allocation2 + $0x378] sm:$0xff]
      %v2168 = vld [vmem:[#allocation2 + $0x380] sm:$0xf]
      %v2169 = vld [vmem:[#allocation2 + $0x384] sm:$0xff]
      %v2170 = vld [vmem:[#allocation2 + $0x38c] sm:$0xff]
      %v2171 = vld [vmem:[#allocation2 + $0x394] sm:$0xff]
      %v2172 = vld [vmem:[#allocation2 + $0x39c] sm:$0xff]
      %v2173 = vld [vmem:[#allocation2 + $0x3a4] sm:$0xf]
      %v2174 = vld [vmem:[#allocation2 + $0x3a8] sm:$0xff]
      %v2175 = vld [vmem:[#allocation2 + $0x3b0] sm:$0xff]
      %v2176 = vld [vmem:[#allocation2 + $0x3b8] sm:$0xff]
      %v2177 = vld [vmem:[#allocation2 + $0x3c0] sm:$0xff]
      %v2178 = vld [vmem:[#allocation2 + $0x3c8] sm:$0xf]
      %v2179 = vld [vmem:[#allocation2 + $0x3cc] sm:$0xff]
      %v2180 = vld [vmem:[#allocation2 + $0x3d4] sm:$0xff]
      %v2181 = vld [vmem:[#allocation2 + $0x3dc] sm:$0xff]
      %v2182 = vld [vmem:[#allocation2 + $0x3e4] sm:$0xff]
      %v2183 = vld [vmem:[#allocation2 + $0x3ec] sm:$0xf]
      %v2184 = vld [vmem:[#allocation2 + $0x3f0] sm:$0xff]
      %v2185 = vld [vmem:[#allocation2 + $0x3f8] sm:$0xff]
      %v2186 = vld [vmem:[#allocation2 + $0x400] sm:$0xff]
      %v2187 = vld [vmem:[#allocation2 + $0x408] sm:$0xff]
      %v2188 = vld [vmem:[#allocation2 + $0x410] sm:$0xf]
      %v2189 = vld [vmem:[#allocation2 + $0x414] sm:$0xff]
      %v2190 = vld [vmem:[#allocation2 + $0x41c] sm:$0xff]
      %v2191 = vld [vmem:[#allocation2 + $0x424] sm:$0xff]
      %v2192 = vld [vmem:[#allocation2 + $0x42c] sm:$0xff]
      %v2193 = vld [vmem:[#allocation2 + $0x434] sm:$0xf]
      %v2194 = vld [vmem:[#allocation2 + $0x438] sm:$0xff]
      %v2195 = vld [vmem:[#allocation2 + $0x440] sm:$0xff]
      %v2196 = vld [vmem:[#allocation2 + $0x448] sm:$0xff]
      %v2197 = vld [vmem:[#allocation2 + $0x450] sm:$0xff]
      %v2198 = vld [vmem:[#allocation2 + $0x458] sm:$0xf]
      %v2199 = vld [vmem:[#allocation2 + $0x45c] sm:$0xff]
      %v2200 = vld [vmem:[#allocation2 + $0x464] sm:$0xff]
      %v2201 = vld [vmem:[#allocation2 + $0x46c] sm:$0xff]
      %v2202 = vld [vmem:[#allocation2 + $0x474] sm:$0xff]
      %v2203 = vld [vmem:[#allocation2 + $0x47c] sm:$0xf]
      %v2204 = vld [vmem:[%s1] sm:$0xf]
      %v2205 = vld [vmem:[%s1 + $0x4] sm:$0xf]
      %v2206 = vld [vmem:[%s1 + $0x8] sm:$0xf]
      %v2207 = vld [vmem:[%s1 + $0xc] sm:$0xf]
      %v2208 = vld [vmem:[%s1 + $0x10] sm:$0xf]
      %v2209 = vld [vmem:[%s1 + $0x14] sm:$0xf]
      %v2210 = vld [vmem:[%s1 + $0x18] sm:$0xf]
      %v2211 = vld [vmem:[%s1 + $0x1c] sm:$0xf]
      %v2212 = vld [vmem:[%s1 + $0x20] sm:$0xf]
      %v2213 = vld [vmem:[%s1 + $0x24] sm:$0xf]
      %v2214 = vld [vmem:[%s1 + $0x28] sm:$0xf]
      %v2215 = vld [vmem:[%s1 + $0x2c] sm:$0xf]
      %v2216 = vld [vmem:[%s1 + $0x30] sm:$0xf]
      %v2217 = vld [vmem:[%s1 + $0x34] sm:$0xf]
      %v2218 = vld [vmem:[%s1 + $0x38] sm:$0xf]
      %v2219 = vld [vmem:[%s1 + $0x3c] sm:$0xf]
      %v2220 = vld [vmem:[%s1 + $0x40] sm:$0xf]
      %v2221 = vld [vmem:[%s1 + $0x44] sm:$0xf]
      %v2222 = vld [vmem:[%s1 + $0x48] sm:$0xf]
      %v2223 = vld [vmem:[%s1 + $0x4c] sm:$0xf]
      %v2224 = vld [vmem:[%s1 + $0x50] sm:$0xf]
      %v2225 = vld [vmem:[%s1 + $0x54] sm:$0xf]
      %v2226 = vld [vmem:[%s1 + $0x58] sm:$0xf]
      %v2227 = vld [vmem:[%s1 + $0x5c] sm:$0xf]
      %v2228 = vld [vmem:[%s1 + $0x60] sm:$0xf]
      %v2229 = vld [vmem:[%s1 + $0x64] sm:$0xf]
      %v2230 = vld [vmem:[%s1 + $0x68] sm:$0xf]
      %v2231 = vld [vmem:[%s1 + $0x6c] sm:$0xf]
      %v2232 = vld [vmem:[%s1 + $0x70] sm:$0xf]
      %v2233 = vld [vmem:[%s1 + $0x74] sm:$0xf]
      %v2234 = vld [vmem:[%s1 + $0x78] sm:$0xf]
      %v2235 = vld [vmem:[%s1 + $0x7c] sm:$0xf]
      %v2236 = vld [vmem:[%s1 + $0x80] sm:$0xf]
      %v2237 = vld [vmem:[%s1 + $0x84] sm:$0xf]
      %v2238 = vld [vmem:[%s1 + $0x88] sm:$0xf]
      %v2239 = vld [vmem:[%s1 + $0x8c] sm:$0xf]
      %v2240 = vld [vmem:[%s1 + $0x90] sm:$0xf]
      %v2241 = vld [vmem:[%s1 + $0x94] sm:$0xf]
      %v2242 = vld [vmem:[%s1 + $0x98] sm:$0xf]
      %v2243 = vld [vmem:[%s1 + $0x9c] sm:$0xf]
      %v2244 = vld [vmem:[%s1 + $0xa0] sm:$0xf]
      %v2245 = vld [vmem:[%s1 + $0xa4] sm:$0xf]
      %v2246 = vld [vmem:[%s1 + $0xa8] sm:$0xf]
      %v2247 = vld [vmem:[%s1 + $0xac] sm:$0xf]
      %v2248 = vld [vmem:[%s1 + $0xb0] sm:$0xf]
      %v2249 = vld [vmem:[%s1 + $0xb4] sm:$0xf]
      %v2250 = vld [vmem:[%s1 + $0xb8] sm:$0xf]
      %v2251 = vld [vmem:[%s1 + $0xbc] sm:$0xf]
      %v2252 = vld [vmem:[%s1 + $0xc0] sm:$0xf]
      %v2253 = vld [vmem:[%s1 + $0xc4] sm:$0xf]
      %v2254 = vld [vmem:[%s1 + $0xc8] sm:$0xf]
      %v2255 = vld [vmem:[%s1 + $0xcc] sm:$0xf]
      %v2256 = vld [vmem:[%s1 + $0xd0] sm:$0xf]
      %v2257 = vld [vmem:[%s1 + $0xd4] sm:$0xf]
      %v2258 = vld [vmem:[%s1 + $0xd8] sm:$0xf]
      %v2259 = vld [vmem:[%s1 + $0xdc] sm:$0xf]
      %v2260 = vld [vmem:[%s1 + $0xe0] sm:$0xf]
      %v2261 = vld [vmem:[%s1 + $0xe4] sm:$0xf]
      %v2262 = vld [vmem:[%s1 + $0xe8] sm:$0xf]
      %v2263 = vld [vmem:[%s1 + $0xec] sm:$0xf]
      %v2264 = vld [vmem:[%s1 + $0xf0] sm:$0xf]
      %v2265 = vld [vmem:[%s1 + $0xf4] sm:$0xf]
      %v2266 = vld [vmem:[%s1 + $0xf8] sm:$0xf]
      %v2267 = vld [vmem:[%s1 + $0xfc] sm:$0xf]
      %v2268 = vld [vmem:[%s1 + $0x100] sm:$0xf]
      %v2269 = vld [vmem:[%s1 + $0x104] sm:$0xf]
      %v2270 = vld [vmem:[%s1 + $0x108] sm:$0xf]
      %v2271 = vld [vmem:[%s1 + $0x10c] sm:$0xf]
      %v2272 = vld [vmem:[%s1 + $0x110] sm:$0xf]
      %v2273 = vld [vmem:[%s1 + $0x114] sm:$0xf]
      %v2274 = vld [vmem:[%s1 + $0x118] sm:$0xf]
      %v2275 = vld [vmem:[%s1 + $0x11c] sm:$0xf]
      %v2276 = vld [vmem:[%s1 + $0x120] sm:$0xf]
      %v2277 = vld [vmem:[%s1 + $0x124] sm:$0xf]
      %v2278 = vld [vmem:[%s1 + $0x128] sm:$0xf]
      %v2279 = vld [vmem:[%s1 + $0x12c] sm:$0xf]
      %v2280 = vld [vmem:[%s1 + $0x130] sm:$0xf]
      %v2281 = vld [vmem:[%s1 + $0x134] sm:$0xf]
      %v2282 = vld [vmem:[%s1 + $0x138] sm:$0xf]
      %v2283 = vld [vmem:[%s1 + $0x13c] sm:$0xf]
      %v2284 = vld [vmem:[%s1 + $0x140] sm:$0xf]
      %v2285 = vld [vmem:[%s1 + $0x144] sm:$0xf]
      %v2286 = vld [vmem:[%s1 + $0x148] sm:$0xf]
      %v2287 = vld [vmem:[%s1 + $0x14c] sm:$0xf]
      %v2288 = vld [vmem:[%s1 + $0x150] sm:$0xf]
      %v2289 = vld [vmem:[%s1 + $0x154] sm:$0xf]
      %v2290 = vld [vmem:[%s1 + $0x158] sm:$0xf]
      %v2291 = vld [vmem:[%s1 + $0x15c] sm:$0xf]
      %v2292 = vld [vmem:[%s1 + $0x160] sm:$0xf]
      %v2293 = vld [vmem:[%s1 + $0x164] sm:$0xf]
      %v2294 = vld [vmem:[%s1 + $0x168] sm:$0xf]
      %v2295 = vld [vmem:[%s1 + $0x16c] sm:$0xf]
      %v2296 = vld [vmem:[%s1 + $0x170] sm:$0xf]
      %v2297 = vld [vmem:[%s1 + $0x174] sm:$0xf]
      %v2298 = vld [vmem:[%s1 + $0x178] sm:$0xf]
      %v2299 = vld [vmem:[%s1 + $0x17c] sm:$0xf]
      %v2300 = vld [vmem:[%s1 + $0x180] sm:$0xf]
      %v2301 = vld [vmem:[%s1 + $0x184] sm:$0xf]
      %v2302 = vld [vmem:[%s1 + $0x188] sm:$0xf]
      %v2303 = vld [vmem:[%s1 + $0x18c] sm:$0xf]
      %v2304 = vld [vmem:[%s1 + $0x190] sm:$0xf]
      %v2305 = vld [vmem:[%s1 + $0x194] sm:$0xf]
      %v2306 = vld [vmem:[%s1 + $0x198] sm:$0xf]
      %v2307 = vld [vmem:[%s1 + $0x19c] sm:$0xf]
      %v2308 = vld [vmem:[%s1 + $0x1a0] sm:$0xf]
      %v2309 = vld [vmem:[%s1 + $0x1a4] sm:$0xf]
      %v2310 = vld [vmem:[%s1 + $0x1a8] sm:$0xf]
      %v2311 = vld [vmem:[%s1 + $0x1ac] sm:$0xf]
      %v2312 = vld [vmem:[%s1 + $0x1b0] sm:$0xf]
      %v2313 = vld [vmem:[%s1 + $0x1b4] sm:$0xf]
      %v2314 = vld [vmem:[%s1 + $0x1b8] sm:$0xf]
      %v2315 = vld [vmem:[%s1 + $0x1bc] sm:$0xf]
      %v2316 = vld [vmem:[%s1 + $0x1c0] sm:$0xf]
      %v2317 = vld [vmem:[%s1 + $0x1c4] sm:$0xf]
      %v2318 = vld [vmem:[%s1 + $0x1c8] sm:$0xf]
      %v2319 = vld [vmem:[%s1 + $0x1cc] sm:$0xf]
      %v2320 = vld [vmem:[%s1 + $0x1d0] sm:$0xf]
      %v2321 = vld [vmem:[%s1 + $0x1d4] sm:$0xf]
      %v2322 = vld [vmem:[%s1 + $0x1d8] sm:$0xf]
      %v2323 = vld [vmem:[%s1 + $0x1dc] sm:$0xf]
      %v2324 = vld [vmem:[%s1 + $0x1e0] sm:$0xf]
      %v2325 = vld [vmem:[%s1 + $0x1e4] sm:$0xf]
      %v2326 = vld [vmem:[%s1 + $0x1e8] sm:$0xf]
      %v2327 = vld [vmem:[%s1 + $0x1ec] sm:$0xf]
      %v2328 = vld [vmem:[%s1 + $0x1f0] sm:$0xf]
      %v2329 = vld [vmem:[%s1 + $0x1f4] sm:$0xf]
      %v2330 = vld [vmem:[%s1 + $0x1f8] sm:$0xf]
      %v2331 = vld [vmem:[%s1 + $0x1fc] sm:$0xf]
      %v2332 = vld [vmem:[%s1 + $0x200] sm:$0xf]
      %v2333 = vld [vmem:[%s1 + $0x204] sm:$0xf]
      %v2334 = vld [vmem:[%s1 + $0x208] sm:$0xf]
      %v2335 = vld [vmem:[%s1 + $0x20c] sm:$0xf]
      %v2336 = vld [vmem:[%s1 + $0x210] sm:$0xf]
      %v2337 = vld [vmem:[%s1 + $0x214] sm:$0xf]
      %v2338 = vld [vmem:[%s1 + $0x218] sm:$0xf]
      %v2339 = vld [vmem:[%s1 + $0x21c] sm:$0xf]
      %v2340 = vld [vmem:[%s1 + $0x220] sm:$0xf]
      %v2341 = vld [vmem:[%s1 + $0x224] sm:$0xf]
      %v2342 = vld [vmem:[%s1 + $0x228] sm:$0xf]
      %v2343 = vld [vmem:[%s1 + $0x22c] sm:$0xf]
      %v2344 = vld [vmem:[%s1 + $0x230] sm:$0xf]
      %v2345 = vld [vmem:[%s1 + $0x234] sm:$0xf]
      %v2346 = vld [vmem:[%s1 + $0x238] sm:$0xf]
      %v2347 = vld [vmem:[%s1 + $0x23c] sm:$0xf]
      %v2508 = vunpack.c.l.b16 %v2044
      %v2509 = vunpack.c.h.b16 %v2044
      %v2510 = vunpack.c.l.b16 %v2045
      %v2511 = vunpack.c.h.b16 %v2045
      %v2512 = vunpack.c.l.b16 %v2046
      %v2513 = vunpack.c.h.b16 %v2046
      %v2514 = vunpack.c.l.b16 %v2047
      %v2515 = vunpack.c.h.b16 %v2047
      %v2516 = vunpack.c.l.b16 %v2048
      %v2517 = vunpack.c.l.b16 %v2049
      %v2518 = vunpack.c.h.b16 %v2049
      %v2519 = vunpack.c.l.b16 %v2050
      %v2520 = vunpack.c.h.b16 %v2050
      %v2521 = vunpack.c.l.b16 %v2051
      %v2522 = vunpack.c.h.b16 %v2051
      %v2523 = vunpack.c.l.b16 %v2052
      %v2524 = vunpack.c.h.b16 %v2052
      %v2525 = vunpack.c.l.b16 %v2053
      %v2526 = vunpack.c.l.b16 %v2054
      %v2527 = vunpack.c.h.b16 %v2054
      %v2528 = vunpack.c.l.b16 %v2055
      %v2529 = vunpack.c.h.b16 %v2055
      %v2530 = vunpack.c.l.b16 %v2056
      %v2531 = vunpack.c.h.b16 %v2056
      %v2532 = vunpack.c.l.b16 %v2057
      %v2533 = vunpack.c.h.b16 %v2057
      %v2534 = vunpack.c.l.b16 %v2058
      %v2535 = vunpack.c.l.b16 %v2059
      %v2536 = vunpack.c.h.b16 %v2059
      %v2537 = vunpack.c.l.b16 %v2060
      %v2538 = vunpack.c.h.b16 %v2060
      %v2539 = vunpack.c.l.b16 %v2061
      %v2540 = vunpack.c.h.b16 %v2061
      %v2541 = vunpack.c.l.b16 %v2062
      %v2542 = vunpack.c.h.b16 %v2062
      %v2543 = vunpack.c.l.b16 %v2063
      %v2544 = vunpack.c.l.b16 %v2064
      %v2545 = vunpack.c.h.b16 %v2064
      %v2546 = vunpack.c.l.b16 %v2065
      %v2547 = vunpack.c.h.b16 %v2065
      %v2548 = vunpack.c.l.b16 %v2066
      %v2549 = vunpack.c.h.b16 %v2066
      %v2550 = vunpack.c.l.b16 %v2067
      %v2551 = vunpack.c.h.b16 %v2067
      %v2552 = vunpack.c.l.b16 %v2068
      %v2553 = vunpack.c.l.b16 %v2069
      %v2554 = vunpack.c.h.b16 %v2069
      %v2555 = vunpack.c.l.b16 %v2070
      %v2556 = vunpack.c.h.b16 %v2070
      %v2557 = vunpack.c.l.b16 %v2071
      %v2558 = vunpack.c.h.b16 %v2071
      %v2559 = vunpack.c.l.b16 %v2072
      %v2560 = vunpack.c.h.b16 %v2072
      %v2561 = vunpack.c.l.b16 %v2073
      %v2562 = vunpack.c.l.b16 %v2074
      %v2563 = vunpack.c.h.b16 %v2074
      %v2564 = vunpack.c.l.b16 %v2075
      %v2565 = vunpack.c.h.b16 %v2075
      %v2566 = vunpack.c.l.b16 %v2076
      %v2567 = vunpack.c.h.b16 %v2076
      %v2568 = vunpack.c.l.b16 %v2077
      %v2569 = vunpack.c.h.b16 %v2077
      %v2570 = vunpack.c.l.b16 %v2078
      %v2571 = vunpack.c.l.b16 %v2079
      %v2572 = vunpack.c.h.b16 %v2079
      %v2573 = vunpack.c.l.b16 %v2080
      %v2574 = vunpack.c.h.b16 %v2080
      %v2575 = vunpack.c.l.b16 %v2081
      %v2576 = vunpack.c.h.b16 %v2081
      %v2577 = vunpack.c.l.b16 %v2082
      %v2578 = vunpack.c.h.b16 %v2082
      %v2579 = vunpack.c.l.b16 %v2083
      %v2580 = vunpack.c.l.b16 %v2084
      %v2581 = vunpack.c.h.b16 %v2084
      %v2582 = vunpack.c.l.b16 %v2085
      %v2583 = vunpack.c.h.b16 %v2085
      %v2584 = vunpack.c.l.b16 %v2086
      %v2585 = vunpack.c.h.b16 %v2086
      %v2586 = vunpack.c.l.b16 %v2087
      %v2587 = vunpack.c.h.b16 %v2087
      %v2588 = vunpack.c.l.b16 %v2088
      %v2589 = vunpack.c.l.b16 %v2089
      %v2590 = vunpack.c.h.b16 %v2089
      %v2591 = vunpack.c.l.b16 %v2090
      %v2592 = vunpack.c.h.b16 %v2090
      %v2593 = vunpack.c.l.b16 %v2091
      %v2594 = vunpack.c.h.b16 %v2091
      %v2595 = vunpack.c.l.b16 %v2092
      %v2596 = vunpack.c.h.b16 %v2092
      %v2597 = vunpack.c.l.b16 %v2093
      %v2598 = vunpack.c.l.b16 %v2094
      %v2599 = vunpack.c.h.b16 %v2094
      %v2600 = vunpack.c.l.b16 %v2095
      %v2601 = vunpack.c.h.b16 %v2095
      %v2602 = vunpack.c.l.b16 %v2096
      %v2603 = vunpack.c.h.b16 %v2096
      %v2604 = vunpack.c.l.b16 %v2097
      %v2605 = vunpack.c.h.b16 %v2097
      %v2606 = vunpack.c.l.b16 %v2098
      %v2607 = vunpack.c.l.b16 %v2099
      %v2608 = vunpack.c.h.b16 %v2099
      %v2609 = vunpack.c.l.b16 %v2100
      %v2610 = vunpack.c.h.b16 %v2100
      %v2611 = vunpack.c.l.b16 %v2101
      %v2612 = vunpack.c.h.b16 %v2101
      %v2613 = vunpack.c.l.b16 %v2102
      %v2614 = vunpack.c.h.b16 %v2102
      %v2615 = vunpack.c.l.b16 %v2103
      %v2616 = vunpack.c.l.b16 %v2104
      %v2617 = vunpack.c.h.b16 %v2104
      %v2618 = vunpack.c.l.b16 %v2105
      %v2619 = vunpack.c.h.b16 %v2105
      %v2620 = vunpack.c.l.b16 %v2106
      %v2621 = vunpack.c.h.b16 %v2106
      %v2622 = vunpack.c.l.b16 %v2107
      %v2623 = vunpack.c.h.b16 %v2107
      %v2624 = vunpack.c.l.b16 %v2108
      %v2625 = vunpack.c.l.b16 %v2109
      %v2626 = vunpack.c.h.b16 %v2109
      %v2627 = vunpack.c.l.b16 %v2110
      %v2628 = vunpack.c.h.b16 %v2110
      %v2629 = vunpack.c.l.b16 %v2111
      %v2630 = vunpack.c.h.b16 %v2111
      %v2631 = vunpack.c.l.b16 %v2112
      %v2632 = vunpack.c.h.b16 %v2112
      %v2633 = vunpack.c.l.b16 %v2113
      %v2634 = vunpack.c.l.b16 %v2114
      %v2635 = vunpack.c.h.b16 %v2114
      %v2636 = vunpack.c.l.b16 %v2115
      %v2637 = vunpack.c.h.b16 %v2115
      %v2638 = vunpack.c.l.b16 %v2116
      %v2639 = vunpack.c.h.b16 %v2116
      %v2640 = vunpack.c.l.b16 %v2117
      %v2641 = vunpack.c.h.b16 %v2117
      %v2642 = vunpack.c.l.b16 %v2118
      %v2643 = vunpack.c.l.b16 %v2119
      %v2644 = vunpack.c.h.b16 %v2119
      %v2645 = vunpack.c.l.b16 %v2120
      %v2646 = vunpack.c.h.b16 %v2120
      %v2647 = vunpack.c.l.b16 %v2121
      %v2648 = vunpack.c.h.b16 %v2121
      %v2649 = vunpack.c.l.b16 %v2122
      %v2650 = vunpack.c.h.b16 %v2122
      %v2651 = vunpack.c.l.b16 %v2123
      %v2652 = vunpack.c.l.b16 %v2124
      %v2653 = vunpack.c.h.b16 %v2124
      %v2654 = vunpack.c.l.b16 %v2125
      %v2655 = vunpack.c.h.b16 %v2125
      %v2656 = vunpack.c.l.b16 %v2126
      %v2657 = vunpack.c.h.b16 %v2126
      %v2658 = vunpack.c.l.b16 %v2127
      %v2659 = vunpack.c.h.b16 %v2127
      %v2660 = vunpack.c.l.b16 %v2128
      %v2661 = vunpack.c.l.b16 %v2129
      %v2662 = vunpack.c.h.b16 %v2129
      %v2663 = vunpack.c.l.b16 %v2130
      %v2664 = vunpack.c.h.b16 %v2130
      %v2665 = vunpack.c.l.b16 %v2131
      %v2666 = vunpack.c.h.b16 %v2131
      %v2667 = vunpack.c.l.b16 %v2132
      %v2668 = vunpack.c.h.b16 %v2132
      %v2669 = vunpack.c.l.b16 %v2133
      %v2670 = vunpack.c.l.b16 %v2134
      %v2671 = vunpack.c.h.b16 %v2134
      %v2672 = vunpack.c.l.b16 %v2135
      %v2673 = vunpack.c.h.b16 %v2135
      %v2674 = vunpack.c.l.b16 %v2136
      %v2675 = vunpack.c.h.b16 %v2136
      %v2676 = vunpack.c.l.b16 %v2137
      %v2677 = vunpack.c.h.b16 %v2137
      %v2678 = vunpack.c.l.b16 %v2138
      %v2679 = vunpack.c.l.b16 %v2139
      %v2680 = vunpack.c.h.b16 %v2139
      %v2681 = vunpack.c.l.b16 %v2140
      %v2682 = vunpack.c.h.b16 %v2140
      %v2683 = vunpack.c.l.b16 %v2141
      %v2684 = vunpack.c.h.b16 %v2141
      %v2685 = vunpack.c.l.b16 %v2142
      %v2686 = vunpack.c.h.b16 %v2142
      %v2687 = vunpack.c.l.b16 %v2143
      %v2688 = vunpack.c.l.b16 %v2144
      %v2689 = vunpack.c.h.b16 %v2144
      %v2690 = vunpack.c.l.b16 %v2145
      %v2691 = vunpack.c.h.b16 %v2145
      %v2692 = vunpack.c.l.b16 %v2146
      %v2693 = vunpack.c.h.b16 %v2146
      %v2694 = vunpack.c.l.b16 %v2147
      %v2695 = vunpack.c.h.b16 %v2147
      %v2696 = vunpack.c.l.b16 %v2148
      %v2697 = vunpack.c.l.b16 %v2149
      %v2698 = vunpack.c.h.b16 %v2149
      %v2699 = vunpack.c.l.b16 %v2150
      %v2700 = vunpack.c.h.b16 %v2150
      %v2701 = vunpack.c.l.b16 %v2151
      %v2702 = vunpack.c.h.b16 %v2151
      %v2703 = vunpack.c.l.b16 %v2152
      %v2704 = vunpack.c.h.b16 %v2152
      %v2705 = vunpack.c.l.b16 %v2153
      %v2706 = vunpack.c.l.b16 %v2154
      %v2707 = vunpack.c.h.b16 %v2154
      %v2708 = vunpack.c.l.b16 %v2155
      %v2709 = vunpack.c.h.b16 %v2155
      %v2710 = vunpack.c.l.b16 %v2156
      %v2711 = vunpack.c.h.b16 %v2156
      %v2712 = vunpack.c.l.b16 %v2157
      %v2713 = vunpack.c.h.b16 %v2157
      %v2714 = vunpack.c.l.b16 %v2158
      %v2715 = vunpack.c.l.b16 %v2159
      %v2716 = vunpack.c.h.b16 %v2159
      %v2717 = vunpack.c.l.b16 %v2160
      %v2718 = vunpack.c.h.b16 %v2160
      %v2719 = vunpack.c.l.b16 %v2161
      %v2720 = vunpack.c.h.b16 %v2161
      %v2721 = vunpack.c.l.b16 %v2162
      %v2722 = vunpack.c.h.b16 %v2162
      %v2723 = vunpack.c.l.b16 %v2163
      %v2724 = vunpack.c.l.b16 %v2164
      %v2725 = vunpack.c.h.b16 %v2164
      %v2726 = vunpack.c.l.b16 %v2165
      %v2727 = vunpack.c.h.b16 %v2165
      %v2728 = vunpack.c.l.b16 %v2166
      %v2729 = vunpack.c.h.b16 %v2166
      %v2730 = vunpack.c.l.b16 %v2167
      %v2731 = vunpack.c.h.b16 %v2167
      %v2732 = vunpack.c.l.b16 %v2168
      %v2733 = vunpack.c.l.b16 %v2169
      %v2734 = vunpack.c.h.b16 %v2169
      %v2735 = vunpack.c.l.b16 %v2170
      %v2736 = vunpack.c.h.b16 %v2170
      %v2737 = vunpack.c.l.b16 %v2171
      %v2738 = vunpack.c.h.b16 %v2171
      %v2739 = vunpack.c.l.b16 %v2172
      %v2740 = vunpack.c.h.b16 %v2172
      %v2741 = vunpack.c.l.b16 %v2173
      %v2742 = vunpack.c.l.b16 %v2174
      %v2743 = vunpack.c.h.b16 %v2174
      %v2744 = vunpack.c.l.b16 %v2175
      %v2745 = vunpack.c.h.b16 %v2175
      %v2746 = vunpack.c.l.b16 %v2176
      %v2747 = vunpack.c.h.b16 %v2176
      %v2748 = vunpack.c.l.b16 %v2177
      %v2749 = vunpack.c.h.b16 %v2177
      %v2750 = vunpack.c.l.b16 %v2178
      %v2751 = vunpack.c.l.b16 %v2179
      %v2752 = vunpack.c.h.b16 %v2179
      %v2753 = vunpack.c.l.b16 %v2180
      %v2754 = vunpack.c.h.b16 %v2180
      %v2755 = vunpack.c.l.b16 %v2181
      %v2756 = vunpack.c.h.b16 %v2181
      %v2757 = vunpack.c.l.b16 %v2182
      %v2758 = vunpack.c.h.b16 %v2182
      %v2759 = vunpack.c.l.b16 %v2183
      %v2760 = vunpack.c.l.b16 %v2184
      %v2761 = vunpack.c.h.b16 %v2184
      %v2762 = vunpack.c.l.b16 %v2185
      %v2763 = vunpack.c.h.b16 %v2185
      %v2764 = vunpack.c.l.b16 %v2186
      %v2765 = vunpack.c.h.b16 %v2186
      %v2766 = vunpack.c.l.b16 %v2187
      %v2767 = vunpack.c.h.b16 %v2187
      %v2768 = vunpack.c.l.b16 %v2188
      %v2769 = vunpack.c.l.b16 %v2189
      %v2770 = vunpack.c.h.b16 %v2189
      %v2771 = vunpack.c.l.b16 %v2190
      %v2772 = vunpack.c.h.b16 %v2190
      %v2773 = vunpack.c.l.b16 %v2191
      %v2774 = vunpack.c.h.b16 %v2191
      %v2775 = vunpack.c.l.b16 %v2192
      %v2776 = vunpack.c.h.b16 %v2192
      %v2777 = vunpack.c.l.b16 %v2193
      %v2778 = vunpack.c.l.b16 %v2194
      %v2779 = vunpack.c.h.b16 %v2194
      %v2780 = vunpack.c.l.b16 %v2195
      %v2781 = vunpack.c.h.b16 %v2195
      %v2782 = vunpack.c.l.b16 %v2196
      %v2783 = vunpack.c.h.b16 %v2196
      %v2784 = vunpack.c.l.b16 %v2197
      %v2785 = vunpack.c.h.b16 %v2197
      %v2786 = vunpack.c.l.b16 %v2198
      %v2787 = vunpack.c.l.b16 %v2199
      %v2788 = vunpack.c.h.b16 %v2199
      %v2789 = vunpack.c.l.b16 %v2200
      %v2790 = vunpack.c.h.b16 %v2200
      %v2791 = vunpack.c.l.b16 %v2201
      %v2792 = vunpack.c.h.b16 %v2201
      %v2793 = vunpack.c.l.b16 %v2202
      %v2794 = vunpack.c.h.b16 %v2202
      %v2795 = vunpack.c.l.b16 %v2203
      %v2796 = vpack.c.b16 %v2517, %v2508
      %v2797 = vpack.c.b16 %v2518, %v2509
      %v2798 = vpack.c.b16 %v2519, %v2510
      %v2799 = vpack.c.b16 %v2520, %v2511
      %v2800 = vpack.c.b16 %v2521, %v2512
      %v2801 = vpack.c.b16 %v2522, %v2513
      %v2802 = vpack.c.b16 %v2523, %v2514
      %v2803 = vpack.c.b16 %v2524, %v2515
      %v2804 = vpack.c.b16 %v2525, %v2516
      %v2805 = vpack.c.b16 %v2535, %v2526
      %v2806 = vpack.c.b16 %v2536, %v2527
      %v2807 = vpack.c.b16 %v2537, %v2528
      %v2808 = vpack.c.b16 %v2538, %v2529
      %v2809 = vpack.c.b16 %v2539, %v2530
      %v2810 = vpack.c.b16 %v2540, %v2531
      %v2811 = vpack.c.b16 %v2541, %v2532
      %v2812 = vpack.c.b16 %v2542, %v2533
      %v2813 = vpack.c.b16 %v2543, %v2534
      %v2814 = vpack.c.b16 %v2553, %v2544
      %v2815 = vpack.c.b16 %v2554, %v2545
      %v2816 = vpack.c.b16 %v2555, %v2546
      %v2817 = vpack.c.b16 %v2556, %v2547
      %v2818 = vpack.c.b16 %v2557, %v2548
      %v2819 = vpack.c.b16 %v2558, %v2549
      %v2820 = vpack.c.b16 %v2559, %v2550
      %v2821 = vpack.c.b16 %v2560, %v2551
      %v2822 = vpack.c.b16 %v2561, %v2552
      %v2823 = vpack.c.b16 %v2571, %v2562
      %v2824 = vpack.c.b16 %v2572, %v2563
      %v2825 = vpack.c.b16 %v2573, %v2564
      %v2826 = vpack.c.b16 %v2574, %v2565
      %v2827 = vpack.c.b16 %v2575, %v2566
      %v2828 = vpack.c.b16 %v2576, %v2567
      %v2829 = vpack.c.b16 %v2577, %v2568
      %v2830 = vpack.c.b16 %v2578, %v2569
      %v2831 = vpack.c.b16 %v2579, %v2570
      %v2832 = vpack.c.b16 %v2589, %v2580
      %v2833 = vpack.c.b16 %v2590, %v2581
      %v2834 = vpack.c.b16 %v2591, %v2582
      %v2835 = vpack.c.b16 %v2592, %v2583
      %v2836 = vpack.c.b16 %v2593, %v2584
      %v2837 = vpack.c.b16 %v2594, %v2585
      %v2838 = vpack.c.b16 %v2595, %v2586
      %v2839 = vpack.c.b16 %v2596, %v2587
      %v2840 = vpack.c.b16 %v2597, %v2588
      %v2841 = vpack.c.b16 %v2607, %v2598
      %v2842 = vpack.c.b16 %v2608, %v2599
      %v2843 = vpack.c.b16 %v2609, %v2600
      %v2844 = vpack.c.b16 %v2610, %v2601
      %v2845 = vpack.c.b16 %v2611, %v2602
      %v2846 = vpack.c.b16 %v2612, %v2603
      %v2847 = vpack.c.b16 %v2613, %v2604
      %v2848 = vpack.c.b16 %v2614, %v2605
      %v2849 = vpack.c.b16 %v2615, %v2606
      %v2850 = vpack.c.b16 %v2625, %v2616
      %v2851 = vpack.c.b16 %v2626, %v2617
      %v2852 = vpack.c.b16 %v2627, %v2618
      %v2853 = vpack.c.b16 %v2628, %v2619
      %v2854 = vpack.c.b16 %v2629, %v2620
      %v2855 = vpack.c.b16 %v2630, %v2621
      %v2856 = vpack.c.b16 %v2631, %v2622
      %v2857 = vpack.c.b16 %v2632, %v2623
      %v2858 = vpack.c.b16 %v2633, %v2624
      %v2859 = vpack.c.b16 %v2643, %v2634
      %v2860 = vpack.c.b16 %v2644, %v2635
      %v2861 = vpack.c.b16 %v2645, %v2636
      %v2862 = vpack.c.b16 %v2646, %v2637
      %v2863 = vpack.c.b16 %v2647, %v2638
      %v2864 = vpack.c.b16 %v2648, %v2639
      %v2865 = vpack.c.b16 %v2649, %v2640
      %v2866 = vpack.c.b16 %v2650, %v2641
      %v2867 = vpack.c.b16 %v2651, %v2642
      %v2868 = vpack.c.b16 %v2661, %v2652
      %v2869 = vpack.c.b16 %v2662, %v2653
      %v2870 = vpack.c.b16 %v2663, %v2654
      %v2871 = vpack.c.b16 %v2664, %v2655
      %v2872 = vpack.c.b16 %v2665, %v2656
      %v2873 = vpack.c.b16 %v2666, %v2657
      %v2874 = vpack.c.b16 %v2667, %v2658
      %v2875 = vpack.c.b16 %v2668, %v2659
      %v2876 = vpack.c.b16 %v2669, %v2660
      %v2877 = vpack.c.b16 %v2679, %v2670
      %v2878 = vpack.c.b16 %v2680, %v2671
      %v2879 = vpack.c.b16 %v2681, %v2672
      %v2880 = vpack.c.b16 %v2682, %v2673
      %v2881 = vpack.c.b16 %v2683, %v2674
      %v2882 = vpack.c.b16 %v2684, %v2675
      %v2883 = vpack.c.b16 %v2685, %v2676
      %v2884 = vpack.c.b16 %v2686, %v2677
      %v2885 = vpack.c.b16 %v2687, %v2678
      %v2886 = vpack.c.b16 %v2697, %v2688
      %v2887 = vpack.c.b16 %v2698, %v2689
      %v2888 = vpack.c.b16 %v2699, %v2690
      %v2889 = vpack.c.b16 %v2700, %v2691
      %v2890 = vpack.c.b16 %v2701, %v2692
      %v2891 = vpack.c.b16 %v2702, %v2693
      %v2892 = vpack.c.b16 %v2703, %v2694
      %v2893 = vpack.c.b16 %v2704, %v2695
      %v2894 = vpack.c.b16 %v2705, %v2696
      %v2895 = vpack.c.b16 %v2715, %v2706
      %v2896 = vpack.c.b16 %v2716, %v2707
      %v2897 = vpack.c.b16 %v2717, %v2708
      %v2898 = vpack.c.b16 %v2718, %v2709
      %v2899 = vpack.c.b16 %v2719, %v2710
      %v2900 = vpack.c.b16 %v2720, %v2711
      %v2901 = vpack.c.b16 %v2721, %v2712
      %v2902 = vpack.c.b16 %v2722, %v2713
      %v2903 = vpack.c.b16 %v2723, %v2714
      %v2904 = vpack.c.b16 %v2733, %v2724
      %v2905 = vpack.c.b16 %v2734, %v2725
      %v2906 = vpack.c.b16 %v2735, %v2726
      %v2907 = vpack.c.b16 %v2736, %v2727
      %v2908 = vpack.c.b16 %v2737, %v2728
      %v2909 = vpack.c.b16 %v2738, %v2729
      %v2910 = vpack.c.b16 %v2739, %v2730
      %v2911 = vpack.c.b16 %v2740, %v2731
      %v2912 = vpack.c.b16 %v2741, %v2732
      %v2913 = vpack.c.b16 %v2751, %v2742
      %v2914 = vpack.c.b16 %v2752, %v2743
      %v2915 = vpack.c.b16 %v2753, %v2744
      %v2916 = vpack.c.b16 %v2754, %v2745
      %v2917 = vpack.c.b16 %v2755, %v2746
      %v2918 = vpack.c.b16 %v2756, %v2747
      %v2919 = vpack.c.b16 %v2757, %v2748
      %v2920 = vpack.c.b16 %v2758, %v2749
      %v2921 = vpack.c.b16 %v2759, %v2750
      %v2922 = vpack.c.b16 %v2769, %v2760
      %v2923 = vpack.c.b16 %v2770, %v2761
      %v2924 = vpack.c.b16 %v2771, %v2762
      %v2925 = vpack.c.b16 %v2772, %v2763
      %v2926 = vpack.c.b16 %v2773, %v2764
      %v2927 = vpack.c.b16 %v2774, %v2765
      %v2928 = vpack.c.b16 %v2775, %v2766
      %v2929 = vpack.c.b16 %v2776, %v2767
      %v2930 = vpack.c.b16 %v2777, %v2768
      %v2931 = vpack.c.b16 %v2787, %v2778
      %v2932 = vpack.c.b16 %v2788, %v2779
      %v2933 = vpack.c.b16 %v2789, %v2780
      %v2934 = vpack.c.b16 %v2790, %v2781
      %v2935 = vpack.c.b16 %v2791, %v2782
      %v2936 = vpack.c.b16 %v2792, %v2783
      %v2937 = vpack.c.b16 %v2793, %v2784
      %v2938 = vpack.c.b16 %v2794, %v2785
      %v2939 = vpack.c.b16 %v2795, %v2786
      %v3228 = vunpack.c.l.b16 %v2204
      %v3229 = vunpack.c.l.b16 %v2205
      %v3230 = vunpack.c.l.b16 %v2206
      %v3231 = vunpack.c.l.b16 %v2207
      %v3232 = vunpack.c.l.b16 %v2208
      %v3233 = vunpack.c.l.b16 %v2209
      %v3234 = vunpack.c.l.b16 %v2210
      %v3235 = vunpack.c.l.b16 %v2211
      %v3236 = vunpack.c.l.b16 %v2212
      %v3237 = vunpack.c.l.b16 %v2213
      %v3238 = vunpack.c.l.b16 %v2214
      %v3239 = vunpack.c.l.b16 %v2215
      %v3240 = vunpack.c.l.b16 %v2216
      %v3241 = vunpack.c.l.b16 %v2217
      %v3242 = vunpack.c.l.b16 %v2218
      %v3243 = vunpack.c.l.b16 %v2219
      %v3244 = vunpack.c.l.b16 %v2220
      %v3245 = vunpack.c.l.b16 %v2221
      %v3246 = vunpack.c.l.b16 %v2222
      %v3247 = vunpack.c.l.b16 %v2223
      %v3248 = vunpack.c.l.b16 %v2224
      %v3249 = vunpack.c.l.b16 %v2225
      %v3250 = vunpack.c.l.b16 %v2226
      %v3251 = vunpack.c.l.b16 %v2227
      %v3252 = vunpack.c.l.b16 %v2228
      %v3253 = vunpack.c.l.b16 %v2229
      %v3254 = vunpack.c.l.b16 %v2230
      %v3255 = vunpack.c.l.b16 %v2231
      %v3256 = vunpack.c.l.b16 %v2232
      %v3257 = vunpack.c.l.b16 %v2233
      %v3258 = vunpack.c.l.b16 %v2234
      %v3259 = vunpack.c.l.b16 %v2235
      %v3260 = vunpack.c.l.b16 %v2236
      %v3261 = vunpack.c.l.b16 %v2237
      %v3262 = vunpack.c.l.b16 %v2238
      %v3263 = vunpack.c.l.b16 %v2239
      %v3264 = vunpack.c.l.b16 %v2240
      %v3265 = vunpack.c.l.b16 %v2241
      %v3266 = vunpack.c.l.b16 %v2242
      %v3267 = vunpack.c.l.b16 %v2243
      %v3268 = vunpack.c.l.b16 %v2244
      %v3269 = vunpack.c.l.b16 %v2245
      %v3270 = vunpack.c.l.b16 %v2246
      %v3271 = vunpack.c.l.b16 %v2247
      %v3272 = vunpack.c.l.b16 %v2248
      %v3273 = vunpack.c.l.b16 %v2249
      %v3274 = vunpack.c.l.b16 %v2250
      %v3275 = vunpack.c.l.b16 %v2251
      %v3276 = vunpack.c.l.b16 %v2252
      %v3277 = vunpack.c.l.b16 %v2253
      %v3278 = vunpack.c.l.b16 %v2254
      %v3279 = vunpack.c.l.b16 %v2255
      %v3280 = vunpack.c.l.b16 %v2256
      %v3281 = vunpack.c.l.b16 %v2257
      %v3282 = vunpack.c.l.b16 %v2258
      %v3283 = vunpack.c.l.b16 %v2259
      %v3284 = vunpack.c.l.b16 %v2260
      %v3285 = vunpack.c.l.b16 %v2261
      %v3286 = vunpack.c.l.b16 %v2262
      %v3287 = vunpack.c.l.b16 %v2263
      %v3288 = vunpack.c.l.b16 %v2264
      %v3289 = vunpack.c.l.b16 %v2265
      %v3290 = vunpack.c.l.b16 %v2266
      %v3291 = vunpack.c.l.b16 %v2267
      %v3292 = vunpack.c.l.b16 %v2268
      %v3293 = vunpack.c.l.b16 %v2269
      %v3294 = vunpack.c.l.b16 %v2270
      %v3295 = vunpack.c.l.b16 %v2271
      %v3296 = vunpack.c.l.b16 %v2272
      %v3297 = vunpack.c.l.b16 %v2273
      %v3298 = vunpack.c.l.b16 %v2274
      %v3299 = vunpack.c.l.b16 %v2275
      %v3300 = vunpack.c.l.b16 %v2276
      %v3301 = vunpack.c.l.b16 %v2277
      %v3302 = vunpack.c.l.b16 %v2278
      %v3303 = vunpack.c.l.b16 %v2279
      %v3304 = vunpack.c.l.b16 %v2280
      %v3305 = vunpack.c.l.b16 %v2281
      %v3306 = vunpack.c.l.b16 %v2282
      %v3307 = vunpack.c.l.b16 %v2283
      %v3308 = vunpack.c.l.b16 %v2284
      %v3309 = vunpack.c.l.b16 %v2285
      %v3310 = vunpack.c.l.b16 %v2286
      %v3311 = vunpack.c.l.b16 %v2287
      %v3312 = vunpack.c.l.b16 %v2288
      %v3313 = vunpack.c.l.b16 %v2289
      %v3314 = vunpack.c.l.b16 %v2290
      %v3315 = vunpack.c.l.b16 %v2291
      %v3316 = vunpack.c.l.b16 %v2292
      %v3317 = vunpack.c.l.b16 %v2293
      %v3318 = vunpack.c.l.b16 %v2294
      %v3319 = vunpack.c.l.b16 %v2295
      %v3320 = vunpack.c.l.b16 %v2296
      %v3321 = vunpack.c.l.b16 %v2297
      %v3322 = vunpack.c.l.b16 %v2298
      %v3323 = vunpack.c.l.b16 %v2299
      %v3324 = vunpack.c.l.b16 %v2300
      %v3325 = vunpack.c.l.b16 %v2301
      %v3326 = vunpack.c.l.b16 %v2302
      %v3327 = vunpack.c.l.b16 %v2303
      %v3328 = vunpack.c.l.b16 %v2304
      %v3329 = vunpack.c.l.b16 %v2305
      %v3330 = vunpack.c.l.b16 %v2306
      %v3331 = vunpack.c.l.b16 %v2307
      %v3332 = vunpack.c.l.b16 %v2308
      %v3333 = vunpack.c.l.b16 %v2309
      %v3334 = vunpack.c.l.b16 %v2310
      %v3335 = vunpack.c.l.b16 %v2311
      %v3336 = vunpack.c.l.b16 %v2312
      %v3337 = vunpack.c.l.b16 %v2313
      %v3338 = vunpack.c.l.b16 %v2314
      %v3339 = vunpack.c.l.b16 %v2315
      %v3340 = vunpack.c.l.b16 %v2316
      %v3341 = vunpack.c.l.b16 %v2317
      %v3342 = vunpack.c.l.b16 %v2318
      %v3343 = vunpack.c.l.b16 %v2319
      %v3344 = vunpack.c.l.b16 %v2320
      %v3345 = vunpack.c.l.b16 %v2321
      %v3346 = vunpack.c.l.b16 %v2322
      %v3347 = vunpack.c.l.b16 %v2323
      %v3348 = vunpack.c.l.b16 %v2324
      %v3349 = vunpack.c.l.b16 %v2325
      %v3350 = vunpack.c.l.b16 %v2326
      %v3351 = vunpack.c.l.b16 %v2327
      %v3352 = vunpack.c.l.b16 %v2328
      %v3353 = vunpack.c.l.b16 %v2329
      %v3354 = vunpack.c.l.b16 %v2330
      %v3355 = vunpack.c.l.b16 %v2331
      %v3356 = vunpack.c.l.b16 %v2332
      %v3357 = vunpack.c.l.b16 %v2333
      %v3358 = vunpack.c.l.b16 %v2334
      %v3359 = vunpack.c.l.b16 %v2335
      %v3360 = vunpack.c.l.b16 %v2336
      %v3361 = vunpack.c.l.b16 %v2337
      %v3362 = vunpack.c.l.b16 %v2338
      %v3363 = vunpack.c.l.b16 %v2339
      %v3364 = vunpack.c.l.b16 %v2340
      %v3365 = vunpack.c.l.b16 %v2341
      %v3366 = vunpack.c.l.b16 %v2342
      %v3367 = vunpack.c.l.b16 %v2343
      %v3368 = vunpack.c.l.b16 %v2344
      %v3369 = vunpack.c.l.b16 %v2345
      %v3370 = vunpack.c.l.b16 %v2346
      %v3371 = vunpack.c.l.b16 %v2347
      %v3372 = vpack.c.b16 %v3229, %v3228
      %v3373 = vpack.c.b16 %v3231, %v3230
      %v3374 = vpack.c.b16 %v3233, %v3232
      %v3375 = vpack.c.b16 %v3235, %v3234
      %v3376 = vpack.c.b16 %v3237, %v3236
      %v3377 = vpack.c.b16 %v3239, %v3238
      %v3378 = vpack.c.b16 %v3241, %v3240
      %v3379 = vpack.c.b16 %v3243, %v3242
      %v3380 = vpack.c.b16 %v3245, %v3244
      %v3381 = vpack.c.b16 %v3247, %v3246
      %v3382 = vpack.c.b16 %v3249, %v3248
      %v3383 = vpack.c.b16 %v3251, %v3250
      %v3384 = vpack.c.b16 %v3253, %v3252
      %v3385 = vpack.c.b16 %v3255, %v3254
      %v3386 = vpack.c.b16 %v3257, %v3256
      %v3387 = vpack.c.b16 %v3259, %v3258
      %v3388 = vpack.c.b16 %v3261, %v3260
      %v3389 = vpack.c.b16 %v3263, %v3262
      %v3390 = vpack.c.b16 %v3265, %v3264
      %v3391 = vpack.c.b16 %v3267, %v3266
      %v3392 = vpack.c.b16 %v3269, %v3268
      %v3393 = vpack.c.b16 %v3271, %v3270
      %v3394 = vpack.c.b16 %v3273, %v3272
      %v3395 = vpack.c.b16 %v3275, %v3274
      %v3396 = vpack.c.b16 %v3277, %v3276
      %v3397 = vpack.c.b16 %v3279, %v3278
      %v3398 = vpack.c.b16 %v3281, %v3280
      %v3399 = vpack.c.b16 %v3283, %v3282
      %v3400 = vpack.c.b16 %v3285, %v3284
      %v3401 = vpack.c.b16 %v3287, %v3286
      %v3402 = vpack.c.b16 %v3289, %v3288
      %v3403 = vpack.c.b16 %v3291, %v3290
      %v3404 = vpack.c.b16 %v3293, %v3292
      %v3405 = vpack.c.b16 %v3295, %v3294
      %v3406 = vpack.c.b16 %v3297, %v3296
      %v3407 = vpack.c.b16 %v3299, %v3298
      %v3408 = vpack.c.b16 %v3301, %v3300
      %v3409 = vpack.c.b16 %v3303, %v3302
      %v3410 = vpack.c.b16 %v3305, %v3304
      %v3411 = vpack.c.b16 %v3307, %v3306
      %v3412 = vpack.c.b16 %v3309, %v3308
      %v3413 = vpack.c.b16 %v3311, %v3310
      %v3414 = vpack.c.b16 %v3313, %v3312
      %v3415 = vpack.c.b16 %v3315, %v3314
      %v3416 = vpack.c.b16 %v3317, %v3316
      %v3417 = vpack.c.b16 %v3319, %v3318
      %v3418 = vpack.c.b16 %v3321, %v3320
      %v3419 = vpack.c.b16 %v3323, %v3322
      %v3420 = vpack.c.b16 %v3325, %v3324
      %v3421 = vpack.c.b16 %v3327, %v3326
      %v3422 = vpack.c.b16 %v3329, %v3328
      %v3423 = vpack.c.b16 %v3331, %v3330
      %v3424 = vpack.c.b16 %v3333, %v3332
      %v3425 = vpack.c.b16 %v3335, %v3334
      %v3426 = vpack.c.b16 %v3337, %v3336
      %v3427 = vpack.c.b16 %v3339, %v3338
      %v3428 = vpack.c.b16 %v3341, %v3340
      %v3429 = vpack.c.b16 %v3343, %v3342
      %v3430 = vpack.c.b16 %v3345, %v3344
      %v3431 = vpack.c.b16 %v3347, %v3346
      %v3432 = vpack.c.b16 %v3349, %v3348
      %v3433 = vpack.c.b16 %v3351, %v3350
      %v3434 = vpack.c.b16 %v3353, %v3352
      %v3435 = vpack.c.b16 %v3355, %v3354
      %v3436 = vpack.c.b16 %v3357, %v3356
      %v3437 = vpack.c.b16 %v3359, %v3358
      %v3438 = vpack.c.b16 %v3361, %v3360
      %v3439 = vpack.c.b16 %v3363, %v3362
      %v3440 = vpack.c.b16 %v3365, %v3364
      %v3441 = vpack.c.b16 %v3367, %v3366
      %v3442 = vpack.c.b16 %v3369, %v3368
      %v3443 = vpack.c.b16 %v3371, %v3370
      %3516 = vmatpush.bf16.msra.mxu0 %v3379
      %3517 = vmatpush.bf16.msra.mxu0 %v3378
      %3518 = vmatpush.bf16.msra.mxu0 %v3377
      %3519 = vmatpush.bf16.msra.mxu0 %v3376
      %3520 = vmatpush.bf16.msra.mxu0 %v3375
      %3521 = vmatpush.bf16.msra.mxu0 %v3374
      %3522 = vmatpush.bf16.msra.mxu0 %v3373
      %3523 = vmatpush.bf16.msra.mxu0 %v3372
      %3524 = vmatmul.bf16.gmra.mxu0 %v2796
      %v3525 = vpop.f32.mrf.mxu0
      %v3526 = vadd.f32 0.0, %v3525
      %v3527 = vpop.f32.mrf.mxu0
      %v3528 = vadd.f32 0.0, %v3527
      %3529 = vmatmul.bf16.gmra.mxu0 %v2805
      %v3530 = vpop.f32.mrf.mxu0
      %v3531 = vadd.f32 0.0, %v3530
      %v3532 = vpop.f32.mrf.mxu0
      %v3533 = vadd.f32 0.0, %v3532
      %3534 = vmatmul.bf16.gmra.mxu0 %v2814
      %v3535 = vpop.f32.mrf.mxu0
      %v3536 = vadd.f32 0.0, %v3535
      %v3537 = vpop.f32.mrf.mxu0
      %v3538 = vadd.f32 0.0, %v3537
      %3539 = vmatmul.bf16.gmra.mxu0 %v2823
      %v3540 = vpop.f32.mrf.mxu0
      %v3541 = vadd.f32 0.0, %v3540
      %v3542 = vpop.f32.mrf.mxu0
      %v3543 = vadd.f32 0.0, %v3542
      %3544 = vmatmul.bf16.gmra.mxu0 %v2832
      %v3545 = vpop.f32.mrf.mxu0
      %v3546 = vadd.f32 0.0, %v3545
      %v3547 = vpop.f32.mrf.mxu0
      %v3548 = vadd.f32 0.0, %v3547
      %3549 = vmatmul.bf16.gmra.mxu0 %v2841
      %v3550 = vpop.f32.mrf.mxu0
      %v3551 = vadd.f32 0.0, %v3550
      %v3552 = vpop.f32.mrf.mxu0
      %v3553 = vadd.f32 0.0, %v3552
      %3554 = vmatmul.bf16.gmra.mxu0 %v2850
      %v3555 = vpop.f32.mrf.mxu0
      %v3556 = vadd.f32 0.0, %v3555
      %v3557 = vpop.f32.mrf.mxu0
      %v3558 = vadd.f32 0.0, %v3557
      %3559 = vmatmul.bf16.gmra.mxu0 %v2859
      %v3560 = vpop.f32.mrf.mxu0
      %v3561 = vadd.f32 0.0, %v3560
      %v3562 = vpop.f32.mrf.mxu0
      %v3563 = vadd.f32 0.0, %v3562
      %3564 = vmatmul.bf16.gmra.mxu0 %v2868
      %v3565 = vpop.f32.mrf.mxu0
      %v3566 = vadd.f32 0.0, %v3565
      %v3567 = vpop.f32.mrf.mxu0
      %v3568 = vadd.f32 0.0, %v3567
      %3569 = vmatmul.bf16.gmra.mxu0 %v2877
      %v3570 = vpop.f32.mrf.mxu0
      %v3571 = vadd.f32 0.0, %v3570
      %v3572 = vpop.f32.mrf.mxu0
      %v3573 = vadd.f32 0.0, %v3572
      %3574 = vmatmul.bf16.gmra.mxu0 %v2886
      %v3575 = vpop.f32.mrf.mxu0
      %v3576 = vadd.f32 0.0, %v3575
      %v3577 = vpop.f32.mrf.mxu0
      %v3578 = vadd.f32 0.0, %v3577
      %3579 = vmatmul.bf16.gmra.mxu0 %v2895
      %v3580 = vpop.f32.mrf.mxu0
      %v3581 = vadd.f32 0.0, %v3580
      %v3582 = vpop.f32.mrf.mxu0
      %v3583 = vadd.f32 0.0, %v3582
      %3584 = vmatmul.bf16.gmra.mxu0 %v2904
      %v3585 = vpop.f32.mrf.mxu0
      %v3586 = vadd.f32 0.0, %v3585
      %v3587 = vpop.f32.mrf.mxu0
      %v3588 = vadd.f32 0.0, %v3587
      %3589 = vmatmul.bf16.gmra.mxu0 %v2913
      %v3590 = vpop.f32.mrf.mxu0
      %v3591 = vadd.f32 0.0, %v3590
      %v3592 = vpop.f32.mrf.mxu0
      %v3593 = vadd.f32 0.0, %v3592
      %3594 = vmatmul.bf16.gmra.mxu0 %v2922
      %v3595 = vpop.f32.mrf.mxu0
      %v3596 = vadd.f32 0.0, %v3595
      %v3597 = vpop.f32.mrf.mxu0
      %v3598 = vadd.f32 0.0, %v3597
      %3599 = vmatmul.bf16.gmra.mxu0 %v2931
      %v3600 = vpop.f32.mrf.mxu0
      %v3601 = vadd.f32 0.0, %v3600
      %v3602 = vpop.f32.mrf.mxu0
      %v3603 = vadd.f32 0.0, %v3602
      %3604 = vdwg.mxu0
      %3605 = vmatpush.bf16.msra.mxu0 %v3387
      %3606 = vmatpush.bf16.msra.mxu0 %v3386
      %3607 = vmatpush.bf16.msra.mxu0 %v3385
      %3608 = vmatpush.bf16.msra.mxu0 %v3384
      %3609 = vmatpush.bf16.msra.mxu0 %v3383
      %3610 = vmatpush.bf16.msra.mxu0 %v3382
      %3611 = vmatpush.bf16.msra.mxu0 %v3381
      %3612 = vmatpush.bf16.msra.mxu0 %v3380
      %3613 = vmatmul.bf16.gmra.mxu0 %v2797
      %v3614 = vpop.f32.mrf.mxu0
      %v3615 = vadd.f32 %v3526, %v3614
      %v3616 = vpop.f32.mrf.mxu0
      %v3617 = vadd.f32 %v3528, %v3616
      %3618 = vmatmul.bf16.gmra.mxu0 %v2806
      %v3619 = vpop.f32.mrf.mxu0
      %v3620 = vadd.f32 %v3531, %v3619
      %v3621 = vpop.f32.mrf.mxu0
      %v3622 = vadd.f32 %v3533, %v3621
      %3623 = vmatmul.bf16.gmra.mxu0 %v2815
      %v3624 = vpop.f32.mrf.mxu0
      %v3625 = vadd.f32 %v3536, %v3624
      %v3626 = vpop.f32.mrf.mxu0
      %v3627 = vadd.f32 %v3538, %v3626
      %3628 = vmatmul.bf16.gmra.mxu0 %v2824
      %v3629 = vpop.f32.mrf.mxu0
      %v3630 = vadd.f32 %v3541, %v3629
      %v3631 = vpop.f32.mrf.mxu0
      %v3632 = vadd.f32 %v3543, %v3631
      %3633 = vmatmul.bf16.gmra.mxu0 %v2833
      %v3634 = vpop.f32.mrf.mxu0
      %v3635 = vadd.f32 %v3546, %v3634
      %v3636 = vpop.f32.mrf.mxu0
      %v3637 = vadd.f32 %v3548, %v3636
      %3638 = vmatmul.bf16.gmra.mxu0 %v2842
      %v3639 = vpop.f32.mrf.mxu0
      %v3640 = vadd.f32 %v3551, %v3639
      %v3641 = vpop.f32.mrf.mxu0
      %v3642 = vadd.f32 %v3553, %v3641
      %3643 = vmatmul.bf16.gmra.mxu0 %v2851
      %v3644 = vpop.f32.mrf.mxu0
      %v3645 = vadd.f32 %v3556, %v3644
      %v3646 = vpop.f32.mrf.mxu0
      %v3647 = vadd.f32 %v3558, %v3646
      %3648 = vmatmul.bf16.gmra.mxu0 %v2860
      %v3649 = vpop.f32.mrf.mxu0
      %v3650 = vadd.f32 %v3561, %v3649
      %v3651 = vpop.f32.mrf.mxu0
      %v3652 = vadd.f32 %v3563, %v3651
      %3653 = vmatmul.bf16.gmra.mxu0 %v2869
      %v3654 = vpop.f32.mrf.mxu0
      %v3655 = vadd.f32 %v3566, %v3654
      %v3656 = vpop.f32.mrf.mxu0
      %v3657 = vadd.f32 %v3568, %v3656
      %3658 = vmatmul.bf16.gmra.mxu0 %v2878
      %v3659 = vpop.f32.mrf.mxu0
      %v3660 = vadd.f32 %v3571, %v3659
      %v3661 = vpop.f32.mrf.mxu0
      %v3662 = vadd.f32 %v3573, %v3661
      %3663 = vmatmul.bf16.gmra.mxu0 %v2887
      %v3664 = vpop.f32.mrf.mxu0
      %v3665 = vadd.f32 %v3576, %v3664
      %v3666 = vpop.f32.mrf.mxu0
      %v3667 = vadd.f32 %v3578, %v3666
      %3668 = vmatmul.bf16.gmra.mxu0 %v2896
      %v3669 = vpop.f32.mrf.mxu0
      %v3670 = vadd.f32 %v3581, %v3669
      %v3671 = vpop.f32.mrf.mxu0
      %v3672 = vadd.f32 %v3583, %v3671
      %3673 = vmatmul.bf16.gmra.mxu0 %v2905
      %v3674 = vpop.f32.mrf.mxu0
      %v3675 = vadd.f32 %v3586, %v3674
      %v3676 = vpop.f32.mrf.mxu0
      %v3677 = vadd.f32 %v3588, %v3676
      %3678 = vmatmul.bf16.gmra.mxu0 %v2914
      %v3679 = vpop.f32.mrf.mxu0
      %v3680 = vadd.f32 %v3591, %v3679
      %v3681 = vpop.f32.mrf.mxu0
      %v3682 = vadd.f32 %v3593, %v3681
      %3683 = vmatmul.bf16.gmra.mxu0 %v2923
      %v3684 = vpop.f32.mrf.mxu0
      %v3685 = vadd.f32 %v3596, %v3684
      %v3686 = vpop.f32.mrf.mxu0
      %v3687 = vadd.f32 %v3598, %v3686
      %3688 = vmatmul.bf16.gmra.mxu0 %v2932
      %v3689 = vpop.f32.mrf.mxu0
      %v3690 = vadd.f32 %v3601, %v3689
      %v3691 = vpop.f32.mrf.mxu0
      %v3692 = vadd.f32 %v3603, %v3691
      %3693 = vdwg.mxu0
      %3694 = vmatpush.bf16.msra.mxu0 %v3395
      %3695 = vmatpush.bf16.msra.mxu0 %v3394
      %3696 = vmatpush.bf16.msra.mxu0 %v3393
      %3697 = vmatpush.bf16.msra.mxu0 %v3392
      %3698 = vmatpush.bf16.msra.mxu0 %v3391
      %3699 = vmatpush.bf16.msra.mxu0 %v3390
      %3700 = vmatpush.bf16.msra.mxu0 %v3389
      %3701 = vmatpush.bf16.msra.mxu0 %v3388
      %3702 = vmatmul.bf16.gmra.mxu0 %v2798
      %v3703 = vpop.f32.mrf.mxu0
      %v3704 = vadd.f32 %v3615, %v3703
      %v3705 = vpop.f32.mrf.mxu0
      %v3706 = vadd.f32 %v3617, %v3705
      %3707 = vmatmul.bf16.gmra.mxu0 %v2807
      %v3708 = vpop.f32.mrf.mxu0
      %v3709 = vadd.f32 %v3620, %v3708
      %v3710 = vpop.f32.mrf.mxu0
      %v3711 = vadd.f32 %v3622, %v3710
      %3712 = vmatmul.bf16.gmra.mxu0 %v2816
      %v3713 = vpop.f32.mrf.mxu0
      %v3714 = vadd.f32 %v3625, %v3713
      %v3715 = vpop.f32.mrf.mxu0
      %v3716 = vadd.f32 %v3627, %v3715
      %3717 = vmatmul.bf16.gmra.mxu0 %v2825
      %v3718 = vpop.f32.mrf.mxu0
      %v3719 = vadd.f32 %v3630, %v3718
      %v3720 = vpop.f32.mrf.mxu0
      %v3721 = vadd.f32 %v3632, %v3720
      %3722 = vmatmul.bf16.gmra.mxu0 %v2834
      %v3723 = vpop.f32.mrf.mxu0
      %v3724 = vadd.f32 %v3635, %v3723
      %v3725 = vpop.f32.mrf.mxu0
      %v3726 = vadd.f32 %v3637, %v3725
      %3727 = vmatmul.bf16.gmra.mxu0 %v2843
      %v3728 = vpop.f32.mrf.mxu0
      %v3729 = vadd.f32 %v3640, %v3728
      %v3730 = vpop.f32.mrf.mxu0
      %v3731 = vadd.f32 %v3642, %v3730
      %3732 = vmatmul.bf16.gmra.mxu0 %v2852
      %v3733 = vpop.f32.mrf.mxu0
      %v3734 = vadd.f32 %v3645, %v3733
      %v3735 = vpop.f32.mrf.mxu0
      %v3736 = vadd.f32 %v3647, %v3735
      %3737 = vmatmul.bf16.gmra.mxu0 %v2861
      %v3738 = vpop.f32.mrf.mxu0
      %v3739 = vadd.f32 %v3650, %v3738
      %v3740 = vpop.f32.mrf.mxu0
      %v3741 = vadd.f32 %v3652, %v3740
      %3742 = vmatmul.bf16.gmra.mxu0 %v2870
      %v3743 = vpop.f32.mrf.mxu0
      %v3744 = vadd.f32 %v3655, %v3743
      %v3745 = vpop.f32.mrf.mxu0
      %v3746 = vadd.f32 %v3657, %v3745
      %3747 = vmatmul.bf16.gmra.mxu0 %v2879
      %v3748 = vpop.f32.mrf.mxu0
      %v3749 = vadd.f32 %v3660, %v3748
      %v3750 = vpop.f32.mrf.mxu0
      %v3751 = vadd.f32 %v3662, %v3750
      %3752 = vmatmul.bf16.gmra.mxu0 %v2888
      %v3753 = vpop.f32.mrf.mxu0
      %v3754 = vadd.f32 %v3665, %v3753
      %v3755 = vpop.f32.mrf.mxu0
      %v3756 = vadd.f32 %v3667, %v3755
      %3757 = vmatmul.bf16.gmra.mxu0 %v2897
      %v3758 = vpop.f32.mrf.mxu0
      %v3759 = vadd.f32 %v3670, %v3758
      %v3760 = vpop.f32.mrf.mxu0
      %v3761 = vadd.f32 %v3672, %v3760
      %3762 = vmatmul.bf16.gmra.mxu0 %v2906
      %v3763 = vpop.f32.mrf.mxu0
      %v3764 = vadd.f32 %v3675, %v3763
      %v3765 = vpop.f32.mrf.mxu0
      %v3766 = vadd.f32 %v3677, %v3765
      %3767 = vmatmul.bf16.gmra.mxu0 %v2915
      %v3768 = vpop.f32.mrf.mxu0
      %v3769 = vadd.f32 %v3680, %v3768
      %v3770 = vpop.f32.mrf.mxu0
      %v3771 = vadd.f32 %v3682, %v3770
      %3772 = vmatmul.bf16.gmra.mxu0 %v2924
      %v3773 = vpop.f32.mrf.mxu0
      %v3774 = vadd.f32 %v3685, %v3773
      %v3775 = vpop.f32.mrf.mxu0
      %v3776 = vadd.f32 %v3687, %v3775
      %3777 = vmatmul.bf16.gmra.mxu0 %v2933
      %v3778 = vpop.f32.mrf.mxu0
      %v3779 = vadd.f32 %v3690, %v3778
      %v3780 = vpop.f32.mrf.mxu0
      %v3781 = vadd.f32 %v3692, %v3780
      %3782 = vdwg.mxu0
      %3783 = vmatpush.bf16.msra.mxu0 %v3403
      %3784 = vmatpush.bf16.msra.mxu0 %v3402
      %3785 = vmatpush.bf16.msra.mxu0 %v3401
      %3786 = vmatpush.bf16.msra.mxu0 %v3400
      %3787 = vmatpush.bf16.msra.mxu0 %v3399
      %3788 = vmatpush.bf16.msra.mxu0 %v3398
      %3789 = vmatpush.bf16.msra.mxu0 %v3397
      %3790 = vmatpush.bf16.msra.mxu0 %v3396
      %3791 = vmatmul.bf16.gmra.mxu0 %v2799
      %v3792 = vpop.f32.mrf.mxu0
      %v3793 = vadd.f32 %v3704, %v3792
      %v3794 = vpop.f32.mrf.mxu0
      %v3795 = vadd.f32 %v3706, %v3794
      %3796 = vmatmul.bf16.gmra.mxu0 %v2808
      %v3797 = vpop.f32.mrf.mxu0
      %v3798 = vadd.f32 %v3709, %v3797
      %v3799 = vpop.f32.mrf.mxu0
      %v3800 = vadd.f32 %v3711, %v3799
      %3801 = vmatmul.bf16.gmra.mxu0 %v2817
      %v3802 = vpop.f32.mrf.mxu0
      %v3803 = vadd.f32 %v3714, %v3802
      %v3804 = vpop.f32.mrf.mxu0
      %v3805 = vadd.f32 %v3716, %v3804
      %3806 = vmatmul.bf16.gmra.mxu0 %v2826
      %v3807 = vpop.f32.mrf.mxu0
      %v3808 = vadd.f32 %v3719, %v3807
      %v3809 = vpop.f32.mrf.mxu0
      %v3810 = vadd.f32 %v3721, %v3809
      %3811 = vmatmul.bf16.gmra.mxu0 %v2835
      %v3812 = vpop.f32.mrf.mxu0
      %v3813 = vadd.f32 %v3724, %v3812
      %v3814 = vpop.f32.mrf.mxu0
      %v3815 = vadd.f32 %v3726, %v3814
      %3816 = vmatmul.bf16.gmra.mxu0 %v2844
      %v3817 = vpop.f32.mrf.mxu0
      %v3818 = vadd.f32 %v3729, %v3817
      %v3819 = vpop.f32.mrf.mxu0
      %v3820 = vadd.f32 %v3731, %v3819
      %3821 = vmatmul.bf16.gmra.mxu0 %v2853
      %v3822 = vpop.f32.mrf.mxu0
      %v3823 = vadd.f32 %v3734, %v3822
      %v3824 = vpop.f32.mrf.mxu0
      %v3825 = vadd.f32 %v3736, %v3824
      %3826 = vmatmul.bf16.gmra.mxu0 %v2862
      %v3827 = vpop.f32.mrf.mxu0
      %v3828 = vadd.f32 %v3739, %v3827
      %v3829 = vpop.f32.mrf.mxu0
      %v3830 = vadd.f32 %v3741, %v3829
      %3831 = vmatmul.bf16.gmra.mxu0 %v2871
      %v3832 = vpop.f32.mrf.mxu0
      %v3833 = vadd.f32 %v3744, %v3832
      %v3834 = vpop.f32.mrf.mxu0
      %v3835 = vadd.f32 %v3746, %v3834
      %3836 = vmatmul.bf16.gmra.mxu0 %v2880
      %v3837 = vpop.f32.mrf.mxu0
      %v3838 = vadd.f32 %v3749, %v3837
      %v3839 = vpop.f32.mrf.mxu0
      %v3840 = vadd.f32 %v3751, %v3839
      %3841 = vmatmul.bf16.gmra.mxu0 %v2889
      %v3842 = vpop.f32.mrf.mxu0
      %v3843 = vadd.f32 %v3754, %v3842
      %v3844 = vpop.f32.mrf.mxu0
      %v3845 = vadd.f32 %v3756, %v3844
      %3846 = vmatmul.bf16.gmra.mxu0 %v2898
      %v3847 = vpop.f32.mrf.mxu0
      %v3848 = vadd.f32 %v3759, %v3847
      %v3849 = vpop.f32.mrf.mxu0
      %v3850 = vadd.f32 %v3761, %v3849
      %3851 = vmatmul.bf16.gmra.mxu0 %v2907
      %v3852 = vpop.f32.mrf.mxu0
      %v3853 = vadd.f32 %v3764, %v3852
      %v3854 = vpop.f32.mrf.mxu0
      %v3855 = vadd.f32 %v3766, %v3854
      %3856 = vmatmul.bf16.gmra.mxu0 %v2916
      %v3857 = vpop.f32.mrf.mxu0
      %v3858 = vadd.f32 %v3769, %v3857
      %v3859 = vpop.f32.mrf.mxu0
      %v3860 = vadd.f32 %v3771, %v3859
      %3861 = vmatmul.bf16.gmra.mxu0 %v2925
      %v3862 = vpop.f32.mrf.mxu0
      %v3863 = vadd.f32 %v3774, %v3862
      %v3864 = vpop.f32.mrf.mxu0
      %v3865 = vadd.f32 %v3776, %v3864
      %3866 = vmatmul.bf16.gmra.mxu0 %v2934
      %v3867 = vpop.f32.mrf.mxu0
      %v3868 = vadd.f32 %v3779, %v3867
      %v3869 = vpop.f32.mrf.mxu0
      %v3870 = vadd.f32 %v3781, %v3869
      %3871 = vdwg.mxu0
      %3872 = vmatpush.bf16.msra.mxu0 %v3411
      %3873 = vmatpush.bf16.msra.mxu0 %v3410
      %3874 = vmatpush.bf16.msra.mxu0 %v3409
      %3875 = vmatpush.bf16.msra.mxu0 %v3408
      %3876 = vmatpush.bf16.msra.mxu0 %v3407
      %3877 = vmatpush.bf16.msra.mxu0 %v3406
      %3878 = vmatpush.bf16.msra.mxu0 %v3405
      %3879 = vmatpush.bf16.msra.mxu0 %v3404
      %3880 = vmatmul.bf16.gmra.mxu0 %v2800
      %v3881 = vpop.f32.mrf.mxu0
      %v3882 = vadd.f32 %v3793, %v3881
      %v3883 = vpop.f32.mrf.mxu0
      %v3884 = vadd.f32 %v3795, %v3883
      %3885 = vmatmul.bf16.gmra.mxu0 %v2809
      %v3886 = vpop.f32.mrf.mxu0
      %v3887 = vadd.f32 %v3798, %v3886
      %v3888 = vpop.f32.mrf.mxu0
      %v3889 = vadd.f32 %v3800, %v3888
      %3890 = vmatmul.bf16.gmra.mxu0 %v2818
      %v3891 = vpop.f32.mrf.mxu0
      %v3892 = vadd.f32 %v3803, %v3891
      %v3893 = vpop.f32.mrf.mxu0
      %v3894 = vadd.f32 %v3805, %v3893
      %3895 = vmatmul.bf16.gmra.mxu0 %v2827
      %v3896 = vpop.f32.mrf.mxu0
      %v3897 = vadd.f32 %v3808, %v3896
      %v3898 = vpop.f32.mrf.mxu0
      %v3899 = vadd.f32 %v3810, %v3898
      %3900 = vmatmul.bf16.gmra.mxu0 %v2836
      %v3901 = vpop.f32.mrf.mxu0
      %v3902 = vadd.f32 %v3813, %v3901
      %v3903 = vpop.f32.mrf.mxu0
      %v3904 = vadd.f32 %v3815, %v3903
      %3905 = vmatmul.bf16.gmra.mxu0 %v2845
      %v3906 = vpop.f32.mrf.mxu0
      %v3907 = vadd.f32 %v3818, %v3906
      %v3908 = vpop.f32.mrf.mxu0
      %v3909 = vadd.f32 %v3820, %v3908
      %3910 = vmatmul.bf16.gmra.mxu0 %v2854
      %v3911 = vpop.f32.mrf.mxu0
      %v3912 = vadd.f32 %v3823, %v3911
      %v3913 = vpop.f32.mrf.mxu0
      %v3914 = vadd.f32 %v3825, %v3913
      %3915 = vmatmul.bf16.gmra.mxu0 %v2863
      %v3916 = vpop.f32.mrf.mxu0
      %v3917 = vadd.f32 %v3828, %v3916
      %v3918 = vpop.f32.mrf.mxu0
      %v3919 = vadd.f32 %v3830, %v3918
      %3920 = vmatmul.bf16.gmra.mxu0 %v2872
      %v3921 = vpop.f32.mrf.mxu0
      %v3922 = vadd.f32 %v3833, %v3921
      %v3923 = vpop.f32.mrf.mxu0
      %v3924 = vadd.f32 %v3835, %v3923
      %3925 = vmatmul.bf16.gmra.mxu0 %v2881
      %v3926 = vpop.f32.mrf.mxu0
      %v3927 = vadd.f32 %v3838, %v3926
      %v3928 = vpop.f32.mrf.mxu0
      %v3929 = vadd.f32 %v3840, %v3928
      %3930 = vmatmul.bf16.gmra.mxu0 %v2890
      %v3931 = vpop.f32.mrf.mxu0
      %v3932 = vadd.f32 %v3843, %v3931
      %v3933 = vpop.f32.mrf.mxu0
      %v3934 = vadd.f32 %v3845, %v3933
      %3935 = vmatmul.bf16.gmra.mxu0 %v2899
      %v3936 = vpop.f32.mrf.mxu0
      %v3937 = vadd.f32 %v3848, %v3936
      %v3938 = vpop.f32.mrf.mxu0
      %v3939 = vadd.f32 %v3850, %v3938
      %3940 = vmatmul.bf16.gmra.mxu0 %v2908
      %v3941 = vpop.f32.mrf.mxu0
      %v3942 = vadd.f32 %v3853, %v3941
      %v3943 = vpop.f32.mrf.mxu0
      %v3944 = vadd.f32 %v3855, %v3943
      %3945 = vmatmul.bf16.gmra.mxu0 %v2917
      %v3946 = vpop.f32.mrf.mxu0
      %v3947 = vadd.f32 %v3858, %v3946
      %v3948 = vpop.f32.mrf.mxu0
      %v3949 = vadd.f32 %v3860, %v3948
      %3950 = vmatmul.bf16.gmra.mxu0 %v2926
      %v3951 = vpop.f32.mrf.mxu0
      %v3952 = vadd.f32 %v3863, %v3951
      %v3953 = vpop.f32.mrf.mxu0
      %v3954 = vadd.f32 %v3865, %v3953
      %3955 = vmatmul.bf16.gmra.mxu0 %v2935
      %v3956 = vpop.f32.mrf.mxu0
      %v3957 = vadd.f32 %v3868, %v3956
      %v3958 = vpop.f32.mrf.mxu0
      %v3959 = vadd.f32 %v3870, %v3958
      %3960 = vdwg.mxu0
      %3961 = vmatpush.bf16.msra.mxu0 %v3419
      %3962 = vmatpush.bf16.msra.mxu0 %v3418
      %3963 = vmatpush.bf16.msra.mxu0 %v3417
      %3964 = vmatpush.bf16.msra.mxu0 %v3416
      %3965 = vmatpush.bf16.msra.mxu0 %v3415
      %3966 = vmatpush.bf16.msra.mxu0 %v3414
      %3967 = vmatpush.bf16.msra.mxu0 %v3413
      %3968 = vmatpush.bf16.msra.mxu0 %v3412
      %3969 = vmatmul.bf16.gmra.mxu0 %v2801
      %v3970 = vpop.f32.mrf.mxu0
      %v3971 = vadd.f32 %v3882, %v3970
      %v3972 = vpop.f32.mrf.mxu0
      %v3973 = vadd.f32 %v3884, %v3972
      %3974 = vmatmul.bf16.gmra.mxu0 %v2810
      %v3975 = vpop.f32.mrf.mxu0
      %v3976 = vadd.f32 %v3887, %v3975
      %v3977 = vpop.f32.mrf.mxu0
      %v3978 = vadd.f32 %v3889, %v3977
      %3979 = vmatmul.bf16.gmra.mxu0 %v2819
      %v3980 = vpop.f32.mrf.mxu0
      %v3981 = vadd.f32 %v3892, %v3980
      %v3982 = vpop.f32.mrf.mxu0
      %v3983 = vadd.f32 %v3894, %v3982
      %3984 = vmatmul.bf16.gmra.mxu0 %v2828
      %v3985 = vpop.f32.mrf.mxu0
      %v3986 = vadd.f32 %v3897, %v3985
      %v3987 = vpop.f32.mrf.mxu0
      %v3988 = vadd.f32 %v3899, %v3987
      %3989 = vmatmul.bf16.gmra.mxu0 %v2837
      %v3990 = vpop.f32.mrf.mxu0
      %v3991 = vadd.f32 %v3902, %v3990
      %v3992 = vpop.f32.mrf.mxu0
      %v3993 = vadd.f32 %v3904, %v3992
      %3994 = vmatmul.bf16.gmra.mxu0 %v2846
      %v3995 = vpop.f32.mrf.mxu0
      %v3996 = vadd.f32 %v3907, %v3995
      %v3997 = vpop.f32.mrf.mxu0
      %v3998 = vadd.f32 %v3909, %v3997
      %3999 = vmatmul.bf16.gmra.mxu0 %v2855
      %v4000 = vpop.f32.mrf.mxu0
      %v4001 = vadd.f32 %v3912, %v4000
      %v4002 = vpop.f32.mrf.mxu0
      %v4003 = vadd.f32 %v3914, %v4002
      %4004 = vmatmul.bf16.gmra.mxu0 %v2864
      %v4005 = vpop.f32.mrf.mxu0
      %v4006 = vadd.f32 %v3917, %v4005
      %v4007 = vpop.f32.mrf.mxu0
      %v4008 = vadd.f32 %v3919, %v4007
      %4009 = vmatmul.bf16.gmra.mxu0 %v2873
      %v4010 = vpop.f32.mrf.mxu0
      %v4011 = vadd.f32 %v3922, %v4010
      %v4012 = vpop.f32.mrf.mxu0
      %v4013 = vadd.f32 %v3924, %v4012
      %4014 = vmatmul.bf16.gmra.mxu0 %v2882
      %v4015 = vpop.f32.mrf.mxu0
      %v4016 = vadd.f32 %v3927, %v4015
      %v4017 = vpop.f32.mrf.mxu0
      %v4018 = vadd.f32 %v3929, %v4017
      %4019 = vmatmul.bf16.gmra.mxu0 %v2891
      %v4020 = vpop.f32.mrf.mxu0
      %v4021 = vadd.f32 %v3932, %v4020
      %v4022 = vpop.f32.mrf.mxu0
      %v4023 = vadd.f32 %v3934, %v4022
      %4024 = vmatmul.bf16.gmra.mxu0 %v2900
      %v4025 = vpop.f32.mrf.mxu0
      %v4026 = vadd.f32 %v3937, %v4025
      %v4027 = vpop.f32.mrf.mxu0
      %v4028 = vadd.f32 %v3939, %v4027
      %4029 = vmatmul.bf16.gmra.mxu0 %v2909
      %v4030 = vpop.f32.mrf.mxu0
      %v4031 = vadd.f32 %v3942, %v4030
      %v4032 = vpop.f32.mrf.mxu0
      %v4033 = vadd.f32 %v3944, %v4032
      %4034 = vmatmul.bf16.gmra.mxu0 %v2918
      %v4035 = vpop.f32.mrf.mxu0
      %v4036 = vadd.f32 %v3947, %v4035
      %v4037 = vpop.f32.mrf.mxu0
      %v4038 = vadd.f32 %v3949, %v4037
      %4039 = vmatmul.bf16.gmra.mxu0 %v2927
      %v4040 = vpop.f32.mrf.mxu0
      %v4041 = vadd.f32 %v3952, %v4040
      %v4042 = vpop.f32.mrf.mxu0
      %v4043 = vadd.f32 %v3954, %v4042
      %4044 = vmatmul.bf16.gmra.mxu0 %v2936
      %v4045 = vpop.f32.mrf.mxu0
      %v4046 = vadd.f32 %v3957, %v4045
      %v4047 = vpop.f32.mrf.mxu0
      %v4048 = vadd.f32 %v3959, %v4047
      %4049 = vdwg.mxu0
      %4050 = vmatpush.bf16.msra.mxu0 %v3427
      %4051 = vmatpush.bf16.msra.mxu0 %v3426
      %4052 = vmatpush.bf16.msra.mxu0 %v3425
      %4053 = vmatpush.bf16.msra.mxu0 %v3424
      %4054 = vmatpush.bf16.msra.mxu0 %v3423
      %4055 = vmatpush.bf16.msra.mxu0 %v3422
      %4056 = vmatpush.bf16.msra.mxu0 %v3421
      %4057 = vmatpush.bf16.msra.mxu0 %v3420
      %4058 = vmatmul.bf16.gmra.mxu0 %v2802
      %v4059 = vpop.f32.mrf.mxu0
      %v4060 = vadd.f32 %v3971, %v4059
      %v4061 = vpop.f32.mrf.mxu0
      %v4062 = vadd.f32 %v3973, %v4061
      %4063 = vmatmul.bf16.gmra.mxu0 %v2811
      %v4064 = vpop.f32.mrf.mxu0
      %v4065 = vadd.f32 %v3976, %v4064
      %v4066 = vpop.f32.mrf.mxu0
      %v4067 = vadd.f32 %v3978, %v4066
      %4068 = vmatmul.bf16.gmra.mxu0 %v2820
      %v4069 = vpop.f32.mrf.mxu0
      %v4070 = vadd.f32 %v3981, %v4069
      %v4071 = vpop.f32.mrf.mxu0
      %v4072 = vadd.f32 %v3983, %v4071
      %4073 = vmatmul.bf16.gmra.mxu0 %v2829
      %v4074 = vpop.f32.mrf.mxu0
      %v4075 = vadd.f32 %v3986, %v4074
      %v4076 = vpop.f32.mrf.mxu0
      %v4077 = vadd.f32 %v3988, %v4076
      %4078 = vmatmul.bf16.gmra.mxu0 %v2838
      %v4079 = vpop.f32.mrf.mxu0
      %v4080 = vadd.f32 %v3991, %v4079
      %v4081 = vpop.f32.mrf.mxu0
      %v4082 = vadd.f32 %v3993, %v4081
      %4083 = vmatmul.bf16.gmra.mxu0 %v2847
      %v4084 = vpop.f32.mrf.mxu0
      %v4085 = vadd.f32 %v3996, %v4084
      %v4086 = vpop.f32.mrf.mxu0
      %v4087 = vadd.f32 %v3998, %v4086
      %4088 = vmatmul.bf16.gmra.mxu0 %v2856
      %v4089 = vpop.f32.mrf.mxu0
      %v4090 = vadd.f32 %v4001, %v4089
      %v4091 = vpop.f32.mrf.mxu0
      %v4092 = vadd.f32 %v4003, %v4091
      %4093 = vmatmul.bf16.gmra.mxu0 %v2865
      %v4094 = vpop.f32.mrf.mxu0
      %v4095 = vadd.f32 %v4006, %v4094
      %v4096 = vpop.f32.mrf.mxu0
      %v4097 = vadd.f32 %v4008, %v4096
      %4098 = vmatmul.bf16.gmra.mxu0 %v2874
      %v4099 = vpop.f32.mrf.mxu0
      %v4100 = vadd.f32 %v4011, %v4099
      %v4101 = vpop.f32.mrf.mxu0
      %v4102 = vadd.f32 %v4013, %v4101
      %4103 = vmatmul.bf16.gmra.mxu0 %v2883
      %v4104 = vpop.f32.mrf.mxu0
      %v4105 = vadd.f32 %v4016, %v4104
      %v4106 = vpop.f32.mrf.mxu0
      %v4107 = vadd.f32 %v4018, %v4106
      %4108 = vmatmul.bf16.gmra.mxu0 %v2892
      %v4109 = vpop.f32.mrf.mxu0
      %v4110 = vadd.f32 %v4021, %v4109
      %v4111 = vpop.f32.mrf.mxu0
      %v4112 = vadd.f32 %v4023, %v4111
      %4113 = vmatmul.bf16.gmra.mxu0 %v2901
      %v4114 = vpop.f32.mrf.mxu0
      %v4115 = vadd.f32 %v4026, %v4114
      %v4116 = vpop.f32.mrf.mxu0
      %v4117 = vadd.f32 %v4028, %v4116
      %4118 = vmatmul.bf16.gmra.mxu0 %v2910
      %v4119 = vpop.f32.mrf.mxu0
      %v4120 = vadd.f32 %v4031, %v4119
      %v4121 = vpop.f32.mrf.mxu0
      %v4122 = vadd.f32 %v4033, %v4121
      %4123 = vmatmul.bf16.gmra.mxu0 %v2919
      %v4124 = vpop.f32.mrf.mxu0
      %v4125 = vadd.f32 %v4036, %v4124
      %v4126 = vpop.f32.mrf.mxu0
      %v4127 = vadd.f32 %v4038, %v4126
      %4128 = vmatmul.bf16.gmra.mxu0 %v2928
      %v4129 = vpop.f32.mrf.mxu0
      %v4130 = vadd.f32 %v4041, %v4129
      %v4131 = vpop.f32.mrf.mxu0
      %v4132 = vadd.f32 %v4043, %v4131
      %4133 = vmatmul.bf16.gmra.mxu0 %v2937
      %v4134 = vpop.f32.mrf.mxu0
      %v4135 = vadd.f32 %v4046, %v4134
      %v4136 = vpop.f32.mrf.mxu0
      %v4137 = vadd.f32 %v4048, %v4136
      %4138 = vdwg.mxu0
      %4139 = vmatpush.bf16.msra.mxu0 %v3435
      %4140 = vmatpush.bf16.msra.mxu0 %v3434
      %4141 = vmatpush.bf16.msra.mxu0 %v3433
      %4142 = vmatpush.bf16.msra.mxu0 %v3432
      %4143 = vmatpush.bf16.msra.mxu0 %v3431
      %4144 = vmatpush.bf16.msra.mxu0 %v3430
      %4145 = vmatpush.bf16.msra.mxu0 %v3429
      %4146 = vmatpush.bf16.msra.mxu0 %v3428
      %4147 = vmatmul.bf16.gmra.mxu0 %v2803
      %v4148 = vpop.f32.mrf.mxu0
      %v4149 = vadd.f32 %v4060, %v4148
      %v4150 = vpop.f32.mrf.mxu0
      %v4151 = vadd.f32 %v4062, %v4150
      %4152 = vmatmul.bf16.gmra.mxu0 %v2812
      %v4153 = vpop.f32.mrf.mxu0
      %v4154 = vadd.f32 %v4065, %v4153
      %v4155 = vpop.f32.mrf.mxu0
      %v4156 = vadd.f32 %v4067, %v4155
      %4157 = vmatmul.bf16.gmra.mxu0 %v2821
      %v4158 = vpop.f32.mrf.mxu0
      %v4159 = vadd.f32 %v4070, %v4158
      %v4160 = vpop.f32.mrf.mxu0
      %v4161 = vadd.f32 %v4072, %v4160
      %4162 = vmatmul.bf16.gmra.mxu0 %v2830
      %v4163 = vpop.f32.mrf.mxu0
      %v4164 = vadd.f32 %v4075, %v4163
      %v4165 = vpop.f32.mrf.mxu0
      %v4166 = vadd.f32 %v4077, %v4165
      %4167 = vmatmul.bf16.gmra.mxu0 %v2839
      %v4168 = vpop.f32.mrf.mxu0
      %v4169 = vadd.f32 %v4080, %v4168
      %v4170 = vpop.f32.mrf.mxu0
      %v4171 = vadd.f32 %v4082, %v4170
      %4172 = vmatmul.bf16.gmra.mxu0 %v2848
      %v4173 = vpop.f32.mrf.mxu0
      %v4174 = vadd.f32 %v4085, %v4173
      %v4175 = vpop.f32.mrf.mxu0
      %v4176 = vadd.f32 %v4087, %v4175
      %4177 = vmatmul.bf16.gmra.mxu0 %v2857
      %v4178 = vpop.f32.mrf.mxu0
      %v4179 = vadd.f32 %v4090, %v4178
      %v4180 = vpop.f32.mrf.mxu0
      %v4181 = vadd.f32 %v4092, %v4180
      %4182 = vmatmul.bf16.gmra.mxu0 %v2866
      %v4183 = vpop.f32.mrf.mxu0
      %v4184 = vadd.f32 %v4095, %v4183
      %v4185 = vpop.f32.mrf.mxu0
      %v4186 = vadd.f32 %v4097, %v4185
      %4187 = vmatmul.bf16.gmra.mxu0 %v2875
      %v4188 = vpop.f32.mrf.mxu0
      %v4189 = vadd.f32 %v4100, %v4188
      %v4190 = vpop.f32.mrf.mxu0
      %v4191 = vadd.f32 %v4102, %v4190
      %4192 = vmatmul.bf16.gmra.mxu0 %v2884
      %v4193 = vpop.f32.mrf.mxu0
      %v4194 = vadd.f32 %v4105, %v4193
      %v4195 = vpop.f32.mrf.mxu0
      %v4196 = vadd.f32 %v4107, %v4195
      %4197 = vmatmul.bf16.gmra.mxu0 %v2893
      %v4198 = vpop.f32.mrf.mxu0
      %v4199 = vadd.f32 %v4110, %v4198
      %v4200 = vpop.f32.mrf.mxu0
      %v4201 = vadd.f32 %v4112, %v4200
      %4202 = vmatmul.bf16.gmra.mxu0 %v2902
      %v4203 = vpop.f32.mrf.mxu0
      %v4204 = vadd.f32 %v4115, %v4203
      %v4205 = vpop.f32.mrf.mxu0
      %v4206 = vadd.f32 %v4117, %v4205
      %4207 = vmatmul.bf16.gmra.mxu0 %v2911
      %v4208 = vpop.f32.mrf.mxu0
      %v4209 = vadd.f32 %v4120, %v4208
      %v4210 = vpop.f32.mrf.mxu0
      %v4211 = vadd.f32 %v4122, %v4210
      %4212 = vmatmul.bf16.gmra.mxu0 %v2920
      %v4213 = vpop.f32.mrf.mxu0
      %v4214 = vadd.f32 %v4125, %v4213
      %v4215 = vpop.f32.mrf.mxu0
      %v4216 = vadd.f32 %v4127, %v4215
      %4217 = vmatmul.bf16.gmra.mxu0 %v2929
      %v4218 = vpop.f32.mrf.mxu0
      %v4219 = vadd.f32 %v4130, %v4218
      %v4220 = vpop.f32.mrf.mxu0
      %v4221 = vadd.f32 %v4132, %v4220
      %4222 = vmatmul.bf16.gmra.mxu0 %v2938
      %v4223 = vpop.f32.mrf.mxu0
      %v4224 = vadd.f32 %v4135, %v4223
      %v4225 = vpop.f32.mrf.mxu0
      %v4226 = vadd.f32 %v4137, %v4225
      %4227 = vdwg.mxu0
      %4228 = vmatpush.bf16.msra.mxu0 %v3443
      %4229 = vmatpush.bf16.msra.mxu0 %v3442
      %4230 = vmatpush.bf16.msra.mxu0 %v3441
      %4231 = vmatpush.bf16.msra.mxu0 %v3440
      %4232 = vmatpush.bf16.msra.mxu0 %v3439
      %4233 = vmatpush.bf16.msra.mxu0 %v3438
      %4234 = vmatpush.bf16.msra.mxu0 %v3437
      %4235 = vmatpush.bf16.msra.mxu0 %v3436
      %4236 = vmatmul.bf16.gmra.mxu0 %v2804
      %v4237 = vpop.f32.mrf.mxu0
      %v4238 = vadd.f32 %v4149, %v4237
      %v4239 = vpop.f32.mrf.mxu0
      %v4240 = vadd.f32 %v4151, %v4239
      %4241 = vmatmul.bf16.gmra.mxu0 %v2813
      %v4242 = vpop.f32.mrf.mxu0
      %v4243 = vadd.f32 %v4154, %v4242
      %v4244 = vpop.f32.mrf.mxu0
      %v4245 = vadd.f32 %v4156, %v4244
      %4246 = vmatmul.bf16.gmra.mxu0 %v2822
      %v4247 = vpop.f32.mrf.mxu0
      %v4248 = vadd.f32 %v4159, %v4247
      %v4249 = vpop.f32.mrf.mxu0
      %v4250 = vadd.f32 %v4161, %v4249
      %4251 = vmatmul.bf16.gmra.mxu0 %v2831
      %v4252 = vpop.f32.mrf.mxu0
      %v4253 = vadd.f32 %v4164, %v4252
      %v4254 = vpop.f32.mrf.mxu0
      %v4255 = vadd.f32 %v4166, %v4254
      %4256 = vmatmul.bf16.gmra.mxu0 %v2840
      %v4257 = vpop.f32.mrf.mxu0
      %v4258 = vadd.f32 %v4169, %v4257
      %v4259 = vpop.f32.mrf.mxu0
      %v4260 = vadd.f32 %v4171, %v4259
      %4261 = vmatmul.bf16.gmra.mxu0 %v2849
      %v4262 = vpop.f32.mrf.mxu0
      %v4263 = vadd.f32 %v4174, %v4262
      %v4264 = vpop.f32.mrf.mxu0
      %v4265 = vadd.f32 %v4176, %v4264
      %4266 = vmatmul.bf16.gmra.mxu0 %v2858
      %v4267 = vpop.f32.mrf.mxu0
      %v4268 = vadd.f32 %v4179, %v4267
      %v4269 = vpop.f32.mrf.mxu0
      %v4270 = vadd.f32 %v4181, %v4269
      %4271 = vmatmul.bf16.gmra.mxu0 %v2867
      %v4272 = vpop.f32.mrf.mxu0
      %v4273 = vadd.f32 %v4184, %v4272
      %v4274 = vpop.f32.mrf.mxu0
      %v4275 = vadd.f32 %v4186, %v4274
      %4276 = vmatmul.bf16.gmra.mxu0 %v2876
      %v4277 = vpop.f32.mrf.mxu0
      %v4278 = vadd.f32 %v4189, %v4277
      %v4279 = vpop.f32.mrf.mxu0
      %v4280 = vadd.f32 %v4191, %v4279
      %4281 = vmatmul.bf16.gmra.mxu0 %v2885
      %v4282 = vpop.f32.mrf.mxu0
      %v4283 = vadd.f32 %v4194, %v4282
      %v4284 = vpop.f32.mrf.mxu0
      %v4285 = vadd.f32 %v4196, %v4284
      %4286 = vmatmul.bf16.gmra.mxu0 %v2894
      %v4287 = vpop.f32.mrf.mxu0
      %v4288 = vadd.f32 %v4199, %v4287
      %v4289 = vpop.f32.mrf.mxu0
      %v4290 = vadd.f32 %v4201, %v4289
      %4291 = vmatmul.bf16.gmra.mxu0 %v2903
      %v4292 = vpop.f32.mrf.mxu0
      %v4293 = vadd.f32 %v4204, %v4292
      %v4294 = vpop.f32.mrf.mxu0
      %v4295 = vadd.f32 %v4206, %v4294
      %4296 = vmatmul.bf16.gmra.mxu0 %v2912
      %v4297 = vpop.f32.mrf.mxu0
      %v4298 = vadd.f32 %v4209, %v4297
      %v4299 = vpop.f32.mrf.mxu0
      %v4300 = vadd.f32 %v4211, %v4299
      %4301 = vmatmul.bf16.gmra.mxu0 %v2921
      %v4302 = vpop.f32.mrf.mxu0
      %v4303 = vadd.f32 %v4214, %v4302
      %v4304 = vpop.f32.mrf.mxu0
      %v4305 = vadd.f32 %v4216, %v4304
      %4306 = vmatmul.bf16.gmra.mxu0 %v2930
      %v4307 = vpop.f32.mrf.mxu0
      %v4308 = vadd.f32 %v4219, %v4307
      %v4309 = vpop.f32.mrf.mxu0
      %v4310 = vadd.f32 %v4221, %v4309
      %4311 = vmatmul.bf16.gmra.mxu0 %v2939
      %v4312 = vpop.f32.mrf.mxu0
      %v4313 = vadd.f32 %v4224, %v4312
      %v4314 = vpop.f32.mrf.mxu0
      %v4315 = vadd.f32 %v4226, %v4314
      %4316 = vdwg.mxu0
      %vm4317 = vcmp.lt.s32.totalorder %v675, 16
      %vm4318 = vcmp.lt.s32.totalorder %v676, 16
      %vm4319 = vcmp.lt.s32.totalorder %v677, 16
      %vm4320 = vcmp.lt.s32.totalorder %v678, 16
      %vm4321 = vcmp.lt.s32.totalorder %v679, 16
      %vm4322 = vcmp.lt.s32.totalorder %v680, 16
      %vm4323 = vcmp.lt.s32.totalorder %v681, 16
      %vm4324 = vcmp.lt.s32.totalorder %v682, 16
      %vm4325 = vcmp.lt.s32.totalorder %v683, 16
      %vm4326 = vcmp.lt.s32.totalorder %v684, 16
      %vm4327 = vcmp.lt.s32.totalorder %v685, 16
      %vm4328 = vcmp.lt.s32.totalorder %v686, 16
      %vm4329 = vcmp.lt.s32.totalorder %v687, 16
      %vm4330 = vcmp.lt.s32.totalorder %v688, 16
      %vm4331 = vcmp.lt.s32.totalorder %v689, 16
      %vm4332 = vcmp.lt.s32.totalorder %v690, 16
      %v4333 = vsel %vm4317, 1, 0
      %v4334 = vsel %vm4318, 1, 0
      %v4335 = vsel %vm4319, 1, 0
      %v4336 = vsel %vm4320, 1, 0
      %v4337 = vsel %vm4321, 1, 0
      %v4338 = vsel %vm4322, 1, 0
      %v4339 = vsel %vm4323, 1, 0
      %v4340 = vsel %vm4324, 1, 0
      %v4341 = vsel %vm4325, 1, 0
      %v4342 = vsel %vm4326, 1, 0
      %v4343 = vsel %vm4327, 1, 0
      %v4344 = vsel %vm4328, 1, 0
      %v4345 = vsel %vm4329, 1, 0
      %v4346 = vsel %vm4330, 1, 0
      %v4347 = vsel %vm4331, 1, 0
      %v4348 = vsel %vm4332, 1, 0
      %vm4349 = vcmp.eq.s32.totalorder %v4333, 1
      %vm4350 = vcmp.eq.s32.totalorder %v4334, 1
      %vm4351 = vcmp.eq.s32.totalorder %v4335, 1
      %vm4352 = vcmp.eq.s32.totalorder %v4336, 1
      %vm4353 = vcmp.eq.s32.totalorder %v4337, 1
      %vm4354 = vcmp.eq.s32.totalorder %v4338, 1
      %vm4355 = vcmp.eq.s32.totalorder %v4339, 1
      %vm4356 = vcmp.eq.s32.totalorder %v4340, 1
      %vm4357 = vcmp.eq.s32.totalorder %v4341, 1
      %vm4358 = vcmp.eq.s32.totalorder %v4342, 1
      %vm4359 = vcmp.eq.s32.totalorder %v4343, 1
      %vm4360 = vcmp.eq.s32.totalorder %v4344, 1
      %vm4361 = vcmp.eq.s32.totalorder %v4345, 1
      %vm4362 = vcmp.eq.s32.totalorder %v4346, 1
      %vm4363 = vcmp.eq.s32.totalorder %v4347, 1
      %vm4364 = vcmp.eq.s32.totalorder %v4348, 1
      %v4365 = vsel %vm4349, %v4238, 0.0
      %v4366 = vsel %vm4349, %v4240, 0.0
      %v4367 = vsel %vm4350, %v4243, 0.0
      %v4368 = vsel %vm4350, %v4245, 0.0
      %v4369 = vsel %vm4351, %v4248, 0.0
      %v4370 = vsel %vm4351, %v4250, 0.0
      %v4371 = vsel %vm4352, %v4253, 0.0
      %v4372 = vsel %vm4352, %v4255, 0.0
      %v4373 = vsel %vm4353, %v4258, 0.0
      %v4374 = vsel %vm4353, %v4260, 0.0
      %v4375 = vsel %vm4354, %v4263, 0.0
      %v4376 = vsel %vm4354, %v4265, 0.0
      %v4377 = vsel %vm4355, %v4268, 0.0
      %v4378 = vsel %vm4355, %v4270, 0.0
      %v4379 = vsel %vm4356, %v4273, 0.0
      %v4380 = vsel %vm4356, %v4275, 0.0
      %v4381 = vsel %vm4357, %v4278, 0.0
      %v4382 = vsel %vm4357, %v4280, 0.0
      %v4383 = vsel %vm4358, %v4283, 0.0
      %v4384 = vsel %vm4358, %v4285, 0.0
      %v4385 = vsel %vm4359, %v4288, 0.0
      %v4386 = vsel %vm4359, %v4290, 0.0
      %v4387 = vsel %vm4360, %v4293, 0.0
      %v4388 = vsel %vm4360, %v4295, 0.0
      %v4389 = vsel %vm4361, %v4298, 0.0
      %v4390 = vsel %vm4361, %v4300, 0.0
      %v4391 = vsel %vm4362, %v4303, 0.0
      %v4392 = vsel %vm4362, %v4305, 0.0
      %v4393 = vsel %vm4363, %v4308, 0.0
      %v4394 = vsel %vm4363, %v4310, 0.0
      %v4395 = vsel %vm4364, %v4313, 0.0
      %v4396 = vsel %vm4364, %v4315, 0.0
      %v4397 = vpack.c.bf16 %v4365, %v4365
      %v4398 = vpack.c.bf16 %v4366, %v4366
      %v4399 = vpack.c.bf16 %v4367, %v4367
      %v4400 = vpack.c.bf16 %v4368, %v4368
      %v4401 = vpack.c.bf16 %v4369, %v4369
      %v4402 = vpack.c.bf16 %v4370, %v4370
      %v4403 = vpack.c.bf16 %v4371, %v4371
      %v4404 = vpack.c.bf16 %v4372, %v4372
      %v4405 = vpack.c.bf16 %v4373, %v4373
      %v4406 = vpack.c.bf16 %v4374, %v4374
      %v4407 = vpack.c.bf16 %v4375, %v4375
      %v4408 = vpack.c.bf16 %v4376, %v4376
      %v4409 = vpack.c.bf16 %v4377, %v4377
      %v4410 = vpack.c.bf16 %v4378, %v4378
      %v4411 = vpack.c.bf16 %v4379, %v4379
      %v4412 = vpack.c.bf16 %v4380, %v4380
      %v4413 = vpack.c.bf16 %v4381, %v4381
      %v4414 = vpack.c.bf16 %v4382, %v4382
      %v4415 = vpack.c.bf16 %v4383, %v4383
      %v4416 = vpack.c.bf16 %v4384, %v4384
      %v4417 = vpack.c.bf16 %v4385, %v4385
      %v4418 = vpack.c.bf16 %v4386, %v4386
      %v4419 = vpack.c.bf16 %v4387, %v4387
      %v4420 = vpack.c.bf16 %v4388, %v4388
      %v4421 = vpack.c.bf16 %v4389, %v4389
      %v4422 = vpack.c.bf16 %v4390, %v4390
      %v4423 = vpack.c.bf16 %v4391, %v4391
      %v4424 = vpack.c.bf16 %v4392, %v4392
      %v4425 = vpack.c.bf16 %v4393, %v4393
      %v4426 = vpack.c.bf16 %v4394, %v4394
      %v4427 = vpack.c.bf16 %v4395, %v4395
      %v4428 = vpack.c.bf16 %v4396, %v4396
      %4429 = vst [vmem:[%s279] sm:$0xf] %v4397
      %4430 = vst [vmem:[%s279 + $0x4] sm:$0xf] %v4398
      %4431 = vst [vmem:[%s279 + $0x8] sm:$0xf] %v4399
      %4432 = vst [vmem:[%s279 + $0xc] sm:$0xf] %v4400
      %4433 = vst [vmem:[%s279 + $0x10] sm:$0xf] %v4401
      %4434 = vst [vmem:[%s279 + $0x14] sm:$0xf] %v4402
      %4435 = vst [vmem:[%s279 + $0x18] sm:$0xf] %v4403
      %4436 = vst [vmem:[%s279 + $0x1c] sm:$0xf] %v4404
      %4437 = vst [vmem:[%s279 + $0x20] sm:$0xf] %v4405
      %4438 = vst [vmem:[%s279 + $0x24] sm:$0xf] %v4406
      %4439 = vst [vmem:[%s279 + $0x28] sm:$0xf] %v4407
      %4440 = vst [vmem:[%s279 + $0x2c] sm:$0xf] %v4408
      %4441 = vst [vmem:[%s279 + $0x30] sm:$0xf] %v4409
      %4442 = vst [vmem:[%s279 + $0x34] sm:$0xf] %v4410
      %4443 = vst [vmem:[%s279 + $0x38] sm:$0xf] %v4411
      %4444 = vst [vmem:[%s279 + $0x3c] sm:$0xf] %v4412
      %4445 = vst [vmem:[%s279 + $0x40] sm:$0xf] %v4413
      %4446 = vst [vmem:[%s279 + $0x44] sm:$0xf] %v4414
      %4447 = vst [vmem:[%s279 + $0x48] sm:$0xf] %v4415
      %4448 = vst [vmem:[%s279 + $0x4c] sm:$0xf] %v4416
      %4449 = vst [vmem:[%s279 + $0x50] sm:$0xf] %v4417
      %4450 = vst [vmem:[%s279 + $0x54] sm:$0xf] %v4418
      %4451 = vst [vmem:[%s279 + $0x58] sm:$0xf] %v4419
      %4452 = vst [vmem:[%s279 + $0x5c] sm:$0xf] %v4420
      %4453 = vst [vmem:[%s279 + $0x60] sm:$0xf] %v4421
      %4454 = vst [vmem:[%s279 + $0x64] sm:$0xf] %v4422
      %4455 = vst [vmem:[%s279 + $0x68] sm:$0xf] %v4423
      %4456 = vst [vmem:[%s279 + $0x6c] sm:$0xf] %v4424
      %4457 = vst [vmem:[%s279 + $0x70] sm:$0xf] %v4425
      %4458 = vst [vmem:[%s279 + $0x74] sm:$0xf] %v4426
      %4459 = vst [vmem:[%s279 + $0x78] sm:$0xf] %v4427
      %4460 = vst [vmem:[%s279 + $0x7c] sm:$0xf] %v4428
      %v4461 = vunpack.c.l.bf16 %v4397
      %v4462 = vunpack.c.l.bf16 %v4398
      %v4463 = vunpack.c.l.bf16 %v4399
      %v4464 = vunpack.c.l.bf16 %v4400
      %v4465 = vunpack.c.l.bf16 %v4401
      %v4466 = vunpack.c.l.bf16 %v4402
      %v4467 = vunpack.c.l.bf16 %v4403
      %v4468 = vunpack.c.l.bf16 %v4404
      %v4469 = vunpack.c.l.bf16 %v4405
      %v4470 = vunpack.c.l.bf16 %v4406
      %v4471 = vunpack.c.l.bf16 %v4407
      %v4472 = vunpack.c.l.bf16 %v4408
      %v4473 = vunpack.c.l.bf16 %v4409
      %v4474 = vunpack.c.l.bf16 %v4410
      %v4475 = vunpack.c.l.bf16 %v4411
      %v4476 = vunpack.c.l.bf16 %v4412
      %v4477 = vunpack.c.l.bf16 %v4413
      %v4478 = vunpack.c.l.bf16 %v4414
      %v4479 = vunpack.c.l.bf16 %v4415
      %v4480 = vunpack.c.l.bf16 %v4416
      %v4481 = vunpack.c.l.bf16 %v4417
      %v4482 = vunpack.c.l.bf16 %v4418
      %v4483 = vunpack.c.l.bf16 %v4419
      %v4484 = vunpack.c.l.bf16 %v4420
      %v4485 = vunpack.c.l.bf16 %v4421
      %v4486 = vunpack.c.l.bf16 %v4422
      %v4487 = vunpack.c.l.bf16 %v4423
      %v4488 = vunpack.c.l.bf16 %v4424
      %v4489 = vunpack.c.l.bf16 %v4425
      %v4490 = vunpack.c.l.bf16 %v4426
      %v4491 = vunpack.c.l.bf16 %v4427
      %v4492 = vunpack.c.l.bf16 %v4428
      %v4493 = vcvt.s32.f32 %v4333
      %v4494 = vcvt.s32.f32 %v4334
      %v4495 = vcvt.s32.f32 %v4335
      %v4496 = vcvt.s32.f32 %v4336
      %v4497 = vcvt.s32.f32 %v4337
      %v4498 = vcvt.s32.f32 %v4338
      %v4499 = vcvt.s32.f32 %v4339
      %v4500 = vcvt.s32.f32 %v4340
      %v4501 = vcvt.s32.f32 %v4341
      %v4502 = vcvt.s32.f32 %v4342
      %v4503 = vcvt.s32.f32 %v4343
      %v4504 = vcvt.s32.f32 %v4344
      %v4505 = vcvt.s32.f32 %v4345
      %v4506 = vcvt.s32.f32 %v4346
      %v4507 = vcvt.s32.f32 %v4347
      %v4508 = vcvt.s32.f32 %v4348
      %v4509 = vadd.f32 %v4493, %v4493
      %v4510 = vadd.f32 %v4509, %v4494
      %v4511 = vadd.f32 %v4510, %v4494
      %v4512 = vadd.f32 %v4511, %v4495
      %v4513 = vadd.f32 %v4512, %v4495
      %v4514 = vadd.f32 %v4513, %v4496
      %v4515 = vadd.f32 %v4514, %v4496
      %v4516 = vadd.f32 %v4515, %v4497
      %v4517 = vadd.f32 %v4516, %v4497
      %v4518 = vadd.f32 %v4517, %v4498
      %v4519 = vadd.f32 %v4518, %v4498
      %v4520 = vadd.f32 %v4519, %v4499
      %v4521 = vadd.f32 %v4520, %v4499
      %v4522 = vadd.f32 %v4521, %v4500
      %v4523 = vadd.f32 %v4522, %v4500
      %v4524 = vadd.f32 %v4523, %v4501
      %v4525 = vadd.f32 %v4524, %v4501
      %v4526 = vadd.f32 %v4525, %v4502
      %v4527 = vadd.f32 %v4526, %v4502
      %v4528 = vadd.f32 %v4527, %v4503
      %v4529 = vadd.f32 %v4528, %v4503
      %v4530 = vadd.f32 %v4529, %v4504
      %v4531 = vadd.f32 %v4530, %v4504
      %v4532 = vadd.f32 %v4531, %v4505
      %v4533 = vadd.f32 %v4532, %v4505
      %v4534 = vadd.f32 %v4533, %v4506
      %v4535 = vadd.f32 %v4534, %v4506
      %v4536 = vadd.f32 %v4535, %v4507
      %v4537 = vadd.f32 %v4536, %v4507
      %v4538 = vadd.f32 %v4537, %v4508
      %v4539 = vadd.f32 %v4538, %v4508
      %v4540 = vrot.slane %v4539, 4
      %v4541 = vadd.f32 %v4539, %v4540
      %v4542 = vrot.slane %v4541, 2
      %v4543 = vadd.f32 %v4541, %v4542
      %v4544 = vrot.slane %v4543, 1
      %v4545 = vadd.f32 %v4543, %v4544
      %v4546 = vadd.f32 %v4461, %v4462
      %v4547 = vadd.f32 %v4546, %v4463
      %v4548 = vadd.f32 %v4547, %v4464
      %v4549 = vadd.f32 %v4548, %v4465
      %v4550 = vadd.f32 %v4549, %v4466
      %v4551 = vadd.f32 %v4550, %v4467
      %v4552 = vadd.f32 %v4551, %v4468
      %v4553 = vadd.f32 %v4552, %v4469
      %v4554 = vadd.f32 %v4553, %v4470
      %v4555 = vadd.f32 %v4554, %v4471
      %v4556 = vadd.f32 %v4555, %v4472
      %v4557 = vadd.f32 %v4556, %v4473
      %v4558 = vadd.f32 %v4557, %v4474
      %v4559 = vadd.f32 %v4558, %v4475
      %v4560 = vadd.f32 %v4559, %v4476
      %v4561 = vadd.f32 %v4560, %v4477
      %v4562 = vadd.f32 %v4561, %v4478
      %v4563 = vadd.f32 %v4562, %v4479
      %v4564 = vadd.f32 %v4563, %v4480
      %v4565 = vadd.f32 %v4564, %v4481
      %v4566 = vadd.f32 %v4565, %v4482
      %v4567 = vadd.f32 %v4566, %v4483
      %v4568 = vadd.f32 %v4567, %v4484
      %v4569 = vadd.f32 %v4568, %v4485
      %v4570 = vadd.f32 %v4569, %v4486
      %v4571 = vadd.f32 %v4570, %v4487
      %v4572 = vadd.f32 %v4571, %v4488
      %v4573 = vadd.f32 %v4572, %v4489
      %v4574 = vadd.f32 %v4573, %v4490
      %v4575 = vadd.f32 %v4574, %v4491
      %v4576 = vadd.f32 %v4575, %v4492
      %v4577 = vrot.slane %v4576, 4
      %v4578 = vadd.f32 %v4576, %v4577
      %v4579 = vrot.slane %v4578, 2
      %v4580 = vadd.f32 %v4578, %v4579
      %v4581 = vrot.slane %v4580, 1
      %v4582 = vadd.f32 %v4580, %v4581
      %v4583 = vrcp.pop %v4545
      %v4584 = vmul.f32 %v4545, %v4583
      %v4585 = vsub.f32 1.0, %v4584
      %v4586 = vmul.f32 %v4583, %v4585
      %v4587 = vadd.f32 %v4583, %v4586
      %vm4588 = vweird.f32 %v4545
      %vm4589 = vweird.f32 %v4583
      %vm4590 = vmor %vm4588, %vm4589
      %v4591 = vsel %vm4590, %v4583, %v4587
      %v4592 = vand.u32 2147483647, %v4545
      %vm4593 = vcmp.eq.f32.partialorder %v4592, 8.507059e+37
      %v4594 = vand.u32 %v4545, 2147483648
      %v4595 = vor.u32 1.1754944e-38, %v4594
      %v4596 = vsel %vm4593, %v4595, %v4591
      %v4597 = vmul.f32 %v4582, %v4596
      %v4598 = vsub.f32 %v4461, %v4597
      %v4599 = vsub.f32 %v4462, %v4597
      %v4600 = vsub.f32 %v4463, %v4597
      %v4601 = vsub.f32 %v4464, %v4597
      %v4602 = vsub.f32 %v4465, %v4597
      %v4603 = vsub.f32 %v4466, %v4597
      %v4604 = vsub.f32 %v4467, %v4597
      %v4605 = vsub.f32 %v4468, %v4597
      %v4606 = vsub.f32 %v4469, %v4597
      %v4607 = vsub.f32 %v4470, %v4597
      %v4608 = vsub.f32 %v4471, %v4597
      %v4609 = vsub.f32 %v4472, %v4597
      %v4610 = vsub.f32 %v4473, %v4597
      %v4611 = vsub.f32 %v4474, %v4597
      %v4612 = vsub.f32 %v4475, %v4597
      %v4613 = vsub.f32 %v4476, %v4597
      %v4614 = vsub.f32 %v4477, %v4597
      %v4615 = vsub.f32 %v4478, %v4597
      %v4616 = vsub.f32 %v4479, %v4597
      %v4617 = vsub.f32 %v4480, %v4597
      %v4618 = vsub.f32 %v4481, %v4597
      %v4619 = vsub.f32 %v4482, %v4597
      %v4620 = vsub.f32 %v4483, %v4597
      %v4621 = vsub.f32 %v4484, %v4597
      %v4622 = vsub.f32 %v4485, %v4597
      %v4623 = vsub.f32 %v4486, %v4597
      %v4624 = vsub.f32 %v4487, %v4597
      %v4625 = vsub.f32 %v4488, %v4597
      %v4626 = vsub.f32 %v4489, %v4597
      %v4627 = vsub.f32 %v4490, %v4597
      %v4628 = vsub.f32 %v4491, %v4597
      %v4629 = vsub.f32 %v4492, %v4597
      %v4630 = vsel %vm4349, %v4598, 0.0
      %v4631 = vsel %vm4349, %v4599, 0.0
      %v4632 = vsel %vm4350, %v4600, 0.0
      %v4633 = vsel %vm4350, %v4601, 0.0
      %v4634 = vsel %vm4351, %v4602, 0.0
      %v4635 = vsel %vm4351, %v4603, 0.0
      %v4636 = vsel %vm4352, %v4604, 0.0
      %v4637 = vsel %vm4352, %v4605, 0.0
      %v4638 = vsel %vm4353, %v4606, 0.0
      %v4639 = vsel %vm4353, %v4607, 0.0
      %v4640 = vsel %vm4354, %v4608, 0.0
      %v4641 = vsel %vm4354, %v4609, 0.0
      %v4642 = vsel %vm4355, %v4610, 0.0
      %v4643 = vsel %vm4355, %v4611, 0.0
      %v4644 = vsel %vm4356, %v4612, 0.0
      %v4645 = vsel %vm4356, %v4613, 0.0
      %v4646 = vsel %vm4357, %v4614, 0.0
      %v4647 = vsel %vm4357, %v4615, 0.0
      %v4648 = vsel %vm4358, %v4616, 0.0
      %v4649 = vsel %vm4358, %v4617, 0.0
      %v4650 = vsel %vm4359, %v4618, 0.0
      %v4651 = vsel %vm4359, %v4619, 0.0
      %v4652 = vsel %vm4360, %v4620, 0.0
      %v4653 = vsel %vm4360, %v4621, 0.0
      %v4654 = vsel %vm4361, %v4622, 0.0
      %v4655 = vsel %vm4361, %v4623, 0.0
      %v4656 = vsel %vm4362, %v4624, 0.0
      %v4657 = vsel %vm4362, %v4625, 0.0
      %v4658 = vsel %vm4363, %v4626, 0.0
      %v4659 = vsel %vm4363, %v4627, 0.0
      %v4660 = vsel %vm4364, %v4628, 0.0
      %v4661 = vsel %vm4364, %v4629, 0.0
      %v4662 = vmul.f32 %v4630, %v4630
      %v4663 = vmul.f32 %v4631, %v4631
      %v4664 = vmul.f32 %v4632, %v4632
      %v4665 = vmul.f32 %v4633, %v4633
      %v4666 = vmul.f32 %v4634, %v4634
      %v4667 = vmul.f32 %v4635, %v4635
      %v4668 = vmul.f32 %v4636, %v4636
      %v4669 = vmul.f32 %v4637, %v4637
      %v4670 = vmul.f32 %v4638, %v4638
      %v4671 = vmul.f32 %v4639, %v4639
      %v4672 = vmul.f32 %v4640, %v4640
      %v4673 = vmul.f32 %v4641, %v4641
      %v4674 = vmul.f32 %v4642, %v4642
      %v4675 = vmul.f32 %v4643, %v4643
      %v4676 = vmul.f32 %v4644, %v4644
      %v4677 = vmul.f32 %v4645, %v4645
      %v4678 = vmul.f32 %v4646, %v4646
      %v4679 = vmul.f32 %v4647, %v4647
      %v4680 = vmul.f32 %v4648, %v4648
      %v4681 = vmul.f32 %v4649, %v4649
      %v4682 = vmul.f32 %v4650, %v4650
      %v4683 = vmul.f32 %v4651, %v4651
      %v4684 = vmul.f32 %v4652, %v4652
      %v4685 = vmul.f32 %v4653, %v4653
      %v4686 = vmul.f32 %v4654, %v4654
      %v4687 = vmul.f32 %v4655, %v4655
      %v4688 = vmul.f32 %v4656, %v4656
      %v4689 = vmul.f32 %v4657, %v4657
      %v4690 = vmul.f32 %v4658, %v4658
      %v4691 = vmul.f32 %v4659, %v4659
      %v4692 = vmul.f32 %v4660, %v4660
      %v4693 = vmul.f32 %v4661, %v4661
      %v4694 = vadd.f32 %v4662, %v4663
      %v4695 = vadd.f32 %v4694, %v4664
      %v4696 = vadd.f32 %v4695, %v4665
      %v4697 = vadd.f32 %v4696, %v4666
      %v4698 = vadd.f32 %v4697, %v4667
      %v4699 = vadd.f32 %v4698, %v4668
      %v4700 = vadd.f32 %v4699, %v4669
      %v4701 = vadd.f32 %v4700, %v4670
      %v4702 = vadd.f32 %v4701, %v4671
      %v4703 = vadd.f32 %v4702, %v4672
      %v4704 = vadd.f32 %v4703, %v4673
      %v4705 = vadd.f32 %v4704, %v4674
      %v4706 = vadd.f32 %v4705, %v4675
      %v4707 = vadd.f32 %v4706, %v4676
      %v4708 = vadd.f32 %v4707, %v4677
      %v4709 = vadd.f32 %v4708, %v4678
      %v4710 = vadd.f32 %v4709, %v4679
      %v4711 = vadd.f32 %v4710, %v4680
      %v4712 = vadd.f32 %v4711, %v4681
      %v4713 = vadd.f32 %v4712, %v4682
      %v4714 = vadd.f32 %v4713, %v4683
      %v4715 = vadd.f32 %v4714, %v4684
      %v4716 = vadd.f32 %v4715, %v4685
      %v4717 = vadd.f32 %v4716, %v4686
      %v4718 = vadd.f32 %v4717, %v4687
      %v4719 = vadd.f32 %v4718, %v4688
      %v4720 = vadd.f32 %v4719, %v4689
      %v4721 = vadd.f32 %v4720, %v4690
      %v4722 = vadd.f32 %v4721, %v4691
      %v4723 = vadd.f32 %v4722, %v4692
      %v4724 = vadd.f32 %v4723, %v4693
      %v4725 = vrot.slane %v4724, 4
      %v4726 = vadd.f32 %v4724, %v4725
      %v4727 = vrot.slane %v4726, 2
      %v4728 = vadd.f32 %v4726, %v4727
      %v4729 = vrot.slane %v4728, 1
      %v4730 = vadd.f32 %v4728, %v4729
      %vm4731 = vcmask 1040384
      %v4732 = vsel %vm4731, %v4582, %v4730
      %4733 = vst [vmem:[%s287] sm:$0x3] %v4732
      %s4734 = smul.u32 16, %s22
      %p4735 = scmp.lt.s32.totalorder %s21, 1
      %s4736 = scalar_select %p4735, %s21, 1
      %p4737 = scmp.lt.s32.totalorder %s4734, 15
      %s4738 = scalar_select %p4737, %s4734, 15
      %s4739 = smul.addr %s4738, 2
      %s4740 = smul.addr %s4736, 32
      %s4741 = sadd.s32 %s4739, %s4740
      %s4742 = smul.addr %s4741, 4
      %s4743 = scalar_lea.vmem %s4, %s4742
      %p4744 = scmp.lt.s32.totalorder %s21, 1
      %s4745 = scalar_select %p4744, %s21, 1
      %p4746 = scmp.lt.s32.totalorder %s22, 0
      %s4747 = scalar_select %p4746, %s22, 0
      %s4748 = sadd.s32 %s4747, %s4745
      %s4749 = smul.addr %s4748, 2
      %s4750 = scalar_lea.vmem %s5, %s4749
      // Predicated region
      $region37: #{_double_conv_nchw.3} parent=35 // pred_check
        %p4751 = pneg %p140
      $region38: #{_double_conv_nchw.3} parent=35 // pred_check_branch
        %4753 = sbr.rel (%p4751) target = $region40
      $region39: #{_double_conv_nchw.3} parent=35 // pred_region
        %s4754 = smul.u32 16, %s22
      $region40: #{_double_conv_nchw.3} parent=35 // pred_fallthru
        _
      // Predicated region
      $region41: #{_double_conv_nchw.3} parent=35 // pred_check
        %p4755 = pneg %p168
      $region42: #{_double_conv_nchw.3} parent=35 // pred_check_branch
        %4757 = sbr.rel (%p4755) target = $region44
      $region43: #{_double_conv_nchw.3} parent=35 // pred_region
        _
      $region44: #{_double_conv_nchw.3} parent=35 // pred_fallthru
        _
    $region36: #{_double_conv_nchw.3} parent=5 // pred_fallthru
      _
    %p4758 = scmp.le.s32.totalorder 2, %s12
    // Predicated region
    $region45: #{_double_conv_nchw.3} parent=5 // pred_check
      %p4759 = pneg %p4758
    $region46: #{_double_conv_nchw.3} parent=5 // pred_check_branch
      %4761 = sbr.rel (%p4759) target = $region48
    $region47: #{_double_conv_nchw.3} parent=5 // pred_region
      %s4762 = ssub.s32 %s12, 2
      // Predicated region
      $region49: #{_double_conv_nchw.3} parent=47 // pred_check
        %p4763 = pneg %p146
      $region50: #{_double_conv_nchw.3} parent=47 // pred_check_branch
        %4765 = sbr.rel (%p4763) target = $region52
      $region51: #{_double_conv_nchw.3} parent=47 // pred_region
        %s4766 = smul.u32 16, %s24
        %p4767 = scmp.lt.s32.totalorder %s23, 1
        %s4768 = scalar_select %p4767, %s23, 1
        %p4769 = scmp.lt.s32.totalorder %s4766, 15
        %s4770 = scalar_select %p4769, %s4766, 15
        %s4771 = smul.addr %s4770, 2
        %s4772 = smul.addr %s4768, 32
        %s4773 = sadd.s32 %s4771, %s4772
        %s4774 = smul.addr %s4773, 4
        %s4775 = scalar_lea.vmem %s4, %s4774
      $region52: #{_double_conv_nchw.3} parent=47 // pred_fallthru
        _
      // Predicated region
      $region53: #{_double_conv_nchw.3} parent=47 // pred_check
        %p4776 = pneg %p174
      $region54: #{_double_conv_nchw.3} parent=47 // pred_check_branch
        %4778 = sbr.rel (%p4776) target = $region56
      $region55: #{_double_conv_nchw.3} parent=47 // pred_region
        %p4779 = scmp.lt.s32.totalorder %s23, 1
        %s4780 = scalar_select %p4779, %s23, 1
        %p4781 = scmp.lt.s32.totalorder %s24, 0
        %s4782 = scalar_select %p4781, %s24, 0
        %s4783 = sadd.s32 %s4782, %s4780
        %s4784 = smul.addr %s4783, 2
        %s4785 = scalar_lea.vmem %s5, %s4784
      $region56: #{_double_conv_nchw.3} parent=47 // pred_fallthru
        _
    $region48: #{_double_conv_nchw.3} parent=5 // pred_fallthru
      _
  $region6: #{_double_conv_nchw.3} parent=0 // loop_footer
    %s16 = sadd.s32 1, %s12
  $region7: #{_double_conv_nchw.3} parent=0 // loop_footer_branch
    %11 = sbr.rel target = $region3
  $region8: #{_double_conv_nchw.3} parent=0 // loop_exit
    _

</llo_original>
